<compile_context>
chip_gen: v6e
topology: v6e:2x2x1
jax: 0.10.0
libtpu: 0.0.40
codegen_flags: <defaults>
</compile_context>

<pallas_src>
import functools

import numpy as np
import jax
import jax.numpy as jnp
from jax.experimental import pallas as pl
from jax.experimental.pallas import tpu as pltpu


def _cdiv(a, b):
    return (a + b - 1) // b


def _choose_row_tile(H, W, p1, p3, row_tile):
    if row_tile is None:
        # Target ~8K wide-columns per tile: big enough to amortize the ~0.35us
        # per-grid-step overhead and keep the MXU N dimension wide, small
        # enough that the materialized (K1,*)/(K3,*) im2col patches stay well
        # under the scoped-VMEM limit (~2.3 KB of patch bytes per column).
        row_tile = max(1, 8192 // (W + 2 * (p1 + p3)))
    return max(1, min(row_tile, H))


# -----------------------------------------------------------------------------
# Fused kernel: conv1(ks1 x ks1) + ReLU + conv2(1x1) + ReLU + conv3(ks3 x ks3),
# one row tile of one image per grid step.
#
#   x_ref   : (1, 1, Cin, SPAN)   bf16  flattened padded row-tile (+ halos)
#   mask    : (1, 1, U1)          f32   1.0 inside the HxW image, 0.0 outside
#   weights : channels-major, K ordered (dy, dx, ci)
#   o_ref   : (1, 1, nf_out, U2)  f32   wide (row-flattened) conv3 output
#
# Wide-column coordinate system: column u = t' * Wp_in + x'  corresponds to
# image row  r*T + t' - p3  and image col  x' - p3 ; the 2*p1 "gutter" columns
# per row carry wrapped garbage that only ever feeds gutter output columns,
# which the host crops away.
# -----------------------------------------------------------------------------
def _arcnn_fused_kernel(x_ref, mask_ref, w1t_ref, b1_ref, w2t_ref, b2_ref,
                        w3t_ref, b3_ref, o_ref, *, Wp_in, ks1, ks3, U1, U2):
    xflat = x_ref[0, 0, :, :]                          # (Cin, SPAN) bf16

    # ---- conv1 im2col, built ONCE per tile from static lane-shifted slices --
    pieces = []
    for dy in range(ks1):
        for dx in range(ks1):
            s = dy * Wp_in + dx
            pieces.append(xflat[:, s:s + U1])          # (Cin, U1)
    patch1 = jnp.concatenate(pieces, axis=0)           # (ks1*ks1*Cin, U1)

    # conv1 + bias + ReLU   (bf16 operands, f32 accumulate)
    h1 = jnp.dot(w1t_ref[...], patch1, preferred_element_type=jnp.float32)
    h1 = jnp.maximum(h1 + b1_ref[...], 0.0).astype(jnp.bfloat16)   # (nf1, U1)

    # conv2 (1x1) + bias + ReLU
    h2 = jnp.dot(w2t_ref[...], h1, preferred_element_type=jnp.float32)
    h2 = jnp.maximum(h2 + b2_ref[...], 0.0)                        # (nf2, U1)
    # Zero the positions outside the HxW image so conv3 sees exactly the zero
    # padding nn.Conv2d(padding=ks3//2) would; one full-tile multiply.
    h2 = (h2 * mask_ref[0, :, :]).astype(jnp.bfloat16)

    # ---- conv3 im2col on the in-VMEM h2, again one concat per tile ----------
    pieces3 = []
    for ey in range(ks3):
        for ex in range(ks3):
            s = ey * Wp_in + ex
            pieces3.append(h2[:, s:s + U2])            # (nf2, U2)
    patch3 = jnp.concatenate(pieces3, axis=0)          # (ks3*ks3*nf2, U2)

    y = jnp.dot(w3t_ref[...], patch3, preferred_element_type=jnp.float32)
    # Single dense, full-width store for the whole tile.
    o_ref[0, 0, :, :] = (y + b3_ref[...]).astype(o_ref.dtype)


# -----------------------------------------------------------------------------
# Forward pass (NCHW in, NCHW out) -- equivalent of Network.forward.
# -----------------------------------------------------------------------------
def network_forward(params, x_nchw, *, row_tile=None):
    w1, b1, w2, b2, w3, b3 = params
    N, Cin, H, W = x_nchw.shape
    ks1, _, _, nf1 = w1.shape
    ks2, _, _, nf2 = w2.shape
    ks3, _, _, nf_out = w3.shape
    assert ks2 == 1, "fused conv1+conv2+conv3 path assumes a 1x1 second conv"
    p1, p3 = ks1 // 2, ks3 // 2
    cdt = jnp.bfloat16                    # storage/operand dtype (f32 accumulate)

    T = _choose_row_tile(H, W, p1, p3, row_tile)
    R = _cdiv(H, T)

    pad = p1 + p3
    Wp_in = W + 2 * pad                   # padded width the kernel works in
    Hp = R * T + 2 * pad                  # padded height covering all tiles
    Trows = T + 2 * pad                   # input rows needed per tile
    EXTRA = 2 * pad                       # flat-index overread of the patches
    SPAN = Trows * Wp_in + EXTRA          # flattened input columns per tile
    Th = T + 2 * p3                       # h2 rows needed per tile (conv3 halo)
    U1 = Th * Wp_in + 2 * p3              # wide columns carried through conv1/2
    U2 = T * Wp_in                        # wide columns of the conv3 output

    # Flatten weights once, channels-major, K ordered (dy, dx, ci) to match the
    # in-kernel patch construction.
    K1 = ks1 * ks1 * Cin
    K3 = ks3 * ks3 * nf2
    w1t = w1.reshape(K1, nf1).T.astype(cdt)            # (nf1, K1)
    w2t = w2.reshape(nf1, nf2).T.astype(cdt)           # (nf2, nf1)
    w3t = w3.reshape(K3, nf_out).T.astype(cdt)         # (nf_out, K3)
    b1c = b1.reshape(nf1, 1).astype(jnp.float32)
    b2c = b2.reshape(nf2, 1).astype(jnp.float32)
    b3c = b3.reshape(nf_out, 1).astype(jnp.float32)

    # Pad once (conv1 + conv3 halos), flatten rows into the lane axis and cut
    # overlapping per-tile windows so the kernel input is a plain BlockSpec
    # block (auto double-buffered / prefetched by the Pallas pipeline).
    x_pad = jnp.pad(x_nchw.astype(cdt),
                    ((0, 0), (0, 0), (pad, Hp - pad - H), (pad, pad)))
    x_flat = x_pad.reshape(N, Cin, Hp * Wp_in)
    x_flat = jnp.pad(x_flat, ((0, 0), (0, 0), (0, EXTRA)))
    x_tiles = jnp.stack(
        [x_flat[:, :, r * T * Wp_in: r * T * Wp_in + SPAN] for r in range(R)],
        axis=1)                                        # (N, R, Cin, SPAN)

    # Per-tile validity mask in the wide coordinate system (compile-time const):
    # column u = t'*Wp_in + x'  <->  image row r*T + t' - p3, image col x' - p3.
    u = np.arange(U1)
    tprime, xprime = u // Wp_in, u % Wp_in
    col_ok = (xprime >= p3) & (xprime < W + p3)
    y_img = np.arange(R)[:, None] * T + tprime[None, :] - p3
    mask_np = ((y_img >= 0) & (y_img < H) & col_ok[None, :]).astype(np.float32)
    mask = jnp.asarray(mask_np[:, None, :])            # (R, 1, U1)

    kern = functools.partial(_arcnn_fused_kernel, Wp_in=Wp_in, ks1=ks1,
                             ks3=ks3, U1=U1, U2=U2)
    y_wide = pl.pallas_call(
        kern,
        out_shape=jax.ShapeDtypeStruct((N, R, nf_out, U2), jnp.float32),
        grid=(N, R),
        in_specs=[
            pl.BlockSpec((1, 1, Cin, SPAN), lambda n, r: (n, r, 0, 0)),
            pl.BlockSpec((1, 1, U1), lambda n, r: (r, 0, 0)),
            pl.BlockSpec((nf1, K1), lambda n, r: (0, 0)),
            pl.BlockSpec((nf1, 1), lambda n, r: (0, 0)),
            pl.BlockSpec((nf2, nf1), lambda n, r: (0, 0)),
            pl.BlockSpec((nf2, 1), lambda n, r: (0, 0)),
            pl.BlockSpec((nf_out, K3), lambda n, r: (0, 0)),
            pl.BlockSpec((nf_out, 1), lambda n, r: (0, 0)),
        ],
        out_specs=pl.BlockSpec((1, 1, nf_out, U2), lambda n, r: (n, r, 0, 0)),
        compiler_params=pltpu.CompilerParams(
            dimension_semantics=("parallel", "parallel"),
            vmem_limit_bytes=48 * 1024 * 1024),
    )(x_tiles, mask, w1t, b1c, w2t, b2c, w3t, b3c)

    # Un-flatten the wide columns back to (rows, padded width) and crop the
    # gutter / overshoot rows (tiny, 3-channel XLA copy).
    y = y_wide.reshape(N, R, nf_out, T, Wp_in)
    y = jnp.moveaxis(y, 1, 2).reshape(N, nf_out, R * T, Wp_in)
    return y[:, :, :H, :W]                             # (N, nf_out, H, W) NCHW


# -----------------------------------------------------------------------------
# Deterministic synthetic parameters (same shapes as the nn.Module __init__).
# -----------------------------------------------------------------------------
def init_params(key, nf_in=3, nf_out=3, nf1=64, nf2=32, ks1=9, ks2=1, ks3=5):
    keys = jax.random.split(key, 6)

    def conv_init(kw_key, kb_key, cin, cout, ks):
        fan_in = cin * ks * ks
        w = jax.random.normal(kw_key, (ks, ks, cin, cout), jnp.float32) / np.sqrt(fan_in)
        b = jax.random.normal(kb_key, (cout,), jnp.float32) * 0.01
        return w, b

    w1, b1 = conv_init(keys[0], keys[1], nf_in, nf1, ks1)
    w2, b2 = conv_init(keys[2], keys[3], nf1, nf2, ks2)
    w3, b3 = conv_init(keys[4], keys[5], nf2, nf_out, ks3)
    return (w1, b1, w2, b2, w3, b3)


def network_reference(params, x_nchw):
    """Pure-JAX reference (XLA conv, full f32) for correctness checking."""
    w1, b1, w2, b2, w3, b3 = params

    def conv(x, w, b):
        y = jax.lax.conv_general_dilated(
            x, w, window_strides=(1, 1), padding="SAME",
            dimension_numbers=("NCHW", "HWIO", "NCHW"),
            precision=jax.lax.Precision.HIGHEST)
        return y + b[None, :, None, None]

    x = jax.nn.relu(conv(x_nchw, w1, b1))
    x = jax.nn.relu(conv(x, w2, b2))
    return conv(x, w3, b3)


if __name__ == "__main__":
    key = jax.random.PRNGKey(0)
    k_param, k_inp = jax.random.split(key)

    params = init_params(k_param)
    x = jax.random.normal(k_inp, (2, 3, 16, 16), jnp.float32)   # NCHW, small

    ref = jax.block_until_ready(network_reference(params, x))

    # Exercise the default tiling (single tile) and multi-tile / uneven tilings.
    for rt in (None, 8, 5):
        fwd = jax.jit(functools.partial(network_forward, row_tile=rt))
        out = jax.block_until_ready(fwd(params, x))
        assert out.shape == (2, 3, 16, 16), out.shape
        # bf16 operands / f32 accumulation vs. a full-f32 reference -> 2e-2 tol.
        np.testing.assert_allclose(np.asarray(out), np.asarray(ref),
                                   rtol=2e-2, atol=2e-2)

    print("KERNEL_OK")
</pallas_src>

<mosaic_0001>
module attributes {stable_mosaic.version = 11 : i64} {
  func.func @_arcnn_fused_kernel(%arg0: i32, %arg1: i32, %arg2: memref<1x1x3x796xbf16, #tpu.memory_space<vmem>>, %arg3: memref<1x1x564xf32, #tpu.memory_space<vmem>>, %arg4: memref<64x243xbf16, #tpu.memory_space<vmem>>, %arg5: memref<64x1xf32, #tpu.memory_space<vmem>>, %arg6: memref<32x64xbf16, #tpu.memory_space<vmem>>, %arg7: memref<32x1xf32, #tpu.memory_space<vmem>>, %arg8: memref<3x800xbf16, #tpu.memory_space<vmem>>, %arg9: memref<3x1xf32, #tpu.memory_space<vmem>>, %arg10: memref<1x1x3x448xf32, #tpu.memory_space<vmem>>) attributes {dimension_semantics = [#tpu.dimension_semantics<parallel>, #tpu.dimension_semantics<parallel>], iteration_bounds = array<i64: 2, 1>, scalar_prefetch = 0 : i64, scratch_operands = 0 : i64, tpu.core_type = #tpu.core_type<tc>, window_params = [{transform_indices = @transform_0, window_bounds = array<i64: 1, 1, 3, 796>}, {transform_indices = @transform_1, window_bounds = array<i64: 1, 1, 564>}, {pipeline_mode = #tpu.pipeline_mode<synchronous>, transform_indices = @transform_2, window_bounds = array<i64: 64, 243>}, {pipeline_mode = #tpu.pipeline_mode<synchronous>, transform_indices = @transform_3, window_bounds = array<i64: 64, 1>}, {pipeline_mode = #tpu.pipeline_mode<synchronous>, transform_indices = @transform_4, window_bounds = array<i64: 32, 64>}, {pipeline_mode = #tpu.pipeline_mode<synchronous>, transform_indices = @transform_5, window_bounds = array<i64: 32, 1>}, {pipeline_mode = #tpu.pipeline_mode<synchronous>, transform_indices = @transform_6, window_bounds = array<i64: 3, 800>}, {pipeline_mode = #tpu.pipeline_mode<synchronous>, transform_indices = @transform_7, window_bounds = array<i64: 3, 1>}, {transform_indices = @transform_8, window_bounds = array<i64: 1, 1, 3, 448>}]} {
    %c0 = arith.constant 0 : index
    %c0_0 = arith.constant 0 : index
    %c0_1 = arith.constant 0 : index
    %c0_2 = arith.constant 0 : index
    %0 = vector.load %arg2[%c0, %c0_0, %c0_1, %c0_2] : memref<1x1x3x796xbf16, #tpu.memory_space<vmem>>, vector<1x1x3x796xbf16>
    %1 = vector.shape_cast %0 : vector<1x1x3x796xbf16> to vector<3x796xbf16>
    %2 = vector.extract_strided_slice %1 {offsets = [0, 0], sizes = [3, 564], strides = [1, 1]} : vector<3x796xbf16> to vector<3x564xbf16>
    %3 = vector.extract_strided_slice %1 {offsets = [0, 1], sizes = [3, 564], strides = [1, 1]} : vector<3x796xbf16> to vector<3x564xbf16>
    %4 = vector.extract_strided_slice %1 {offsets = [0, 2], sizes = [3, 564], strides = [1, 1]} : vector<3x796xbf16> to vector<3x564xbf16>
    %5 = vector.extract_strided_slice %1 {offsets = [0, 3], sizes = [3, 564], strides = [1, 1]} : vector<3x796xbf16> to vector<3x564xbf16>
    %6 = vector.extract_strided_slice %1 {offsets = [0, 4], sizes = [3, 564], strides = [1, 1]} : vector<3x796xbf16> to vector<3x564xbf16>
    %7 = vector.extract_strided_slice %1 {offsets = [0, 5], sizes = [3, 564], strides = [1, 1]} : vector<3x796xbf16> to vector<3x564xbf16>
    %8 = vector.extract_strided_slice %1 {offsets = [0, 6], sizes = [3, 564], strides = [1, 1]} : vector<3x796xbf16> to vector<3x564xbf16>
    %9 = vector.extract_strided_slice %1 {offsets = [0, 7], sizes = [3, 564], strides = [1, 1]} : vector<3x796xbf16> to vector<3x564xbf16>
    %10 = vector.extract_strided_slice %1 {offsets = [0, 8], sizes = [3, 564], strides = [1, 1]} : vector<3x796xbf16> to vector<3x564xbf16>
    %11 = vector.extract_strided_slice %1 {offsets = [0, 28], sizes = [3, 564], strides = [1, 1]} : vector<3x796xbf16> to vector<3x564xbf16>
    %12 = vector.extract_strided_slice %1 {offsets = [0, 29], sizes = [3, 564], strides = [1, 1]} : vector<3x796xbf16> to vector<3x564xbf16>
    %13 = vector.extract_strided_slice %1 {offsets = [0, 30], sizes = [3, 564], strides = [1, 1]} : vector<3x796xbf16> to vector<3x564xbf16>
    %14 = vector.extract_strided_slice %1 {offsets = [0, 31], sizes = [3, 564], strides = [1, 1]} : vector<3x796xbf16> to vector<3x564xbf16>
    %15 = vector.extract_strided_slice %1 {offsets = [0, 32], sizes = [3, 564], strides = [1, 1]} : vector<3x796xbf16> to vector<3x564xbf16>
    %16 = vector.extract_strided_slice %1 {offsets = [0, 33], sizes = [3, 564], strides = [1, 1]} : vector<3x796xbf16> to vector<3x564xbf16>
    %17 = vector.extract_strided_slice %1 {offsets = [0, 34], sizes = [3, 564], strides = [1, 1]} : vector<3x796xbf16> to vector<3x564xbf16>
    %18 = vector.extract_strided_slice %1 {offsets = [0, 35], sizes = [3, 564], strides = [1, 1]} : vector<3x796xbf16> to vector<3x564xbf16>
    %19 = vector.extract_strided_slice %1 {offsets = [0, 36], sizes = [3, 564], strides = [1, 1]} : vector<3x796xbf16> to vector<3x564xbf16>
    %20 = vector.extract_strided_slice %1 {offsets = [0, 56], sizes = [3, 564], strides = [1, 1]} : vector<3x796xbf16> to vector<3x564xbf16>
    %21 = vector.extract_strided_slice %1 {offsets = [0, 57], sizes = [3, 564], strides = [1, 1]} : vector<3x796xbf16> to vector<3x564xbf16>
    %22 = vector.extract_strided_slice %1 {offsets = [0, 58], sizes = [3, 564], strides = [1, 1]} : vector<3x796xbf16> to vector<3x564xbf16>
    %23 = vector.extract_strided_slice %1 {offsets = [0, 59], sizes = [3, 564], strides = [1, 1]} : vector<3x796xbf16> to vector<3x564xbf16>
    %24 = vector.extract_strided_slice %1 {offsets = [0, 60], sizes = [3, 564], strides = [1, 1]} : vector<3x796xbf16> to vector<3x564xbf16>
    %25 = vector.extract_strided_slice %1 {offsets = [0, 61], sizes = [3, 564], strides = [1, 1]} : vector<3x796xbf16> to vector<3x564xbf16>
    %26 = vector.extract_strided_slice %1 {offsets = [0, 62], sizes = [3, 564], strides = [1, 1]} : vector<3x796xbf16> to vector<3x564xbf16>
    %27 = vector.extract_strided_slice %1 {offsets = [0, 63], sizes = [3, 564], strides = [1, 1]} : vector<3x796xbf16> to vector<3x564xbf16>
    %28 = vector.extract_strided_slice %1 {offsets = [0, 64], sizes = [3, 564], strides = [1, 1]} : vector<3x796xbf16> to vector<3x564xbf16>
    %29 = vector.extract_strided_slice %1 {offsets = [0, 84], sizes = [3, 564], strides = [1, 1]} : vector<3x796xbf16> to vector<3x564xbf16>
    %30 = vector.extract_strided_slice %1 {offsets = [0, 85], sizes = [3, 564], strides = [1, 1]} : vector<3x796xbf16> to vector<3x564xbf16>
    %31 = vector.extract_strided_slice %1 {offsets = [0, 86], sizes = [3, 564], strides = [1, 1]} : vector<3x796xbf16> to vector<3x564xbf16>
    %32 = vector.extract_strided_slice %1 {offsets = [0, 87], sizes = [3, 564], strides = [1, 1]} : vector<3x796xbf16> to vector<3x564xbf16>
    %33 = vector.extract_strided_slice %1 {offsets = [0, 88], sizes = [3, 564], strides = [1, 1]} : vector<3x796xbf16> to vector<3x564xbf16>
    %34 = vector.extract_strided_slice %1 {offsets = [0, 89], sizes = [3, 564], strides = [1, 1]} : vector<3x796xbf16> to vector<3x564xbf16>
    %35 = vector.extract_strided_slice %1 {offsets = [0, 90], sizes = [3, 564], strides = [1, 1]} : vector<3x796xbf16> to vector<3x564xbf16>
    %36 = vector.extract_strided_slice %1 {offsets = [0, 91], sizes = [3, 564], strides = [1, 1]} : vector<3x796xbf16> to vector<3x564xbf16>
    %37 = vector.extract_strided_slice %1 {offsets = [0, 92], sizes = [3, 564], strides = [1, 1]} : vector<3x796xbf16> to vector<3x564xbf16>
    %38 = vector.extract_strided_slice %1 {offsets = [0, 112], sizes = [3, 564], strides = [1, 1]} : vector<3x796xbf16> to vector<3x564xbf16>
    %39 = vector.extract_strided_slice %1 {offsets = [0, 113], sizes = [3, 564], strides = [1, 1]} : vector<3x796xbf16> to vector<3x564xbf16>
    %40 = vector.extract_strided_slice %1 {offsets = [0, 114], sizes = [3, 564], strides = [1, 1]} : vector<3x796xbf16> to vector<3x564xbf16>
    %41 = vector.extract_strided_slice %1 {offsets = [0, 115], sizes = [3, 564], strides = [1, 1]} : vector<3x796xbf16> to vector<3x564xbf16>
    %42 = vector.extract_strided_slice %1 {offsets = [0, 116], sizes = [3, 564], strides = [1, 1]} : vector<3x796xbf16> to vector<3x564xbf16>
    %43 = vector.extract_strided_slice %1 {offsets = [0, 117], sizes = [3, 564], strides = [1, 1]} : vector<3x796xbf16> to vector<3x564xbf16>
    %44 = vector.extract_strided_slice %1 {offsets = [0, 118], sizes = [3, 564], strides = [1, 1]} : vector<3x796xbf16> to vector<3x564xbf16>
    %45 = vector.extract_strided_slice %1 {offsets = [0, 119], sizes = [3, 564], strides = [1, 1]} : vector<3x796xbf16> to vector<3x564xbf16>
    %46 = vector.extract_strided_slice %1 {offsets = [0, 120], sizes = [3, 564], strides = [1, 1]} : vector<3x796xbf16> to vector<3x564xbf16>
    %47 = vector.extract_strided_slice %1 {offsets = [0, 140], sizes = [3, 564], strides = [1, 1]} : vector<3x796xbf16> to vector<3x564xbf16>
    %48 = vector.extract_strided_slice %1 {offsets = [0, 141], sizes = [3, 564], strides = [1, 1]} : vector<3x796xbf16> to vector<3x564xbf16>
    %49 = vector.extract_strided_slice %1 {offsets = [0, 142], sizes = [3, 564], strides = [1, 1]} : vector<3x796xbf16> to vector<3x564xbf16>
    %50 = vector.extract_strided_slice %1 {offsets = [0, 143], sizes = [3, 564], strides = [1, 1]} : vector<3x796xbf16> to vector<3x564xbf16>
    %51 = vector.extract_strided_slice %1 {offsets = [0, 144], sizes = [3, 564], strides = [1, 1]} : vector<3x796xbf16> to vector<3x564xbf16>
    %52 = vector.extract_strided_slice %1 {offsets = [0, 145], sizes = [3, 564], strides = [1, 1]} : vector<3x796xbf16> to vector<3x564xbf16>
    %53 = vector.extract_strided_slice %1 {offsets = [0, 146], sizes = [3, 564], strides = [1, 1]} : vector<3x796xbf16> to vector<3x564xbf16>
    %54 = vector.extract_strided_slice %1 {offsets = [0, 147], sizes = [3, 564], strides = [1, 1]} : vector<3x796xbf16> to vector<3x564xbf16>
    %55 = vector.extract_strided_slice %1 {offsets = [0, 148], sizes = [3, 564], strides = [1, 1]} : vector<3x796xbf16> to vector<3x564xbf16>
    %56 = vector.extract_strided_slice %1 {offsets = [0, 168], sizes = [3, 564], strides = [1, 1]} : vector<3x796xbf16> to vector<3x564xbf16>
    %57 = vector.extract_strided_slice %1 {offsets = [0, 169], sizes = [3, 564], strides = [1, 1]} : vector<3x796xbf16> to vector<3x564xbf16>
    %58 = vector.extract_strided_slice %1 {offsets = [0, 170], sizes = [3, 564], strides = [1, 1]} : vector<3x796xbf16> to vector<3x564xbf16>
    %59 = vector.extract_strided_slice %1 {offsets = [0, 171], sizes = [3, 564], strides = [1, 1]} : vector<3x796xbf16> to vector<3x564xbf16>
    %60 = vector.extract_strided_slice %1 {offsets = [0, 172], sizes = [3, 564], strides = [1, 1]} : vector<3x796xbf16> to vector<3x564xbf16>
    %61 = vector.extract_strided_slice %1 {offsets = [0, 173], sizes = [3, 564], strides = [1, 1]} : vector<3x796xbf16> to vector<3x564xbf16>
    %62 = vector.extract_strided_slice %1 {offsets = [0, 174], sizes = [3, 564], strides = [1, 1]} : vector<3x796xbf16> to vector<3x564xbf16>
    %63 = vector.extract_strided_slice %1 {offsets = [0, 175], sizes = [3, 564], strides = [1, 1]} : vector<3x796xbf16> to vector<3x564xbf16>
    %64 = vector.extract_strided_slice %1 {offsets = [0, 176], sizes = [3, 564], strides = [1, 1]} : vector<3x796xbf16> to vector<3x564xbf16>
    %65 = vector.extract_strided_slice %1 {offsets = [0, 196], sizes = [3, 564], strides = [1, 1]} : vector<3x796xbf16> to vector<3x564xbf16>
    %66 = vector.extract_strided_slice %1 {offsets = [0, 197], sizes = [3, 564], strides = [1, 1]} : vector<3x796xbf16> to vector<3x564xbf16>
    %67 = vector.extract_strided_slice %1 {offsets = [0, 198], sizes = [3, 564], strides = [1, 1]} : vector<3x796xbf16> to vector<3x564xbf16>
    %68 = vector.extract_strided_slice %1 {offsets = [0, 199], sizes = [3, 564], strides = [1, 1]} : vector<3x796xbf16> to vector<3x564xbf16>
    %69 = vector.extract_strided_slice %1 {offsets = [0, 200], sizes = [3, 564], strides = [1, 1]} : vector<3x796xbf16> to vector<3x564xbf16>
    %70 = vector.extract_strided_slice %1 {offsets = [0, 201], sizes = [3, 564], strides = [1, 1]} : vector<3x796xbf16> to vector<3x564xbf16>
    %71 = vector.extract_strided_slice %1 {offsets = [0, 202], sizes = [3, 564], strides = [1, 1]} : vector<3x796xbf16> to vector<3x564xbf16>
    %72 = vector.extract_strided_slice %1 {offsets = [0, 203], sizes = [3, 564], strides = [1, 1]} : vector<3x796xbf16> to vector<3x564xbf16>
    %73 = vector.extract_strided_slice %1 {offsets = [0, 204], sizes = [3, 564], strides = [1, 1]} : vector<3x796xbf16> to vector<3x564xbf16>
    %74 = vector.extract_strided_slice %1 {offsets = [0, 224], sizes = [3, 564], strides = [1, 1]} : vector<3x796xbf16> to vector<3x564xbf16>
    %75 = vector.extract_strided_slice %1 {offsets = [0, 225], sizes = [3, 564], strides = [1, 1]} : vector<3x796xbf16> to vector<3x564xbf16>
    %76 = vector.extract_strided_slice %1 {offsets = [0, 226], sizes = [3, 564], strides = [1, 1]} : vector<3x796xbf16> to vector<3x564xbf16>
    %77 = vector.extract_strided_slice %1 {offsets = [0, 227], sizes = [3, 564], strides = [1, 1]} : vector<3x796xbf16> to vector<3x564xbf16>
    %78 = vector.extract_strided_slice %1 {offsets = [0, 228], sizes = [3, 564], strides = [1, 1]} : vector<3x796xbf16> to vector<3x564xbf16>
    %79 = vector.extract_strided_slice %1 {offsets = [0, 229], sizes = [3, 564], strides = [1, 1]} : vector<3x796xbf16> to vector<3x564xbf16>
    %80 = vector.extract_strided_slice %1 {offsets = [0, 230], sizes = [3, 564], strides = [1, 1]} : vector<3x796xbf16> to vector<3x564xbf16>
    %81 = vector.extract_strided_slice %1 {offsets = [0, 231], sizes = [3, 564], strides = [1, 1]} : vector<3x796xbf16> to vector<3x564xbf16>
    %82 = vector.extract_strided_slice %1 {offsets = [0, 232], sizes = [3, 564], strides = [1, 1]} : vector<3x796xbf16> to vector<3x564xbf16>
    %83 = tpu.concatenate %2, %3, %4, %5, %6, %7, %8, %9, %10, %11, %12, %13, %14, %15, %16, %17 in 0 : vector<3x564xbf16>, vector<3x564xbf16>, vector<3x564xbf16>, vector<3x564xbf16>, vector<3x564xbf16>, vector<3x564xbf16>, vector<3x564xbf16>, vector<3x564xbf16>, vector<3x564xbf16>, vector<3x564xbf16>, vector<3x564xbf16>, vector<3x564xbf16>, vector<3x564xbf16>, vector<3x564xbf16>, vector<3x564xbf16>, vector<3x564xbf16> -> vector<48x564xbf16>
    %84 = tpu.concatenate %18, %19, %20, %21, %22, %23, %24, %25, %26, %27, %28, %29, %30, %31, %32, %33 in 0 : vector<3x564xbf16>, vector<3x564xbf16>, vector<3x564xbf16>, vector<3x564xbf16>, vector<3x564xbf16>, vector<3x564xbf16>, vector<3x564xbf16>, vector<3x564xbf16>, vector<3x564xbf16>, vector<3x564xbf16>, vector<3x564xbf16>, vector<3x564xbf16>, vector<3x564xbf16>, vector<3x564xbf16>, vector<3x564xbf16>, vector<3x564xbf16> -> vector<48x564xbf16>
    %85 = tpu.concatenate %34, %35, %36, %37, %38, %39, %40, %41, %42, %43, %44, %45, %46, %47, %48, %49 in 0 : vector<3x564xbf16>, vector<3x564xbf16>, vector<3x564xbf16>, vector<3x564xbf16>, vector<3x564xbf16>, vector<3x564xbf16>, vector<3x564xbf16>, vector<3x564xbf16>, vector<3x564xbf16>, vector<3x564xbf16>, vector<3x564xbf16>, vector<3x564xbf16>, vector<3x564xbf16>, vector<3x564xbf16>, vector<3x564xbf16>, vector<3x564xbf16> -> vector<48x564xbf16>
    %86 = tpu.concatenate %50, %51, %52, %53, %54, %55, %56, %57, %58, %59, %60, %61, %62, %63, %64, %65 in 0 : vector<3x564xbf16>, vector<3x564xbf16>, vector<3x564xbf16>, vector<3x564xbf16>, vector<3x564xbf16>, vector<3x564xbf16>, vector<3x564xbf16>, vector<3x564xbf16>, vector<3x564xbf16>, vector<3x564xbf16>, vector<3x564xbf16>, vector<3x564xbf16>, vector<3x564xbf16>, vector<3x564xbf16>, vector<3x564xbf16>, vector<3x564xbf16> -> vector<48x564xbf16>
    %87 = tpu.concatenate %66, %67, %68, %69, %70, %71, %72, %73, %74, %75, %76, %77, %78, %79, %80, %81 in 0 : vector<3x564xbf16>, vector<3x564xbf16>, vector<3x564xbf16>, vector<3x564xbf16>, vector<3x564xbf16>, vector<3x564xbf16>, vector<3x564xbf16>, vector<3x564xbf16>, vector<3x564xbf16>, vector<3x564xbf16>, vector<3x564xbf16>, vector<3x564xbf16>, vector<3x564xbf16>, vector<3x564xbf16>, vector<3x564xbf16>, vector<3x564xbf16> -> vector<48x564xbf16>
    %88 = tpu.concatenate %83, %84, %85, %86, %87, %82 in 0 : vector<48x564xbf16>, vector<48x564xbf16>, vector<48x564xbf16>, vector<48x564xbf16>, vector<48x564xbf16>, vector<3x564xbf16> -> vector<243x564xbf16>
    %c0_3 = arith.constant 0 : index
    %c0_4 = arith.constant 0 : index
    %89 = vector.load %arg4[%c0_3, %c0_4] : memref<64x243xbf16, #tpu.memory_space<vmem>>, vector<64x243xbf16>
    %cst = arith.constant dense<0.000000e+00> : vector<64x564xf32>
    %90 = tpu.matmul %89, %88, %cst {dimension_numbers = #tpu.dot_dimension_numbers<[1], [0], [0], [1], [0, 0, 1, 1], [], []>} : vector<64x243xbf16>, vector<243x564xbf16>, vector<64x564xf32> -> vector<64x564xf32>
    %c0_5 = arith.constant 0 : index
    %c0_6 = arith.constant 0 : index
    %91 = vector.load %arg5[%c0_5, %c0_6] : memref<64x1xf32, #tpu.memory_space<vmem>>, vector<64x1xf32>
    %92 = vector.broadcast %91 : vector<64x1xf32> to vector<64x564xf32>
    %93 = arith.addf %90, %92 : vector<64x564xf32>
    %cst_7 = arith.constant 0.000000e+00 : f32
    %94 = vector.broadcast %cst_7 : f32 to vector<64x564xf32>
    %95 = arith.maximumf %93, %94 : vector<64x564xf32>
    %96 = arith.truncf %95 : vector<64x564xf32> to vector<64x564xbf16>
    %c0_8 = arith.constant 0 : index
    %c0_9 = arith.constant 0 : index
    %97 = vector.load %arg6[%c0_8, %c0_9] : memref<32x64xbf16, #tpu.memory_space<vmem>>, vector<32x64xbf16>
    %cst_10 = arith.constant dense<0.000000e+00> : vector<32x564xf32>
    %98 = tpu.matmul %97, %96, %cst_10 {dimension_numbers = #tpu.dot_dimension_numbers<[1], [0], [0], [1], [0, 0, 1, 1], [], []>} : vector<32x64xbf16>, vector<64x564xbf16>, vector<32x564xf32> -> vector<32x564xf32>
    %c0_11 = arith.constant 0 : index
    %c0_12 = arith.constant 0 : index
    %99 = vector.load %arg7[%c0_11, %c0_12] : memref<32x1xf32, #tpu.memory_space<vmem>>, vector<32x1xf32>
    %100 = vector.broadcast %99 : vector<32x1xf32> to vector<32x564xf32>
    %101 = arith.addf %98, %100 : vector<32x564xf32>
    %cst_13 = arith.constant 0.000000e+00 : f32
    %102 = vector.broadcast %cst_13 : f32 to vector<32x564xf32>
    %103 = arith.maximumf %101, %102 : vector<32x564xf32>
    %c0_14 = arith.constant 0 : index
    %c0_15 = arith.constant 0 : index
    %c0_16 = arith.constant 0 : index
    %104 = vector.load %arg3[%c0_14, %c0_15, %c0_16] : memref<1x1x564xf32, #tpu.memory_space<vmem>>, vector<1x1x564xf32>
    %105 = vector.shape_cast %104 : vector<1x1x564xf32> to vector<1x564xf32>
    %106 = vector.broadcast %105 : vector<1x564xf32> to vector<32x564xf32>
    %107 = arith.mulf %103, %106 : vector<32x564xf32>
    %108 = arith.truncf %107 : vector<32x564xf32> to vector<32x564xbf16>
    %109 = vector.extract_strided_slice %108 {offsets = [0, 0], sizes = [32, 448], strides = [1, 1]} : vector<32x564xbf16> to vector<32x448xbf16>
    %110 = vector.extract_strided_slice %108 {offsets = [0, 1], sizes = [32, 448], strides = [1, 1]} : vector<32x564xbf16> to vector<32x448xbf16>
    %111 = vector.extract_strided_slice %108 {offsets = [0, 2], sizes = [32, 448], strides = [1, 1]} : vector<32x564xbf16> to vector<32x448xbf16>
    %112 = vector.extract_strided_slice %108 {offsets = [0, 3], sizes = [32, 448], strides = [1, 1]} : vector<32x564xbf16> to vector<32x448xbf16>
    %113 = vector.extract_strided_slice %108 {offsets = [0, 4], sizes = [32, 448], strides = [1, 1]} : vector<32x564xbf16> to vector<32x448xbf16>
    %114 = vector.extract_strided_slice %108 {offsets = [0, 28], sizes = [32, 448], strides = [1, 1]} : vector<32x564xbf16> to vector<32x448xbf16>
    %115 = vector.extract_strided_slice %108 {offsets = [0, 29], sizes = [32, 448], strides = [1, 1]} : vector<32x564xbf16> to vector<32x448xbf16>
    %116 = vector.extract_strided_slice %108 {offsets = [0, 30], sizes = [32, 448], strides = [1, 1]} : vector<32x564xbf16> to vector<32x448xbf16>
    %117 = vector.extract_strided_slice %108 {offsets = [0, 31], sizes = [32, 448], strides = [1, 1]} : vector<32x564xbf16> to vector<32x448xbf16>
    %118 = vector.extract_strided_slice %108 {offsets = [0, 32], sizes = [32, 448], strides = [1, 1]} : vector<32x564xbf16> to vector<32x448xbf16>
    %119 = vector.extract_strided_slice %108 {offsets = [0, 56], sizes = [32, 448], strides = [1, 1]} : vector<32x564xbf16> to vector<32x448xbf16>
    %120 = vector.extract_strided_slice %108 {offsets = [0, 57], sizes = [32, 448], strides = [1, 1]} : vector<32x564xbf16> to vector<32x448xbf16>
    %121 = vector.extract_strided_slice %108 {offsets = [0, 58], sizes = [32, 448], strides = [1, 1]} : vector<32x564xbf16> to vector<32x448xbf16>
    %122 = vector.extract_strided_slice %108 {offsets = [0, 59], sizes = [32, 448], strides = [1, 1]} : vector<32x564xbf16> to vector<32x448xbf16>
    %123 = vector.extract_strided_slice %108 {offsets = [0, 60], sizes = [32, 448], strides = [1, 1]} : vector<32x564xbf16> to vector<32x448xbf16>
    %124 = vector.extract_strided_slice %108 {offsets = [0, 84], sizes = [32, 448], strides = [1, 1]} : vector<32x564xbf16> to vector<32x448xbf16>
    %125 = vector.extract_strided_slice %108 {offsets = [0, 85], sizes = [32, 448], strides = [1, 1]} : vector<32x564xbf16> to vector<32x448xbf16>
    %126 = vector.extract_strided_slice %108 {offsets = [0, 86], sizes = [32, 448], strides = [1, 1]} : vector<32x564xbf16> to vector<32x448xbf16>
    %127 = vector.extract_strided_slice %108 {offsets = [0, 87], sizes = [32, 448], strides = [1, 1]} : vector<32x564xbf16> to vector<32x448xbf16>
    %128 = vector.extract_strided_slice %108 {offsets = [0, 88], sizes = [32, 448], strides = [1, 1]} : vector<32x564xbf16> to vector<32x448xbf16>
    %129 = vector.extract_strided_slice %108 {offsets = [0, 112], sizes = [32, 448], strides = [1, 1]} : vector<32x564xbf16> to vector<32x448xbf16>
    %130 = vector.extract_strided_slice %108 {offsets = [0, 113], sizes = [32, 448], strides = [1, 1]} : vector<32x564xbf16> to vector<32x448xbf16>
    %131 = vector.extract_strided_slice %108 {offsets = [0, 114], sizes = [32, 448], strides = [1, 1]} : vector<32x564xbf16> to vector<32x448xbf16>
    %132 = vector.extract_strided_slice %108 {offsets = [0, 115], sizes = [32, 448], strides = [1, 1]} : vector<32x564xbf16> to vector<32x448xbf16>
    %133 = vector.extract_strided_slice %108 {offsets = [0, 116], sizes = [32, 448], strides = [1, 1]} : vector<32x564xbf16> to vector<32x448xbf16>
    %134 = tpu.concatenate %109, %110, %111, %112, %113, %114, %115, %116, %117, %118, %119, %120, %121, %122, %123, %124 in 0 : vector<32x448xbf16>, vector<32x448xbf16>, vector<32x448xbf16>, vector<32x448xbf16>, vector<32x448xbf16>, vector<32x448xbf16>, vector<32x448xbf16>, vector<32x448xbf16>, vector<32x448xbf16>, vector<32x448xbf16>, vector<32x448xbf16>, vector<32x448xbf16>, vector<32x448xbf16>, vector<32x448xbf16>, vector<32x448xbf16>, vector<32x448xbf16> -> vector<512x448xbf16>
    %135 = tpu.concatenate %125, %126, %127, %128, %129, %130, %131, %132, %133 in 0 : vector<32x448xbf16>, vector<32x448xbf16>, vector<32x448xbf16>, vector<32x448xbf16>, vector<32x448xbf16>, vector<32x448xbf16>, vector<32x448xbf16>, vector<32x448xbf16>, vector<32x448xbf16> -> vector<288x448xbf16>
    %136 = tpu.concatenate %134, %135 in 0 : vector<512x448xbf16>, vector<288x448xbf16> -> vector<800x448xbf16>
    %c0_17 = arith.constant 0 : index
    %c0_18 = arith.constant 0 : index
    %137 = vector.load %arg8[%c0_17, %c0_18] : memref<3x800xbf16, #tpu.memory_space<vmem>>, vector<3x800xbf16>
    %cst_19 = arith.constant dense<0.000000e+00> : vector<3x448xf32>
    %138 = tpu.matmul %137, %136, %cst_19 {dimension_numbers = #tpu.dot_dimension_numbers<[1], [0], [0], [1], [0, 0, 1, 1], [], []>} : vector<3x800xbf16>, vector<800x448xbf16>, vector<3x448xf32> -> vector<3x448xf32>
    %c0_20 = arith.constant 0 : index
    %c0_21 = arith.constant 0 : index
    %139 = vector.load %arg9[%c0_20, %c0_21] : memref<3x1xf32, #tpu.memory_space<vmem>>, vector<3x1xf32>
    %140 = vector.broadcast %139 : vector<3x1xf32> to vector<3x448xf32>
    %141 = arith.addf %138, %140 : vector<3x448xf32>
    %c0_22 = arith.constant 0 : index
    %c0_23 = arith.constant 0 : index
    %c0_24 = arith.constant 0 : index
    %c0_25 = arith.constant 0 : index
    %142 = vector.load %arg10[%c0_22, %c0_23, %c0_24, %c0_25] : memref<1x1x3x448xf32, #tpu.memory_space<vmem>>, vector<1x1x3x448xf32>
    %143 = vector.shape_cast %142 : vector<1x1x3x448xf32> to vector<3x448xf32>
    %144 = vector.shape_cast %141 : vector<3x448xf32> to vector<1x1x3x448xf32>
    tpu.vector_store %arg10[%c0_22, %c0_23, %c0_24, %c0_25], %144 {strides = array<i32>} : memref<1x1x3x448xf32, #tpu.memory_space<vmem>>, vector<1x1x3x448xf32>,
    return
  }
  func.func @transform_0(%arg0: i32, %arg1: i32) -> (i32, i32, i32, i32) {
    %c0_i32 = arith.constant 0 : i32
    %c0_i32_0 = arith.constant 0 : i32
    %c0_i32_1 = arith.constant 0 : i32
    return %arg0, %arg1, %c0_i32, %c0_i32_0 : i32, i32, i32, i32
  }
  func.func @transform_1(%arg0: i32, %arg1: i32) -> (i32, i32, i32) {
    %c0_i32 = arith.constant 0 : i32
    %c0_i32_0 = arith.constant 0 : i32
    %c0_i32_1 = arith.constant 0 : i32
    return %arg1, %c0_i32, %c0_i32_0 : i32, i32, i32
  }
  func.func @transform_2(%arg0: i32, %arg1: i32) -> (i32, i32) {
    %c0_i32 = arith.constant 0 : i32
    %c0_i32_0 = arith.constant 0 : i32
    %c0_i32_1 = arith.constant 0 : i32
    return %c0_i32, %c0_i32_0 : i32, i32
  }
  func.func @transform_3(%arg0: i32, %arg1: i32) -> (i32, i32) {
    %c0_i32 = arith.constant 0 : i32
    %c0_i32_0 = arith.constant 0 : i32
    %c0_i32_1 = arith.constant 0 : i32
    return %c0_i32, %c0_i32_0 : i32, i32
  }
  func.func @transform_4(%arg0: i32, %arg1: i32) -> (i32, i32) {
    %c0_i32 = arith.constant 0 : i32
    %c0_i32_0 = arith.constant 0 : i32
    %c0_i32_1 = arith.constant 0 : i32
    return %c0_i32, %c0_i32_0 : i32, i32
  }
  func.func @transform_5(%arg0: i32, %arg1: i32) -> (i32, i32) {
    %c0_i32 = arith.constant 0 : i32
    %c0_i32_0 = arith.constant 0 : i32
    %c0_i32_1 = arith.constant 0 : i32
    return %c0_i32, %c0_i32_0 : i32, i32
  }
  func.func @transform_6(%arg0: i32, %arg1: i32) -> (i32, i32) {
    %c0_i32 = arith.constant 0 : i32
    %c0_i32_0 = arith.constant 0 : i32
    %c0_i32_1 = arith.constant 0 : i32
    return %c0_i32, %c0_i32_0 : i32, i32
  }
  func.func @transform_7(%arg0: i32, %arg1: i32) -> (i32, i32) {
    %c0_i32 = arith.constant 0 : i32
    %c0_i32_0 = arith.constant 0 : i32
    %c0_i32_1 = arith.constant 0 : i32
    return %c0_i32, %c0_i32_0 : i32, i32
  }
  func.func @transform_8(%arg0: i32, %arg1: i32) -> (i32, i32, i32, i32) {
    %c0_i32 = arith.constant 0 : i32
    %c0_i32_0 = arith.constant 0 : i32
    %c0_i32_1 = arith.constant 0 : i32
    return %arg0, %arg1, %c0_i32, %c0_i32_0 : i32, i32, i32, i32
  }
}

</mosaic_0001>

<llo_original>
// kernel: network_forward.1
$region0: #{network_forward.1}
  #allocation0 [shape = 'u32[]', space=smem, size = 0x4, offset = 0x4, fixed_abs, tag = 'smem constant byte address 0x4 - core index']
  #allocation1 [shape = 'u32[144,128]{1,0:T(1,128)}', space=vmem, size = 0x12000, scoped, tag = 'internal scratch']
  %s0 = inlined_call_operand.vmem [shape: bf16[2,1,3,796], index: 0, kind: input, shape index: {}]
  %s1 = inlined_call_operand.vmem [shape: f32[1,1,564], index: 1, kind: input, shape index: {}]
  %s2 = inlined_call_operand.vmem [shape: bf16[64,243], index: 2, kind: input, shape index: {}]
  %s3 = inlined_call_operand.vmem [shape: f32[64,1], index: 3, kind: input, shape index: {}]
  %s4 = inlined_call_operand.vmem [shape: bf16[32,64], index: 4, kind: input, shape index: {}]
  %s5 = inlined_call_operand.vmem [shape: f32[32,1], index: 5, kind: input, shape index: {}]
  %s6 = inlined_call_operand.vmem [shape: bf16[3,800], index: 6, kind: input, shape index: {}]
  %s7 = inlined_call_operand.vmem [shape: f32[3,1], index: 7, kind: input, shape index: {}]
  %s8 = inlined_call_operand.vmem [shape: f32[2,1,3,448], index: 8, kind: output, shape index: {}]
  %s9 = sld [smem:[#allocation0]]
  $region65: #{network_forward.1} parent=0
    _
  %s11 = ssub.s32 1, %s9
  %s12 = scalar_select 0, %s11, %s9
  loop: start=0, step=1, limit=4
  $region2: #{network_forward.1} parent=0 // loop_pre_header
    _
  $region3: #{network_forward.1} parent=0 // loop_header
    %s14 = sphi 0, %s18
    %p15 = scmp.ge.s32.totalorder %s14, 4
    %s21 = sphi 0, %s33
    %s22 = sphi 0, %s29
    %s23 = sphi 0, %s21
    %s24 = sphi 0, %s22
    %s25 = sphi 0, %s23
    %s26 = sphi 0, %s24
    %s38 = sphi 0, %s40
    %s41 = sphi 0, %s38
    %s42 = sphi 0, %s41
    %s58 = sphi 0, %s42
    %s64 = sphi 0, %s66
    %s67 = sphi 0, %s64
    %s68 = sphi 0, %s67
    %s84 = sphi 0, %s68
    %s88 = sphi 0, %s88
    %s90 = sphi 0, %s88
    %s91 = sphi 0, %s90
    %s105 = sphi 0, %s91
    %s109 = sphi 0, %s109
    %s111 = sphi 0, %s109
    %s112 = sphi 0, %s111
    %s126 = sphi 0, %s112
    %s130 = sphi 0, %s130
    %s132 = sphi 0, %s130
    %s133 = sphi 0, %s132
    %s147 = sphi 0, %s133
    %s151 = sphi 0, %s151
    %s153 = sphi 0, %s151
    %s154 = sphi 0, %s153
    %s168 = sphi 0, %s154
    %s172 = sphi 0, %s172
    %s174 = sphi 0, %s172
    %s175 = sphi 0, %s174
    %s189 = sphi 0, %s175
    %s193 = sphi 0, %s193
    %s195 = sphi 0, %s193
    %s196 = sphi 0, %s195
    %s210 = sphi 0, %s196
    %s218 = sphi 0, %s220
    %s221 = sphi 0, %s218
    %s222 = sphi 0, %s221
    %s238 = sphi 0, %s222
  $region4: #{network_forward.1} parent=0 // loop_header_branch
    %17 = sbr.rel (%p15) target = $region8
  $region5: #{network_forward.1} parent=0 // loop_body
    %s19 = ssub.s32 %s14, 1
    %s20 = ssub.s32 %s14, 2
    %s27 = sadd.s32 1, %s22
    %p28 = scmp.ge.s32.totalorder %s27, 1
    %s29 = scalar_select %p28, 0, %s27
    %s30 = sadd.s32 1, %s21
    %s31 = scalar_select %p28, %s30, %s21
    %p32 = scmp.ge.s32.totalorder %s31, 2
    %s33 = scalar_select %p32, 0, %s31
    %s34 = ssub.s32 %s21, %s33
    %s35 = ssub.s32 %s22, %s29
    %s36 = sor.u32 %s34, %s35
    %p37 = scmp.eq.s32.totalorder %s36, 0
    %s39 = sadd.s32 %s38, 1
    %s40 = scalar_select %p37, %s38, %s39
    %p43 = pneg %p37
    %p44 = scmp.eq.s32.totalorder %s14, 1
    %p45 = por %p43, %p44
    %p46 = scmp.ne.s32.totalorder %s38, %s41
    %p47 = scmp.eq.s32.totalorder %s14, 0
    %p48 = por %p46, %p47
    %p49 = scmp.ne.s32.totalorder %s38, %s41
    %p50 = scmp.eq.s32.totalorder %s19, 1
    %p51 = por %p49, %p50
    %p52 = scmp.ne.s32.totalorder %s41, %s42
    %p53 = scmp.eq.s32.totalorder %s19, 0
    %p54 = por %p52, %p53
    %p55 = scmp.ne.s32.totalorder %s41, %s42
    %p56 = scmp.eq.s32.totalorder %s20, 1
    %p57 = por %p55, %p56
    %p59 = scmp.ne.s32.totalorder %s42, %s58
    %p60 = scmp.eq.s32.totalorder %s20, 0
    %p61 = por %p59, %p60
    %s62 = ssub.s32 %s22, %s29
    %p63 = scmp.eq.s32.totalorder %s62, 0
    %s65 = sadd.s32 %s64, 1
    %s66 = scalar_select %p63, %s64, %s65
    %p69 = pneg %p63
    %p70 = scmp.eq.s32.totalorder %s14, 1
    %p71 = por %p69, %p70
    %p72 = scmp.ne.s32.totalorder %s64, %s67
    %p73 = scmp.eq.s32.totalorder %s14, 0
    %p74 = por %p72, %p73
    %p75 = scmp.ne.s32.totalorder %s64, %s67
    %p76 = scmp.eq.s32.totalorder %s19, 1
    %p77 = por %p75, %p76
    %p78 = scmp.ne.s32.totalorder %s67, %s68
    %p79 = scmp.eq.s32.totalorder %s19, 0
    %p80 = por %p78, %p79
    %p81 = scmp.ne.s32.totalorder %s67, %s68
    %p82 = scmp.eq.s32.totalorder %s20, 1
    %p83 = por %p81, %p82
    %p85 = scmp.ne.s32.totalorder %s68, %s84
    %p86 = scmp.eq.s32.totalorder %s20, 0
    %p87 = por %p85, %p86
    %s89 = sadd.s32 %s88, 1
    %p92 = scmp.eq.s32.totalorder %s14, 1
    %p93 = scmp.ne.s32.totalorder %s88, %s90
    %p94 = scmp.eq.s32.totalorder %s14, 0
    %p95 = por %p93, %p94
    %p96 = scmp.ne.s32.totalorder %s88, %s90
    %p97 = scmp.eq.s32.totalorder %s19, 1
    %p98 = por %p96, %p97
    %p99 = scmp.ne.s32.totalorder %s90, %s91
    %p100 = scmp.eq.s32.totalorder %s19, 0
    %p101 = por %p99, %p100
    %p102 = scmp.ne.s32.totalorder %s90, %s91
    %p103 = scmp.eq.s32.totalorder %s20, 1
    %p104 = por %p102, %p103
    %p106 = scmp.ne.s32.totalorder %s91, %s105
    %p107 = scmp.eq.s32.totalorder %s20, 0
    %p108 = por %p106, %p107
    %s110 = sadd.s32 %s109, 1
    %p113 = scmp.eq.s32.totalorder %s14, 1
    %p114 = scmp.ne.s32.totalorder %s109, %s111
    %p115 = scmp.eq.s32.totalorder %s14, 0
    %p116 = por %p114, %p115
    %p117 = scmp.ne.s32.totalorder %s109, %s111
    %p118 = scmp.eq.s32.totalorder %s19, 1
    %p119 = por %p117, %p118
    %p120 = scmp.ne.s32.totalorder %s111, %s112
    %p121 = scmp.eq.s32.totalorder %s19, 0
    %p122 = por %p120, %p121
    %p123 = scmp.ne.s32.totalorder %s111, %s112
    %p124 = scmp.eq.s32.totalorder %s20, 1
    %p125 = por %p123, %p124
    %p127 = scmp.ne.s32.totalorder %s112, %s126
    %p128 = scmp.eq.s32.totalorder %s20, 0
    %p129 = por %p127, %p128
    %s131 = sadd.s32 %s130, 1
    %p134 = scmp.eq.s32.totalorder %s14, 1
    %p135 = scmp.ne.s32.totalorder %s130, %s132
    %p136 = scmp.eq.s32.totalorder %s14, 0
    %p137 = por %p135, %p136
    %p138 = scmp.ne.s32.totalorder %s130, %s132
    %p139 = scmp.eq.s32.totalorder %s19, 1
    %p140 = por %p138, %p139
    %p141 = scmp.ne.s32.totalorder %s132, %s133
    %p142 = scmp.eq.s32.totalorder %s19, 0
    %p143 = por %p141, %p142
    %p144 = scmp.ne.s32.totalorder %s132, %s133
    %p145 = scmp.eq.s32.totalorder %s20, 1
    %p146 = por %p144, %p145
    %p148 = scmp.ne.s32.totalorder %s133, %s147
    %p149 = scmp.eq.s32.totalorder %s20, 0
    %p150 = por %p148, %p149
    %s152 = sadd.s32 %s151, 1
    %p155 = scmp.eq.s32.totalorder %s14, 1
    %p156 = scmp.ne.s32.totalorder %s151, %s153
    %p157 = scmp.eq.s32.totalorder %s14, 0
    %p158 = por %p156, %p157
    %p159 = scmp.ne.s32.totalorder %s151, %s153
    %p160 = scmp.eq.s32.totalorder %s19, 1
    %p161 = por %p159, %p160
    %p162 = scmp.ne.s32.totalorder %s153, %s154
    %p163 = scmp.eq.s32.totalorder %s19, 0
    %p164 = por %p162, %p163
    %p165 = scmp.ne.s32.totalorder %s153, %s154
    %p166 = scmp.eq.s32.totalorder %s20, 1
    %p167 = por %p165, %p166
    %p169 = scmp.ne.s32.totalorder %s154, %s168
    %p170 = scmp.eq.s32.totalorder %s20, 0
    %p171 = por %p169, %p170
    %s173 = sadd.s32 %s172, 1
    %p176 = scmp.eq.s32.totalorder %s14, 1
    %p177 = scmp.ne.s32.totalorder %s172, %s174
    %p178 = scmp.eq.s32.totalorder %s14, 0
    %p179 = por %p177, %p178
    %p180 = scmp.ne.s32.totalorder %s172, %s174
    %p181 = scmp.eq.s32.totalorder %s19, 1
    %p182 = por %p180, %p181
    %p183 = scmp.ne.s32.totalorder %s174, %s175
    %p184 = scmp.eq.s32.totalorder %s19, 0
    %p185 = por %p183, %p184
    %p186 = scmp.ne.s32.totalorder %s174, %s175
    %p187 = scmp.eq.s32.totalorder %s20, 1
    %p188 = por %p186, %p187
    %p190 = scmp.ne.s32.totalorder %s175, %s189
    %p191 = scmp.eq.s32.totalorder %s20, 0
    %p192 = por %p190, %p191
    %s194 = sadd.s32 %s193, 1
    %p197 = scmp.eq.s32.totalorder %s14, 1
    %p198 = scmp.ne.s32.totalorder %s193, %s195
    %p199 = scmp.eq.s32.totalorder %s14, 0
    %p200 = por %p198, %p199
    %p201 = scmp.ne.s32.totalorder %s193, %s195
    %p202 = scmp.eq.s32.totalorder %s19, 1
    %p203 = por %p201, %p202
    %p204 = scmp.ne.s32.totalorder %s195, %s196
    %p205 = scmp.eq.s32.totalorder %s19, 0
    %p206 = por %p204, %p205
    %p207 = scmp.ne.s32.totalorder %s195, %s196
    %p208 = scmp.eq.s32.totalorder %s20, 1
    %p209 = por %p207, %p208
    %p211 = scmp.ne.s32.totalorder %s196, %s210
    %p212 = scmp.eq.s32.totalorder %s20, 0
    %p213 = por %p211, %p212
    %s214 = ssub.s32 %s21, %s33
    %s215 = ssub.s32 %s22, %s29
    %s216 = sor.u32 %s214, %s215
    %p217 = scmp.eq.s32.totalorder %s216, 0
    %s219 = sadd.s32 %s218, 1
    %s220 = scalar_select %p217, %s218, %s219
    %p223 = pneg %p217
    %p224 = scmp.eq.s32.totalorder %s14, 1
    %p225 = por %p223, %p224
    %p226 = scmp.ne.s32.totalorder %s218, %s221
    %p227 = scmp.eq.s32.totalorder %s14, 0
    %p228 = por %p226, %p227
    %p229 = scmp.ne.s32.totalorder %s218, %s221
    %p230 = scmp.eq.s32.totalorder %s19, 1
    %p231 = por %p229, %p230
    %p232 = scmp.ne.s32.totalorder %s221, %s222
    %p233 = scmp.eq.s32.totalorder %s19, 0
    %p234 = por %p232, %p233
    %p235 = scmp.ne.s32.totalorder %s221, %s222
    %p236 = scmp.eq.s32.totalorder %s20, 1
    %p237 = por %p235, %p236
    %p239 = scmp.ne.s32.totalorder %s222, %s238
    %p240 = scmp.eq.s32.totalorder %s20, 0
    %p241 = por %p239, %p240
    %p242 = scmp.le.s32.totalorder 1, %s14
    %p243 = scmp.lt.s32.totalorder %s14, 3
    %p244 = pnand %p242, %p243
    %p245 = pneg %p244
    // Predicated region
    $region9: #{network_forward.1} parent=5 // pred_check
      _
    $region10: #{network_forward.1} parent=5 // pred_check_branch
      %247 = sbr.rel (%p244) target = $region12
    $region11: #{network_forward.1} parent=5 // pred_region
      %s248 = ssub.s32 %s14, 1
      // Predicated region
      $region13: #{network_forward.1} parent=11 // pred_check
        %p249 = pneg %p80
      $region14: #{network_forward.1} parent=11 // pred_check_branch
        %251 = sbr.rel (%p249) target = $region16
      $region15: #{network_forward.1} parent=11 // pred_region
        %p252 = scmp.lt.s32.totalorder %s24, 0
        %s253 = scalar_select %p252, %s24, 0
        %s254 = smul.addr %s253, 5
        %s255 = scalar_lea.vmem %s1, %s254
      $region16: #{network_forward.1} parent=11 // pred_fallthru
        _
      // Predicated region
      $region17: #{network_forward.1} parent=11 // pred_check
        %p256 = pneg %p101
      $region18: #{network_forward.1} parent=11 // pred_check_branch
        %258 = sbr.rel (%p256) target = $region20
      $region19: #{network_forward.1} parent=11 // pred_region
        _
      $region20: #{network_forward.1} parent=11 // pred_fallthru
        _
      // Predicated region
      $region21: #{network_forward.1} parent=11 // pred_check
        %p259 = pneg %p122
      $region22: #{network_forward.1} parent=11 // pred_check_branch
        %261 = sbr.rel (%p259) target = $region24
      $region23: #{network_forward.1} parent=11 // pred_region
        _
      $region24: #{network_forward.1} parent=11 // pred_fallthru
        _
      // Predicated region
      $region25: #{network_forward.1} parent=11 // pred_check
        %p262 = pneg %p143
      $region26: #{network_forward.1} parent=11 // pred_check_branch
        %264 = sbr.rel (%p262) target = $region28
      $region27: #{network_forward.1} parent=11 // pred_region
        _
      $region28: #{network_forward.1} parent=11 // pred_fallthru
        _
      // Predicated region
      $region29: #{network_forward.1} parent=11 // pred_check
        %p265 = pneg %p164
      $region30: #{network_forward.1} parent=11 // pred_check_branch
        %267 = sbr.rel (%p265) target = $region32
      $region31: #{network_forward.1} parent=11 // pred_region
        _
      $region32: #{network_forward.1} parent=11 // pred_fallthru
        _
      // Predicated region
      $region33: #{network_forward.1} parent=11 // pred_check
        %p268 = pneg %p185
      $region34: #{network_forward.1} parent=11 // pred_check_branch
        %270 = sbr.rel (%p268) target = $region36
      $region35: #{network_forward.1} parent=11 // pred_region
        _
      $region36: #{network_forward.1} parent=11 // pred_fallthru
        _
      // Predicated region
      $region37: #{network_forward.1} parent=11 // pred_check
        %p271 = pneg %p206
      $region38: #{network_forward.1} parent=11 // pred_check_branch
        %273 = sbr.rel (%p271) target = $region40
      $region39: #{network_forward.1} parent=11 // pred_region
        _
      $region40: #{network_forward.1} parent=11 // pred_fallthru
        _
    $region12: #{network_forward.1} parent=5 // pred_fallthru
      _
    %p274 = scmp.lt.s32.totalorder %s14, 2
    // Predicated region
    $region41: #{network_forward.1} parent=5 // pred_check
      %p275 = pneg %p274
    $region42: #{network_forward.1} parent=5 // pred_check_branch
      %277 = sbr.rel (%p275) target = $region44
    $region43: #{network_forward.1} parent=5 // pred_region
      // Predicated region
      $region45: #{network_forward.1} parent=43 // pred_check
        %p278 = pneg %p48
      $region46: #{network_forward.1} parent=43 // pred_check_branch
        %280 = sbr.rel (%p278) target = $region48
      $region47: #{network_forward.1} parent=43 // pred_region
        %p281 = scmp.lt.s32.totalorder %s21, 1
        %s282 = scalar_select %p281, %s21, 1
        %p283 = scmp.lt.s32.totalorder %s22, 0
        %s284 = scalar_select %p283, %s22, 0
        %s285 = smul.addr %s284, 7
        %s286 = smul.addr %s282, 7
        %s287 = sadd.s32 %s285, %s286
        %s288 = smul.addr %s287, 2
        %s289 = scalar_lea.vmem %s0, %s288
      $region48: #{network_forward.1} parent=43 // pred_fallthru
        _
    $region44: #{network_forward.1} parent=5 // pred_fallthru
      _
    %p290 = scmp.le.s32.totalorder 1, %s14
    %p291 = scmp.lt.s32.totalorder %s14, 3
    %p292 = pnand %p290, %p291
    %p293 = pneg %p292
    // Predicated region
    $region49: #{network_forward.1} parent=5 // pred_check
      _
    $region50: #{network_forward.1} parent=5 // pred_check_branch
      %295 = sbr.rel (%p292) target = $region52
    $region51: #{network_forward.1} parent=5 // pred_region
      %s296 = ssub.s32 %s14, 1
      %p297 = scmp.lt.s32.totalorder %s23, 1
      %s298 = scalar_select %p297, %s23, 1
      %p299 = scmp.lt.s32.totalorder %s24, 0
      %s300 = scalar_select %p299, %s24, 0
      %s301 = smul.addr %s300, 7
      %s302 = smul.addr %s298, 7
      %s303 = sadd.s32 %s301, %s302
      %s304 = smul.addr %s303, 2
      %s305 = scalar_lea.vmem %s0, %s304
      %p306 = pneg %p54
      %p307 = pneg %p51
      %p308 = scmp.lt.s32.totalorder %s24, 0
      %s309 = scalar_select %p308, %s24, 0
      %s310 = smul.addr %s309, 5
      %s311 = scalar_lea.vmem %s1, %s310
      %p312 = pneg %p80
      %p313 = pneg %p77
      %p314 = pneg %p101
      %p315 = pneg %p98
      %p316 = pneg %p122
      %p317 = pneg %p119
      %p318 = pneg %p143
      %p319 = pneg %p140
      %p320 = pneg %p164
      %p321 = pneg %p161
      %p322 = pneg %p185
      %p323 = pneg %p182
      %p324 = pneg %p206
      %p325 = pneg %p203
      %p326 = pneg %p234
      %p327 = pneg %p231
      %p328 = scmp.lt.s32.totalorder %s23, 1
      %s329 = scalar_select %p328, %s23, 1
      %p330 = scmp.lt.s32.totalorder %s24, 0
      %s331 = scalar_select %p330, %s24, 0
      %s332 = smul.addr %s331, 4
      %s333 = smul.addr %s329, 4
      %s334 = sadd.s32 %s332, %s333
      %s335 = smul.addr %s334, 4
      %s336 = scalar_lea.vmem %s8, %s335
      %p337 = scmp.lt.s32.totalorder %s23, 1
      %s338 = scalar_select %p337, %s23, 1
      %p339 = scmp.lt.s32.totalorder %s24, 0
      %s340 = scalar_select %p339, %s24, 0
      %s341 = smul.addr %s340, 7
      %s342 = smul.addr %s338, 7
      %s343 = sadd.s32 %s341, %s342
      %s344 = smul.addr %s343, 2
      %s345 = scalar_lea.vmem %s0, %s344
      %p346 = scmp.lt.s32.totalorder %s24, 0
      %s347 = scalar_select %p346, %s24, 0
      %s348 = smul.addr %s347, 5
      %s349 = scalar_lea.vmem %s1, %s348
      %p350 = scmp.lt.s32.totalorder %s23, 1
      %s351 = scalar_select %p350, %s23, 1
      %p352 = scmp.lt.s32.totalorder %s24, 0
      %s353 = scalar_select %p352, %s24, 0
      %s354 = smul.addr %s353, 4
      %s355 = smul.addr %s351, 4
      %s356 = sadd.s32 %s354, %s355
      %s357 = smul.addr %s356, 4
      %s358 = scalar_lea.vmem %s8, %s357
      %v360 = vld [vmem:[%s345] sm:$0xff]
      %v361 = vld [vmem:[%s345 + $0x8] sm:$0x3f]
      %v364 = vcombine.high %v360, %v360
      %v366 = vunpack.c.l.s4 1983009808
      %v367 = vunpack.c.0.s8 %v366
      %v368 = vlaneseq
      %v369 = vshrl.u32 %v368, 7
      %v370 = vsub.s32 %v367, %v369
      %v371 = vrot.slane %v360, %v370
      %v373 = vunpack.c.l.s4 1983009808
      %v374 = vunpack.c.0.s8 %v373
      %v375 = vlaneseq
      %v376 = vshrl.u32 %v375, 7
      %v377 = vsub.s32 %v374, %v376
      %v378 = vrot.slane %v364, %v377
      %v379 = vcombine.high %v371, %v371
      %v380 = vcombine.high %v378, %v378
      %v382 = vunpack.c.l.s4 1983009808
      %v383 = vunpack.c.0.s8 %v382
      %v384 = vlaneseq
      %v385 = vshrl.u32 %v384, 7
      %v386 = vsub.s32 %v383, %v385
      %v387 = vrot.slane %v361, %v386
      %v394 = vshrl.u32 %v371, 16
      %v396 = vrot.slane %v394, 6
      %v397 = vshll.u32 %v371, 16
      %v399 = vrot.slane %v397, 7
      %v400 = vor.u32 %v396, %v399
      %v402 = vshrl.u32 %v379, 16
      %v404 = vrot.slane %v402, 6
      %v405 = vshll.u32 %v379, 16
      %v407 = vrot.slane %v405, 7
      %v408 = vor.u32 %v404, %v407
      %v410 = vshrl.u32 %v378, 16
      %v412 = vrot.slane %v410, 6
      %v413 = vshll.u32 %v378, 16
      %v415 = vrot.slane %v413, 7
      %v416 = vor.u32 %v412, %v415
      %v418 = vshrl.u32 %v380, 16
      %v420 = vrot.slane %v418, 6
      %v421 = vshll.u32 %v380, 16
      %v423 = vrot.slane %v421, 7
      %v424 = vor.u32 %v420, %v423
      %v426 = vshrl.u32 %v387, 16
      %v428 = vrot.slane %v426, 6
      %v429 = vshll.u32 %v387, 16
      %v431 = vrot.slane %v429, 7
      %v432 = vor.u32 %v428, %v431
      %433 = vrot.lane.b32.xlu0 %v400, 127
      %v434 = vpop.permute.xlu0 %433
      %435 = vrot.lane.b32.xlu0 %v408, 127
      %v436 = vpop.permute.xlu0 %435
      %437 = vrot.lane.b32.xlu0 %v416, 127
      %v438 = vpop.permute.xlu0 %437
      %439 = vrot.lane.b32.xlu0 %v424, 127
      %v440 = vpop.permute.xlu0 %439
      %441 = vrot.lane.b32.xlu0 %v432, 127
      %v442 = vpop.permute.xlu0 %441
      %vm443 = vcmask 1039360
      %v444 = vsel %vm443, %v434, %v436
      %v445 = vsel %vm443, %v436, %v438
      %v446 = vsel %vm443, %v438, %v440
      %v447 = vsel %vm443, %v440, %v442
      %v453 = vrot.slane %v371, 5
      %v454 = vrot.slane %v379, 5
      %v455 = vrot.slane %v378, 5
      %v456 = vrot.slane %v380, 5
      %v457 = vrot.slane %v387, 5
      %458 = vrot.lane.b32.xlu0 %v453, 126
      %v459 = vpop.permute.xlu0 %458
      %460 = vrot.lane.b32.xlu0 %v454, 126
      %v461 = vpop.permute.xlu0 %460
      %462 = vrot.lane.b32.xlu0 %v455, 126
      %v463 = vpop.permute.xlu0 %462
      %464 = vrot.lane.b32.xlu0 %v456, 126
      %v465 = vpop.permute.xlu0 %464
      %466 = vrot.lane.b32.xlu0 %v457, 126
      %v467 = vpop.permute.xlu0 %466
      %vm468 = vcmask 1031168
      %v469 = vsel %vm468, %v459, %v461
      %v470 = vsel %vm468, %v461, %v463
      %v471 = vsel %vm468, %v463, %v465
      %v472 = vsel %vm468, %v465, %v467
      %v473 = vrot.slane %v394, 3
      %v474 = vrot.slane %v397, 4
      %v475 = vor.u32 %v473, %v474
      %v476 = vrot.slane %v402, 3
      %v477 = vrot.slane %v405, 4
      %v478 = vor.u32 %v476, %v477
      %v479 = vrot.slane %v410, 3
      %v480 = vrot.slane %v413, 4
      %v481 = vor.u32 %v479, %v480
      %v482 = vrot.slane %v418, 3
      %v483 = vrot.slane %v421, 4
      %v484 = vor.u32 %v482, %v483
      %v485 = vrot.slane %v426, 3
      %v486 = vrot.slane %v429, 4
      %v487 = vor.u32 %v485, %v486
      %488 = vrot.lane.b32.xlu0 %v475, 125
      %v489 = vpop.permute.xlu0 %488
      %490 = vrot.lane.b32.xlu0 %v478, 125
      %v491 = vpop.permute.xlu0 %490
      %492 = vrot.lane.b32.xlu0 %v481, 125
      %v493 = vpop.permute.xlu0 %492
      %494 = vrot.lane.b32.xlu0 %v484, 125
      %v495 = vpop.permute.xlu0 %494
      %496 = vrot.lane.b32.xlu0 %v487, 125
      %v497 = vpop.permute.xlu0 %496
      %vm498 = vcmask 1022976
      %v499 = vsel %vm498, %v489, %v491
      %v500 = vsel %vm498, %v491, %v493
      %v501 = vsel %vm498, %v493, %v495
      %v502 = vsel %vm498, %v495, %v497
      %v508 = vcombine.low %v360, %v360
      %v510 = vunpack.c.l.s4 1983009808
      %v511 = vunpack.c.0.s8 %v510
      %v512 = vlaneseq
      %v513 = vshrl.u32 %v512, 7
      %v514 = vsub.s32 %v511, %v513
      %v515 = vrot.slane %v508, %v514
      %v516 = vcombine.low %v515, %v515
      %v517 = vcombine.low %v371, %v371
      %v518 = vcombine.low %v361, %v361
      %v520 = vunpack.c.l.s4 1983009808
      %v521 = vunpack.c.0.s8 %v520
      %v522 = vlaneseq
      %v523 = vshrl.u32 %v522, 7
      %v524 = vsub.s32 %v521, %v523
      %v525 = vrot.slane %v518, %v524
      %v526 = vcombine.low %v525, %v525
      %527 = vrot.lane.b32.xlu0 %v516, 124
      %v528 = vpop.permute.xlu0 %527
      %529 = vrot.lane.b32.xlu0 %v515, 124
      %v530 = vpop.permute.xlu0 %529
      %531 = vrot.lane.b32.xlu0 %v517, 124
      %v532 = vpop.permute.xlu0 %531
      %533 = vrot.lane.b32.xlu0 %v371, 124
      %v534 = vpop.permute.xlu0 %533
      %535 = vrot.lane.b32.xlu0 %v526, 124
      %v536 = vpop.permute.xlu0 %535
      %vm537 = vcmask 1014784
      %v538 = vsel %vm537, %v528, %v530
      %v539 = vsel %vm537, %v530, %v532
      %v540 = vsel %vm537, %v532, %v534
      %v541 = vsel %vm537, %v534, %v536
      %v542 = vrot.slane %v397, 1
      %v543 = vrot.slane %v405, 1
      %v544 = vrot.slane %v413, 1
      %v545 = vrot.slane %v421, 1
      %v546 = vrot.slane %v429, 1
      %v547 = vor.u32 %v394, %v542
      %v548 = vor.u32 %v402, %v543
      %v549 = vor.u32 %v410, %v544
      %v550 = vor.u32 %v418, %v545
      %v551 = vor.u32 %v426, %v546
      %552 = vrot.lane.b32.xlu0 %v542, 123
      %v553 = vpop.permute.xlu0 %552
      %554 = vrot.lane.b32.xlu0 %v543, 123
      %v555 = vpop.permute.xlu0 %554
      %556 = vrot.lane.b32.xlu0 %v544, 123
      %v557 = vpop.permute.xlu0 %556
      %558 = vrot.lane.b32.xlu0 %v545, 123
      %v559 = vpop.permute.xlu0 %558
      %560 = vrot.lane.b32.xlu0 %v546, 123
      %v561 = vpop.permute.xlu0 %560
      %562 = vrot.lane.b32.xlu0 %v547, 123
      %v563 = vpop.permute.xlu0 %562
      %564 = vrot.lane.b32.xlu0 %v548, 123
      %v565 = vpop.permute.xlu0 %564
      %566 = vrot.lane.b32.xlu0 %v549, 123
      %v567 = vpop.permute.xlu0 %566
      %568 = vrot.lane.b32.xlu0 %v550, 123
      %v569 = vpop.permute.xlu0 %568
      %570 = vrot.lane.b32.xlu0 %v551, 123
      %v571 = vpop.permute.xlu0 %570
      %vm572 = vcmask 1006592
      %v573 = vsel %vm572, %v553, %v555
      %v574 = vsel %vm572, %v555, %v557
      %v575 = vsel %vm572, %v557, %v559
      %v576 = vsel %vm572, %v559, %v561
      %v577 = vsel %vm572, %v563, %v565
      %v578 = vsel %vm572, %v565, %v567
      %v579 = vsel %vm572, %v567, %v569
      %v580 = vsel %vm572, %v569, %v571
      %v586 = vrot.slane %v371, 7
      %v587 = vrot.slane %v379, 7
      %v588 = vrot.slane %v378, 7
      %v589 = vrot.slane %v380, 7
      %v590 = vrot.slane %v387, 7
      %591 = vrot.lane.b32.xlu0 %v586, 122
      %v592 = vpop.permute.xlu0 %591
      %593 = vrot.lane.b32.xlu0 %v587, 122
      %v594 = vpop.permute.xlu0 %593
      %595 = vrot.lane.b32.xlu0 %v588, 122
      %v596 = vpop.permute.xlu0 %595
      %597 = vrot.lane.b32.xlu0 %v589, 122
      %v598 = vpop.permute.xlu0 %597
      %599 = vrot.lane.b32.xlu0 %v590, 122
      %v600 = vpop.permute.xlu0 %599
      %vm601 = vcmask 998400
      %v602 = vsel %vm601, %v592, %v594
      %v603 = vsel %vm601, %v594, %v596
      %v604 = vsel %vm601, %v596, %v598
      %v605 = vsel %vm601, %v598, %v600
      %v606 = vrot.slane %v394, 5
      %v607 = vrot.slane %v397, 6
      %v608 = vor.u32 %v606, %v607
      %v609 = vrot.slane %v402, 5
      %v610 = vrot.slane %v405, 6
      %v611 = vor.u32 %v609, %v610
      %v612 = vrot.slane %v410, 5
      %v613 = vrot.slane %v413, 6
      %v614 = vor.u32 %v612, %v613
      %v615 = vrot.slane %v418, 5
      %v616 = vrot.slane %v421, 6
      %v617 = vor.u32 %v615, %v616
      %v618 = vrot.slane %v426, 5
      %v619 = vrot.slane %v429, 6
      %v620 = vor.u32 %v618, %v619
      %621 = vrot.lane.b32.xlu0 %v608, 121
      %v622 = vpop.permute.xlu0 %621
      %623 = vrot.lane.b32.xlu0 %v611, 121
      %v624 = vpop.permute.xlu0 %623
      %625 = vrot.lane.b32.xlu0 %v614, 121
      %v626 = vpop.permute.xlu0 %625
      %627 = vrot.lane.b32.xlu0 %v617, 121
      %v628 = vpop.permute.xlu0 %627
      %629 = vrot.lane.b32.xlu0 %v620, 121
      %v630 = vpop.permute.xlu0 %629
      %vm631 = vcmask 990208
      %v632 = vsel %vm631, %v622, %v624
      %v633 = vsel %vm631, %v624, %v626
      %v634 = vsel %vm631, %v626, %v628
      %v635 = vsel %vm631, %v628, %v630
      %v641 = vcombine.low %v378, %v378
      %v642 = vcombine.low %v387, %v387
      %643 = vrot.lane.b32.xlu0 %v517, 120
      %v644 = vpop.permute.xlu0 %643
      %645 = vrot.lane.b32.xlu0 %v371, 120
      %v646 = vpop.permute.xlu0 %645
      %647 = vrot.lane.b32.xlu0 %v641, 120
      %v648 = vpop.permute.xlu0 %647
      %649 = vrot.lane.b32.xlu0 %v378, 120
      %v650 = vpop.permute.xlu0 %649
      %651 = vrot.lane.b32.xlu0 %v642, 120
      %v652 = vpop.permute.xlu0 %651
      %vm653 = vcmask 982016
      %v654 = vsel %vm653, %v644, %v646
      %v655 = vsel %vm653, %v646, %v648
      %v656 = vsel %vm653, %v648, %v650
      %v657 = vsel %vm653, %v650, %v652
      %v658 = vrot.slane %v394, 2
      %v659 = vrot.slane %v397, 3
      %v660 = vor.u32 %v658, %v659
      %v661 = vrot.slane %v402, 2
      %v662 = vrot.slane %v405, 3
      %v663 = vor.u32 %v661, %v662
      %v664 = vrot.slane %v410, 2
      %v665 = vrot.slane %v413, 3
      %v666 = vor.u32 %v664, %v665
      %v667 = vrot.slane %v418, 2
      %v668 = vrot.slane %v421, 3
      %v669 = vor.u32 %v667, %v668
      %v670 = vrot.slane %v426, 2
      %v671 = vrot.slane %v429, 3
      %v672 = vor.u32 %v670, %v671
      %673 = vrot.lane.b32.xlu0 %v660, 100
      %v674 = vpop.permute.xlu0 %673
      %675 = vrot.lane.b32.xlu0 %v663, 100
      %v676 = vpop.permute.xlu0 %675
      %677 = vrot.lane.b32.xlu0 %v666, 100
      %v678 = vpop.permute.xlu0 %677
      %679 = vrot.lane.b32.xlu0 %v669, 100
      %v680 = vpop.permute.xlu0 %679
      %681 = vrot.lane.b32.xlu0 %v672, 100
      %v682 = vpop.permute.xlu0 %681
      %vm683 = vcmask 818176
      %v684 = vsel %vm683, %v674, %v676
      %v685 = vsel %vm683, %v676, %v678
      %v686 = vsel %vm683, %v678, %v680
      %v687 = vsel %vm683, %v680, %v682
      %v693 = vrot.slane %v371, 1
      %v694 = vrot.slane %v379, 1
      %v695 = vrot.slane %v378, 1
      %v696 = vrot.slane %v380, 1
      %v697 = vrot.slane %v387, 1
      %698 = vrot.lane.b32.xlu0 %v693, 99
      %v699 = vpop.permute.xlu0 %698
      %700 = vrot.lane.b32.xlu0 %v694, 99
      %v701 = vpop.permute.xlu0 %700
      %702 = vrot.lane.b32.xlu0 %v695, 99
      %v703 = vpop.permute.xlu0 %702
      %704 = vrot.lane.b32.xlu0 %v696, 99
      %v705 = vpop.permute.xlu0 %704
      %706 = vrot.lane.b32.xlu0 %v697, 99
      %v707 = vpop.permute.xlu0 %706
      %vm708 = vcmask 809984
      %v709 = vsel %vm708, %v699, %v701
      %v710 = vsel %vm708, %v701, %v703
      %v711 = vsel %vm708, %v703, %v705
      %v712 = vsel %vm708, %v705, %v707
      %v718 = vrot.slane %v394, 7
      %v719 = vor.u32 %v718, %v397
      %v720 = vrot.slane %v402, 7
      %v721 = vor.u32 %v720, %v405
      %v722 = vrot.slane %v410, 7
      %v723 = vor.u32 %v722, %v413
      %v724 = vrot.slane %v418, 7
      %v725 = vor.u32 %v724, %v421
      %v726 = vrot.slane %v426, 7
      %v727 = vor.u32 %v726, %v429
      %728 = vrot.lane.b32.xlu0 %v719, 98
      %v729 = vpop.permute.xlu0 %728
      %730 = vrot.lane.b32.xlu0 %v721, 98
      %v731 = vpop.permute.xlu0 %730
      %732 = vrot.lane.b32.xlu0 %v723, 98
      %v733 = vpop.permute.xlu0 %732
      %734 = vrot.lane.b32.xlu0 %v725, 98
      %v735 = vpop.permute.xlu0 %734
      %736 = vrot.lane.b32.xlu0 %v727, 98
      %v737 = vpop.permute.xlu0 %736
      %vm738 = vcmask 801792
      %v739 = vsel %vm738, %v729, %v731
      %v740 = vsel %vm738, %v731, %v733
      %v741 = vsel %vm738, %v733, %v735
      %v742 = vsel %vm738, %v735, %v737
      %v748 = vcombine.high %v515, %v515
      %749 = vrot.lane.b32.xlu0 %v515, 97
      %v750 = vpop.permute.xlu0 %749
      %751 = vrot.lane.b32.xlu0 %v748, 97
      %v752 = vpop.permute.xlu0 %751
      %753 = vrot.lane.b32.xlu0 %v371, 97
      %v754 = vpop.permute.xlu0 %753
      %755 = vrot.lane.b32.xlu0 %v379, 97
      %v756 = vpop.permute.xlu0 %755
      %757 = vrot.lane.b32.xlu0 %v525, 97
      %v758 = vpop.permute.xlu0 %757
      %vm759 = vcmask 793600
      %v760 = vsel %vm759, %v750, %v752
      %v761 = vsel %vm759, %v752, %v754
      %v762 = vsel %vm759, %v754, %v756
      %v763 = vsel %vm759, %v756, %v758
      %v764 = vrot.slane %v394, 4
      %v765 = vrot.slane %v397, 5
      %v766 = vor.u32 %v764, %v765
      %v767 = vrot.slane %v402, 4
      %v768 = vrot.slane %v405, 5
      %v769 = vor.u32 %v767, %v768
      %v770 = vrot.slane %v410, 4
      %v771 = vrot.slane %v413, 5
      %v772 = vor.u32 %v770, %v771
      %v773 = vrot.slane %v418, 4
      %v774 = vrot.slane %v421, 5
      %v775 = vor.u32 %v773, %v774
      %v776 = vrot.slane %v426, 4
      %v777 = vrot.slane %v429, 5
      %v778 = vor.u32 %v776, %v777
      %779 = vrot.lane.b32.xlu0 %v766, 96
      %v780 = vpop.permute.xlu0 %779
      %781 = vrot.lane.b32.xlu0 %v769, 96
      %v782 = vpop.permute.xlu0 %781
      %783 = vrot.lane.b32.xlu0 %v772, 96
      %v784 = vpop.permute.xlu0 %783
      %785 = vrot.lane.b32.xlu0 %v775, 96
      %v786 = vpop.permute.xlu0 %785
      %787 = vrot.lane.b32.xlu0 %v778, 96
      %v788 = vpop.permute.xlu0 %787
      %vm789 = vcmask 785408
      %v790 = vsel %vm789, %v780, %v782
      %v791 = vsel %vm789, %v782, %v784
      %v792 = vsel %vm789, %v784, %v786
      %v793 = vsel %vm789, %v786, %v788
      %v799 = vrot.slane %v371, 3
      %v800 = vrot.slane %v379, 3
      %v801 = vrot.slane %v378, 3
      %v802 = vrot.slane %v380, 3
      %v803 = vrot.slane %v387, 3
      %804 = vrot.lane.b32.xlu0 %v799, 95
      %v805 = vpop.permute.xlu0 %804
      %806 = vrot.lane.b32.xlu0 %v800, 95
      %v807 = vpop.permute.xlu0 %806
      %808 = vrot.lane.b32.xlu0 %v801, 95
      %v809 = vpop.permute.xlu0 %808
      %810 = vrot.lane.b32.xlu0 %v802, 95
      %v811 = vpop.permute.xlu0 %810
      %812 = vrot.lane.b32.xlu0 %v803, 95
      %v813 = vpop.permute.xlu0 %812
      %vm814 = vcmask 777216
      %v815 = vsel %vm814, %v805, %v807
      %v816 = vsel %vm814, %v807, %v809
      %v817 = vsel %vm814, %v809, %v811
      %v818 = vsel %vm814, %v811, %v813
      %v819 = vrot.slane %v394, 1
      %v820 = vrot.slane %v397, 2
      %v821 = vor.u32 %v819, %v820
      %v822 = vrot.slane %v402, 1
      %v823 = vrot.slane %v405, 2
      %v824 = vor.u32 %v822, %v823
      %v825 = vrot.slane %v410, 1
      %v826 = vrot.slane %v413, 2
      %v827 = vor.u32 %v825, %v826
      %v828 = vrot.slane %v418, 1
      %v829 = vrot.slane %v421, 2
      %v830 = vor.u32 %v828, %v829
      %v831 = vrot.slane %v426, 1
      %v832 = vrot.slane %v429, 2
      %v833 = vor.u32 %v831, %v832
      %834 = vrot.lane.b32.xlu0 %v821, 94
      %v835 = vpop.permute.xlu0 %834
      %836 = vrot.lane.b32.xlu0 %v824, 94
      %v837 = vpop.permute.xlu0 %836
      %838 = vrot.lane.b32.xlu0 %v827, 94
      %v839 = vpop.permute.xlu0 %838
      %840 = vrot.lane.b32.xlu0 %v830, 94
      %v841 = vpop.permute.xlu0 %840
      %842 = vrot.lane.b32.xlu0 %v833, 94
      %v843 = vpop.permute.xlu0 %842
      %vm844 = vcmask 769024
      %v845 = vsel %vm844, %v835, %v837
      %v846 = vsel %vm844, %v837, %v839
      %v847 = vsel %vm844, %v839, %v841
      %v848 = vsel %vm844, %v841, %v843
      %vm854 = vcmask 1041408
      %vm855 = vsmask.f32 1280
      %vm856 = vmand %vm854, %vm855
      %v857 = vsel %vm856, %v371, %v444
      %v858 = vsel %vm856, %v379, %v445
      %v859 = vsel %vm856, %v378, %v446
      %v860 = vsel %vm856, %v380, %v447
      %v861 = vsel %vm856, %v387, %v442
      %vm862 = vcmask 1042432
      %v865 = vsel %vm862, %v857, %v469
      %v869 = vsel %vm862, %v858, %v470
      %v873 = vsel %vm862, %v859, %v471
      %v877 = vsel %vm862, %v860, %v472
      %v881 = vsel %vm862, %v861, %v467
      %vm883 = vcmask 1044480
      %vm884 = vsmask.f32 4352
      %vm885 = vmand %vm883, %vm884
      %v886 = vsel %vm885, %v865, %v499
      %v887 = vsel %vm885, %v869, %v500
      %v888 = vsel %vm885, %v873, %v501
      %v889 = vsel %vm885, %v877, %v502
      %v890 = vsel %vm885, %v881, %v497
      %vm891 = vcmask 1045504
      %v894 = vsel %vm891, %v886, %v538
      %v898 = vsel %vm891, %v887, %v539
      %v902 = vsel %vm891, %v888, %v540
      %v906 = vsel %vm891, %v889, %v541
      %v910 = vsel %vm891, %v890, %v536
      %vm912 = vcmask 1047552
      %vm913 = vsmask.f32 7424
      %vm914 = vmand %vm912, %vm913
      %v915 = vsel %vm914, %v894, %v573
      %v916 = vsel %vm914, %v898, %v574
      %v917 = vsel %vm914, %v902, %v575
      %v918 = vsel %vm914, %v906, %v576
      %v919 = vsel %vm914, %v910, %v561
      %vm920 = vcmask 1040384
      %v923 = vsel %vm920, %v577, %v602
      %v927 = vsel %vm920, %v578, %v603
      %v931 = vsel %vm920, %v579, %v604
      %v935 = vsel %vm920, %v580, %v605
      %v939 = vsel %vm920, %v571, %v600
      %vm941 = vcmask 1042432
      %vm942 = vsmask.f32 2304
      %vm943 = vmand %vm941, %vm942
      %v944 = vsel %vm943, %v923, %v632
      %v945 = vsel %vm943, %v927, %v633
      %v946 = vsel %vm943, %v931, %v634
      %v947 = vsel %vm943, %v935, %v635
      %v948 = vsel %vm943, %v939, %v630
      %vm949 = vcmask 1043456
      %v952 = vsel %vm949, %v944, %v654
      %v956 = vsel %vm949, %v945, %v655
      %v960 = vsel %vm949, %v946, %v656
      %v964 = vsel %vm949, %v947, %v657
      %v968 = vsel %vm949, %v948, %v652
      %vm970 = vcmask 1045504
      %vm971 = vsmask.f32 5376
      %vm972 = vmand %vm970, %vm971
      %v973 = vsel %vm972, %v952, %v684
      %v974 = vsel %vm972, %v956, %v685
      %v975 = vsel %vm972, %v960, %v686
      %v976 = vsel %vm972, %v964, %v687
      %v977 = vsel %vm972, %v968, %v682
      %vm978 = vcmask 1046528
      %v981 = vsel %vm978, %v973, %v709
      %v985 = vsel %vm978, %v974, %v710
      %v989 = vsel %vm978, %v975, %v711
      %v993 = vsel %vm978, %v976, %v712
      %v997 = vsel %vm978, %v977, %v707
      %vm999 = vcmask 1040384
      %vm1000 = vsmask.f32 256
      %vm1001 = vmand %vm999, %vm1000
      %v1002 = vsel %vm1001, %v709, %v739
      %v1003 = vsel %vm1001, %v710, %v740
      %v1004 = vsel %vm1001, %v711, %v741
      %v1005 = vsel %vm1001, %v712, %v742
      %v1006 = vsel %vm1001, %v707, %v737
      %vm1007 = vcmask 1041408
      %v1010 = vsel %vm1007, %v1002, %v760
      %v1014 = vsel %vm1007, %v1003, %v761
      %v1018 = vsel %vm1007, %v1004, %v762
      %v1022 = vsel %vm1007, %v1005, %v763
      %v1026 = vsel %vm1007, %v1006, %v758
      %vm1028 = vcmask 1043456
      %vm1029 = vsmask.f32 3328
      %vm1030 = vmand %vm1028, %vm1029
      %v1031 = vsel %vm1030, %v1010, %v790
      %v1032 = vsel %vm1030, %v1014, %v791
      %v1033 = vsel %vm1030, %v1018, %v792
      %v1034 = vsel %vm1030, %v1022, %v793
      %v1035 = vsel %vm1030, %v1026, %v788
      %vm1036 = vcmask 1044480
      %v1039 = vsel %vm1036, %v1031, %v815
      %v1043 = vsel %vm1036, %v1032, %v816
      %v1047 = vsel %vm1036, %v1033, %v817
      %v1051 = vsel %vm1036, %v1034, %v818
      %v1055 = vsel %vm1036, %v1035, %v813
      %vm1057 = vcmask 1046528
      %vm1058 = vsmask.f32 6400
      %vm1059 = vmand %vm1057, %vm1058
      %v1060 = vsel %vm1059, %v1039, %v845
      %v1061 = vsel %vm1059, %v1043, %v846
      %v1062 = vsel %vm1059, %v1047, %v847
      %v1063 = vsel %vm1059, %v1051, %v848
      %v1064 = vsel %vm1059, %v1055, %v843
      %1065 = vrot.lane.b32.xlu0 %v453, 107
      %v1066 = vpop.permute.xlu0 %1065
      %1067 = vrot.lane.b32.xlu0 %v454, 107
      %v1068 = vpop.permute.xlu0 %1067
      %1069 = vrot.lane.b32.xlu0 %v455, 107
      %v1070 = vpop.permute.xlu0 %1069
      %1071 = vrot.lane.b32.xlu0 %v456, 107
      %v1072 = vpop.permute.xlu0 %1071
      %1073 = vrot.lane.b32.xlu0 %v457, 107
      %v1074 = vpop.permute.xlu0 %1073
      %vm1075 = vcmask 875520
      %v1076 = vsel %vm1075, %v1066, %v1068
      %v1077 = vsel %vm1075, %v1068, %v1070
      %v1078 = vsel %vm1075, %v1070, %v1072
      %v1079 = vsel %vm1075, %v1072, %v1074
      %1080 = vrot.lane.b32.xlu0 %v475, 106
      %v1081 = vpop.permute.xlu0 %1080
      %1082 = vrot.lane.b32.xlu0 %v478, 106
      %v1083 = vpop.permute.xlu0 %1082
      %1084 = vrot.lane.b32.xlu0 %v481, 106
      %v1085 = vpop.permute.xlu0 %1084
      %1086 = vrot.lane.b32.xlu0 %v484, 106
      %v1087 = vpop.permute.xlu0 %1086
      %1088 = vrot.lane.b32.xlu0 %v487, 106
      %v1089 = vpop.permute.xlu0 %1088
      %vm1090 = vcmask 867328
      %v1091 = vsel %vm1090, %v1081, %v1083
      %v1092 = vsel %vm1090, %v1083, %v1085
      %v1093 = vsel %vm1090, %v1085, %v1087
      %v1094 = vsel %vm1090, %v1087, %v1089
      %1100 = vrot.lane.b32.xlu0 %v516, 105
      %v1101 = vpop.permute.xlu0 %1100
      %1102 = vrot.lane.b32.xlu0 %v515, 105
      %v1103 = vpop.permute.xlu0 %1102
      %1104 = vrot.lane.b32.xlu0 %v517, 105
      %v1105 = vpop.permute.xlu0 %1104
      %1106 = vrot.lane.b32.xlu0 %v371, 105
      %v1107 = vpop.permute.xlu0 %1106
      %1108 = vrot.lane.b32.xlu0 %v526, 105
      %v1109 = vpop.permute.xlu0 %1108
      %vm1110 = vcmask 859136
      %v1111 = vsel %vm1110, %v1101, %v1103
      %v1112 = vsel %vm1110, %v1103, %v1105
      %v1113 = vsel %vm1110, %v1105, %v1107
      %v1114 = vsel %vm1110, %v1107, %v1109
      %1115 = vrot.lane.b32.xlu0 %v542, 104
      %v1116 = vpop.permute.xlu0 %1115
      %1117 = vrot.lane.b32.xlu0 %v543, 104
      %v1118 = vpop.permute.xlu0 %1117
      %1119 = vrot.lane.b32.xlu0 %v544, 104
      %v1120 = vpop.permute.xlu0 %1119
      %1121 = vrot.lane.b32.xlu0 %v545, 104
      %v1122 = vpop.permute.xlu0 %1121
      %1123 = vrot.lane.b32.xlu0 %v546, 104
      %v1124 = vpop.permute.xlu0 %1123
      %1125 = vrot.lane.b32.xlu0 %v547, 104
      %v1126 = vpop.permute.xlu0 %1125
      %1127 = vrot.lane.b32.xlu0 %v548, 104
      %v1128 = vpop.permute.xlu0 %1127
      %1129 = vrot.lane.b32.xlu0 %v549, 104
      %v1130 = vpop.permute.xlu0 %1129
      %1131 = vrot.lane.b32.xlu0 %v550, 104
      %v1132 = vpop.permute.xlu0 %1131
      %1133 = vrot.lane.b32.xlu0 %v551, 104
      %v1134 = vpop.permute.xlu0 %1133
      %vm1135 = vcmask 850944
      %v1136 = vsel %vm1135, %v1116, %v1118
      %v1137 = vsel %vm1135, %v1118, %v1120
      %v1138 = vsel %vm1135, %v1120, %v1122
      %v1139 = vsel %vm1135, %v1122, %v1124
      %v1140 = vsel %vm1135, %v1126, %v1128
      %v1141 = vsel %vm1135, %v1128, %v1130
      %v1142 = vsel %vm1135, %v1130, %v1132
      %v1143 = vsel %vm1135, %v1132, %v1134
      %1149 = vrot.lane.b32.xlu0 %v586, 103
      %v1150 = vpop.permute.xlu0 %1149
      %1151 = vrot.lane.b32.xlu0 %v587, 103
      %v1152 = vpop.permute.xlu0 %1151
      %1153 = vrot.lane.b32.xlu0 %v588, 103
      %v1154 = vpop.permute.xlu0 %1153
      %1155 = vrot.lane.b32.xlu0 %v589, 103
      %v1156 = vpop.permute.xlu0 %1155
      %1157 = vrot.lane.b32.xlu0 %v590, 103
      %v1158 = vpop.permute.xlu0 %1157
      %vm1159 = vcmask 842752
      %v1160 = vsel %vm1159, %v1150, %v1152
      %v1161 = vsel %vm1159, %v1152, %v1154
      %v1162 = vsel %vm1159, %v1154, %v1156
      %v1163 = vsel %vm1159, %v1156, %v1158
      %1164 = vrot.lane.b32.xlu0 %v608, 102
      %v1165 = vpop.permute.xlu0 %1164
      %1166 = vrot.lane.b32.xlu0 %v611, 102
      %v1167 = vpop.permute.xlu0 %1166
      %1168 = vrot.lane.b32.xlu0 %v614, 102
      %v1169 = vpop.permute.xlu0 %1168
      %1170 = vrot.lane.b32.xlu0 %v617, 102
      %v1171 = vpop.permute.xlu0 %1170
      %1172 = vrot.lane.b32.xlu0 %v620, 102
      %v1173 = vpop.permute.xlu0 %1172
      %vm1174 = vcmask 834560
      %v1175 = vsel %vm1174, %v1165, %v1167
      %v1176 = vsel %vm1174, %v1167, %v1169
      %v1177 = vsel %vm1174, %v1169, %v1171
      %v1178 = vsel %vm1174, %v1171, %v1173
      %1184 = vrot.lane.b32.xlu0 %v517, 101
      %v1185 = vpop.permute.xlu0 %1184
      %1186 = vrot.lane.b32.xlu0 %v371, 101
      %v1187 = vpop.permute.xlu0 %1186
      %1188 = vrot.lane.b32.xlu0 %v641, 101
      %v1189 = vpop.permute.xlu0 %1188
      %1190 = vrot.lane.b32.xlu0 %v378, 101
      %v1191 = vpop.permute.xlu0 %1190
      %1192 = vrot.lane.b32.xlu0 %v642, 101
      %v1193 = vpop.permute.xlu0 %1192
      %vm1194 = vcmask 826368
      %v1195 = vsel %vm1194, %v1185, %v1187
      %v1196 = vsel %vm1194, %v1187, %v1189
      %v1197 = vsel %vm1194, %v1189, %v1191
      %v1198 = vsel %vm1194, %v1191, %v1193
      %v1199 = vcombine.high %v387, %v387
      %v1201 = vshrl.u32 %v1199, 16
      %v1203 = vrot.slane %v1201, 7
      %v1204 = vshll.u32 %v1199, 16
      %v1206 = vor.u32 %v1203, %v1204
      %1207 = vrot.lane.b32.xlu0 %v719, 79
      %v1208 = vpop.permute.xlu0 %1207
      %1209 = vrot.lane.b32.xlu0 %v721, 79
      %v1210 = vpop.permute.xlu0 %1209
      %1211 = vrot.lane.b32.xlu0 %v723, 79
      %v1212 = vpop.permute.xlu0 %1211
      %1213 = vrot.lane.b32.xlu0 %v725, 79
      %v1214 = vpop.permute.xlu0 %1213
      %1215 = vrot.lane.b32.xlu0 %v727, 79
      %v1216 = vpop.permute.xlu0 %1215
      %1217 = vrot.lane.b32.xlu0 %v1206, 79
      %v1218 = vpop.permute.xlu0 %1217
      %vm1219 = vcmask 646144
      %v1220 = vsel %vm1219, %v1208, %v1210
      %v1221 = vsel %vm1219, %v1210, %v1212
      %v1222 = vsel %vm1219, %v1212, %v1214
      %v1223 = vsel %vm1219, %v1214, %v1216
      %v1224 = vsel %vm1219, %v1216, %v1218
      %v1230 = vcombine.high %v525, %v525
      %1231 = vrot.lane.b32.xlu0 %v515, 78
      %v1232 = vpop.permute.xlu0 %1231
      %1233 = vrot.lane.b32.xlu0 %v748, 78
      %v1234 = vpop.permute.xlu0 %1233
      %1235 = vrot.lane.b32.xlu0 %v371, 78
      %v1236 = vpop.permute.xlu0 %1235
      %1237 = vrot.lane.b32.xlu0 %v379, 78
      %v1238 = vpop.permute.xlu0 %1237
      %1239 = vrot.lane.b32.xlu0 %v525, 78
      %v1240 = vpop.permute.xlu0 %1239
      %1241 = vrot.lane.b32.xlu0 %v1230, 78
      %v1242 = vpop.permute.xlu0 %1241
      %vm1243 = vcmask 637952
      %v1244 = vsel %vm1243, %v1232, %v1234
      %v1245 = vsel %vm1243, %v1234, %v1236
      %v1246 = vsel %vm1243, %v1236, %v1238
      %v1247 = vsel %vm1243, %v1238, %v1240
      %v1248 = vsel %vm1243, %v1240, %v1242
      %v1249 = vrot.slane %v1201, 4
      %v1250 = vrot.slane %v1204, 5
      %v1251 = vor.u32 %v1249, %v1250
      %1252 = vrot.lane.b32.xlu0 %v766, 77
      %v1253 = vpop.permute.xlu0 %1252
      %1254 = vrot.lane.b32.xlu0 %v769, 77
      %v1255 = vpop.permute.xlu0 %1254
      %1256 = vrot.lane.b32.xlu0 %v772, 77
      %v1257 = vpop.permute.xlu0 %1256
      %1258 = vrot.lane.b32.xlu0 %v775, 77
      %v1259 = vpop.permute.xlu0 %1258
      %1260 = vrot.lane.b32.xlu0 %v778, 77
      %v1261 = vpop.permute.xlu0 %1260
      %1262 = vrot.lane.b32.xlu0 %v1251, 77
      %v1263 = vpop.permute.xlu0 %1262
      %vm1264 = vcmask 629760
      %v1265 = vsel %vm1264, %v1253, %v1255
      %v1266 = vsel %vm1264, %v1255, %v1257
      %v1267 = vsel %vm1264, %v1257, %v1259
      %v1268 = vsel %vm1264, %v1259, %v1261
      %v1269 = vsel %vm1264, %v1261, %v1263
      %v1275 = vrot.slane %v1199, 3
      %1276 = vrot.lane.b32.xlu0 %v799, 76
      %v1277 = vpop.permute.xlu0 %1276
      %1278 = vrot.lane.b32.xlu0 %v800, 76
      %v1279 = vpop.permute.xlu0 %1278
      %1280 = vrot.lane.b32.xlu0 %v801, 76
      %v1281 = vpop.permute.xlu0 %1280
      %1282 = vrot.lane.b32.xlu0 %v802, 76
      %v1283 = vpop.permute.xlu0 %1282
      %1284 = vrot.lane.b32.xlu0 %v803, 76
      %v1285 = vpop.permute.xlu0 %1284
      %1286 = vrot.lane.b32.xlu0 %v1275, 76
      %v1287 = vpop.permute.xlu0 %1286
      %vm1288 = vcmask 621568
      %v1289 = vsel %vm1288, %v1277, %v1279
      %v1290 = vsel %vm1288, %v1279, %v1281
      %v1291 = vsel %vm1288, %v1281, %v1283
      %v1292 = vsel %vm1288, %v1283, %v1285
      %v1293 = vsel %vm1288, %v1285, %v1287
      %v1294 = vrot.slane %v1201, 1
      %v1295 = vrot.slane %v1204, 2
      %v1296 = vor.u32 %v1294, %v1295
      %1297 = vrot.lane.b32.xlu0 %v821, 75
      %v1298 = vpop.permute.xlu0 %1297
      %1299 = vrot.lane.b32.xlu0 %v824, 75
      %v1300 = vpop.permute.xlu0 %1299
      %1301 = vrot.lane.b32.xlu0 %v827, 75
      %v1302 = vpop.permute.xlu0 %1301
      %1303 = vrot.lane.b32.xlu0 %v830, 75
      %v1304 = vpop.permute.xlu0 %1303
      %1305 = vrot.lane.b32.xlu0 %v833, 75
      %v1306 = vpop.permute.xlu0 %1305
      %1307 = vrot.lane.b32.xlu0 %v1296, 75
      %v1308 = vpop.permute.xlu0 %1307
      %vm1309 = vcmask 613376
      %v1310 = vsel %vm1309, %v1298, %v1300
      %v1311 = vsel %vm1309, %v1300, %v1302
      %v1312 = vsel %vm1309, %v1302, %v1304
      %v1313 = vsel %vm1309, %v1304, %v1306
      %v1314 = vsel %vm1309, %v1306, %v1308
      %v1321 = vsel %vm862, %v857, %v1076
      %v1324 = vsel %vm862, %v858, %v1077
      %v1327 = vsel %vm862, %v859, %v1078
      %v1330 = vsel %vm862, %v860, %v1079
      %v1333 = vsel %vm862, %v861, %v1074
      %v1335 = vsel %vm885, %v1321, %v1091
      %v1336 = vsel %vm885, %v1324, %v1092
      %v1337 = vsel %vm885, %v1327, %v1093
      %v1338 = vsel %vm885, %v1330, %v1094
      %v1339 = vsel %vm885, %v1333, %v1089
      %v1342 = vsel %vm891, %v1335, %v1111
      %v1346 = vsel %vm891, %v1336, %v1112
      %v1350 = vsel %vm891, %v1337, %v1113
      %v1354 = vsel %vm891, %v1338, %v1114
      %v1358 = vsel %vm891, %v1339, %v1109
      %v1360 = vsel %vm914, %v1342, %v1136
      %v1361 = vsel %vm914, %v1346, %v1137
      %v1362 = vsel %vm914, %v1350, %v1138
      %v1363 = vsel %vm914, %v1354, %v1139
      %v1364 = vsel %vm914, %v1358, %v1124
      %v1367 = vsel %vm920, %v1140, %v1160
      %v1371 = vsel %vm920, %v1141, %v1161
      %v1375 = vsel %vm920, %v1142, %v1162
      %v1379 = vsel %vm920, %v1143, %v1163
      %v1383 = vsel %vm920, %v1134, %v1158
      %v1385 = vsel %vm943, %v1367, %v1175
      %v1386 = vsel %vm943, %v1371, %v1176
      %v1387 = vsel %vm943, %v1375, %v1177
      %v1388 = vsel %vm943, %v1379, %v1178
      %v1389 = vsel %vm943, %v1383, %v1173
      %v1392 = vsel %vm949, %v1385, %v1195
      %v1396 = vsel %vm949, %v1386, %v1196
      %v1400 = vsel %vm949, %v1387, %v1197
      %v1404 = vsel %vm949, %v1388, %v1198
      %v1408 = vsel %vm949, %v1389, %v1193
      %v1410 = vsel %vm972, %v1392, %v684
      %v1411 = vsel %vm972, %v1396, %v685
      %v1412 = vsel %vm972, %v1400, %v686
      %v1413 = vsel %vm972, %v1404, %v687
      %v1414 = vsel %vm972, %v1408, %v682
      %v1416 = vsel %vm978, %v1410, %v709
      %v1418 = vsel %vm978, %v1411, %v710
      %v1420 = vsel %vm978, %v1412, %v711
      %v1422 = vsel %vm978, %v1413, %v712
      %v1424 = vsel %vm978, %v1414, %v707
      %v1425 = vsel %vm1001, %v709, %v1220
      %v1426 = vsel %vm1001, %v710, %v1221
      %v1427 = vsel %vm1001, %v711, %v1222
      %v1428 = vsel %vm1001, %v712, %v1223
      %v1429 = vsel %vm1001, %v707, %v1224
      %v1432 = vsel %vm1007, %v1425, %v1244
      %v1436 = vsel %vm1007, %v1426, %v1245
      %v1440 = vsel %vm1007, %v1427, %v1246
      %v1444 = vsel %vm1007, %v1428, %v1247
      %v1448 = vsel %vm1007, %v1429, %v1248
      %v1450 = vsel %vm1030, %v1432, %v1265
      %v1451 = vsel %vm1030, %v1436, %v1266
      %v1452 = vsel %vm1030, %v1440, %v1267
      %v1453 = vsel %vm1030, %v1444, %v1268
      %v1454 = vsel %vm1030, %v1448, %v1269
      %v1457 = vsel %vm1036, %v1450, %v1289
      %v1461 = vsel %vm1036, %v1451, %v1290
      %v1465 = vsel %vm1036, %v1452, %v1291
      %v1469 = vsel %vm1036, %v1453, %v1292
      %v1473 = vsel %vm1036, %v1454, %v1293
      %v1475 = vsel %vm1059, %v1457, %v1310
      %v1476 = vsel %vm1059, %v1461, %v1311
      %v1477 = vsel %vm1059, %v1465, %v1312
      %v1478 = vsel %vm1059, %v1469, %v1313
      %v1479 = vsel %vm1059, %v1473, %v1314
      %v1481 = vrot.slane %v1201, 6
      %v1482 = vrot.slane %v1204, 7
      %v1483 = vor.u32 %v1481, %v1482
      %1484 = vrot.lane.b32.xlu0 %v1483, 127
      %v1485 = vpop.permute.xlu0 %1484
      %v1486 = vsel %vm443, %v442, %v1485
      %v1489 = vrot.slane %v1199, 5
      %1490 = vrot.lane.b32.xlu0 %v1489, 126
      %v1491 = vpop.permute.xlu0 %1490
      %v1492 = vsel %vm468, %v467, %v1491
      %v1493 = vrot.slane %v1201, 3
      %v1494 = vrot.slane %v1204, 4
      %v1495 = vor.u32 %v1493, %v1494
      %1496 = vrot.lane.b32.xlu0 %v1495, 125
      %v1497 = vpop.permute.xlu0 %1496
      %v1498 = vsel %vm498, %v497, %v1497
      %1501 = vrot.lane.b32.xlu0 %v525, 105
      %v1502 = vpop.permute.xlu0 %1501
      %v1503 = vsel %vm1110, %v1109, %v1502
      %v1504 = vrot.slane %v1204, 1
      %v1505 = vor.u32 %v1201, %v1504
      %1506 = vrot.lane.b32.xlu0 %v1504, 104
      %v1507 = vpop.permute.xlu0 %1506
      %1508 = vrot.lane.b32.xlu0 %v1505, 104
      %v1509 = vpop.permute.xlu0 %1508
      %v1510 = vsel %vm1135, %v1124, %v1507
      %v1511 = vsel %vm1135, %v1134, %v1509
      %v1514 = vrot.slane %v1199, 7
      %1515 = vrot.lane.b32.xlu0 %v1514, 103
      %v1516 = vpop.permute.xlu0 %1515
      %v1517 = vsel %vm1159, %v1158, %v1516
      %v1518 = vrot.slane %v1201, 5
      %v1519 = vrot.slane %v1204, 6
      %v1520 = vor.u32 %v1518, %v1519
      %1521 = vrot.lane.b32.xlu0 %v1520, 102
      %v1522 = vpop.permute.xlu0 %1521
      %v1523 = vsel %vm1174, %v1173, %v1522
      %1526 = vrot.lane.b32.xlu0 %v387, 101
      %v1527 = vpop.permute.xlu0 %1526
      %v1528 = vsel %vm1194, %v1193, %v1527
      %v1529 = vrot.slane %v1201, 2
      %v1530 = vrot.slane %v1204, 3
      %v1531 = vor.u32 %v1529, %v1530
      %1532 = vrot.lane.b32.xlu0 %v1531, 100
      %v1533 = vpop.permute.xlu0 %1532
      %v1534 = vsel %vm683, %v682, %v1533
      %v1537 = vrot.slane %v1199, 1
      %1538 = vrot.lane.b32.xlu0 %v1537, 99
      %v1539 = vpop.permute.xlu0 %1538
      %v1540 = vsel %vm708, %v707, %v1539
      %1543 = vrot.lane.b32.xlu0 %v1206, 98
      %v1544 = vpop.permute.xlu0 %1543
      %v1545 = vsel %vm738, %v737, %v1544
      %1548 = vrot.lane.b32.xlu0 %v1230, 97
      %v1549 = vpop.permute.xlu0 %1548
      %v1550 = vsel %vm759, %v758, %v1549
      %v1555 = vsel %vm856, %v387, %v1486
      %v1556 = vsel %vm856, %v1199, %v1485
      %v1559 = vsel %vm862, %v1555, %v1492
      %v1563 = vsel %vm862, %v1556, %v1491
      %v1565 = vsel %vm885, %v1559, %v1498
      %v1566 = vsel %vm885, %v1563, %v1497
      %v1567 = vsel %vm891, %v886, %v1111
      %v1569 = vsel %vm891, %v887, %v1112
      %v1571 = vsel %vm891, %v888, %v1113
      %v1573 = vsel %vm891, %v889, %v1114
      %v1577 = vsel %vm891, %v1565, %v1503
      %v1581 = vsel %vm891, %v1566, %v1502
      %v1583 = vsel %vm914, %v1567, %v1136
      %v1584 = vsel %vm914, %v1569, %v1137
      %v1585 = vsel %vm914, %v1571, %v1138
      %v1586 = vsel %vm914, %v1573, %v1139
      %v1587 = vsel %vm914, %v1577, %v1510
      %v1588 = vsel %vm914, %v1581, %v1507
      %v1591 = vsel %vm920, %v1511, %v1517
      %v1595 = vsel %vm920, %v1509, %v1516
      %v1597 = vsel %vm943, %v1591, %v1523
      %v1598 = vsel %vm943, %v1595, %v1522
      %v1601 = vsel %vm949, %v1597, %v1528
      %v1605 = vsel %vm949, %v1598, %v1527
      %v1607 = vsel %vm972, %v1601, %v1534
      %v1608 = vsel %vm972, %v1605, %v1533
      %v1611 = vsel %vm978, %v1607, %v1540
      %v1614 = vsel %vm978, %v1608, %v1539
      %v1615 = vsel %vm1001, %v1540, %v1545
      %v1616 = vsel %vm1001, %v1539, %v1544
      %v1619 = vsel %vm1007, %v1615, %v1550
      %v1623 = vsel %vm1007, %v1616, %v1549
      %v1625 = vsel %vm1030, %v1010, %v1255
      %v1626 = vsel %vm1030, %v1014, %v1266
      %v1627 = vsel %vm1030, %v1018, %v1267
      %v1628 = vsel %vm1030, %v1022, %v1268
      %v1629 = vsel %vm1030, %v1619, %v1269
      %v1630 = vsel %vm1030, %v1623, %v1263
      %v1633 = vsel %vm1036, %v1625, %v1279
      %v1636 = vsel %vm1036, %v1626, %v1290
      %v1639 = vsel %vm1036, %v1627, %v1291
      %v1642 = vsel %vm1036, %v1628, %v1292
      %v1645 = vsel %vm1036, %v1629, %v1293
      %v1649 = vsel %vm1036, %v1630, %v1287
      %v1651 = vsel %vm1059, %v1633, %v1300
      %v1652 = vsel %vm1059, %v1636, %v1311
      %v1653 = vsel %vm1059, %v1639, %v1312
      %v1654 = vsel %vm1059, %v1642, %v1313
      %v1655 = vsel %vm1059, %v1645, %v1314
      %v1656 = vsel %vm1059, %v1649, %v1308
      %1657 = vrot.lane.b32.xlu0 %v379, 113
      %v1658 = vpop.permute.xlu0 %1657
      %1659 = vrot.lane.b32.xlu0 %v378, 113
      %v1660 = vpop.permute.xlu0 %1659
      %1661 = vrot.lane.b32.xlu0 %v380, 113
      %v1662 = vpop.permute.xlu0 %1661
      %1663 = vrot.lane.b32.xlu0 %v387, 113
      %v1664 = vpop.permute.xlu0 %1663
      %1665 = vrot.lane.b32.xlu0 %v1199, 113
      %v1666 = vpop.permute.xlu0 %1665
      %vm1667 = vcmask 924672
      %v1668 = vsel %vm1667, %v1658, %v1660
      %v1669 = vsel %vm1667, %v1660, %v1662
      %v1670 = vsel %vm1667, %v1662, %v1664
      %v1671 = vsel %vm1667, %v1664, %v1666
      %1677 = vrot.lane.b32.xlu0 %v408, 112
      %v1678 = vpop.permute.xlu0 %1677
      %1679 = vrot.lane.b32.xlu0 %v416, 112
      %v1680 = vpop.permute.xlu0 %1679
      %1681 = vrot.lane.b32.xlu0 %v424, 112
      %v1682 = vpop.permute.xlu0 %1681
      %1683 = vrot.lane.b32.xlu0 %v432, 112
      %v1684 = vpop.permute.xlu0 %1683
      %1685 = vrot.lane.b32.xlu0 %v1483, 112
      %v1686 = vpop.permute.xlu0 %1685
      %vm1687 = vcmask 916480
      %v1688 = vsel %vm1687, %v1678, %v1680
      %v1689 = vsel %vm1687, %v1680, %v1682
      %v1690 = vsel %vm1687, %v1682, %v1684
      %v1691 = vsel %vm1687, %v1684, %v1686
      %1697 = vrot.lane.b32.xlu0 %v454, 111
      %v1698 = vpop.permute.xlu0 %1697
      %1699 = vrot.lane.b32.xlu0 %v455, 111
      %v1700 = vpop.permute.xlu0 %1699
      %1701 = vrot.lane.b32.xlu0 %v456, 111
      %v1702 = vpop.permute.xlu0 %1701
      %1703 = vrot.lane.b32.xlu0 %v457, 111
      %v1704 = vpop.permute.xlu0 %1703
      %1705 = vrot.lane.b32.xlu0 %v1489, 111
      %v1706 = vpop.permute.xlu0 %1705
      %vm1707 = vcmask 908288
      %v1708 = vsel %vm1707, %v1698, %v1700
      %v1709 = vsel %vm1707, %v1700, %v1702
      %v1710 = vsel %vm1707, %v1702, %v1704
      %v1711 = vsel %vm1707, %v1704, %v1706
      %1712 = vrot.lane.b32.xlu0 %v478, 110
      %v1713 = vpop.permute.xlu0 %1712
      %1714 = vrot.lane.b32.xlu0 %v481, 110
      %v1715 = vpop.permute.xlu0 %1714
      %1716 = vrot.lane.b32.xlu0 %v484, 110
      %v1717 = vpop.permute.xlu0 %1716
      %1718 = vrot.lane.b32.xlu0 %v487, 110
      %v1719 = vpop.permute.xlu0 %1718
      %1720 = vrot.lane.b32.xlu0 %v1495, 110
      %v1721 = vpop.permute.xlu0 %1720
      %vm1722 = vcmask 900096
      %v1723 = vsel %vm1722, %v1713, %v1715
      %v1724 = vsel %vm1722, %v1715, %v1717
      %v1725 = vsel %vm1722, %v1717, %v1719
      %v1726 = vsel %vm1722, %v1719, %v1721
      %1732 = vrot.lane.b32.xlu0 %v515, 109
      %v1733 = vpop.permute.xlu0 %1732
      %1734 = vrot.lane.b32.xlu0 %v517, 109
      %v1735 = vpop.permute.xlu0 %1734
      %1736 = vrot.lane.b32.xlu0 %v371, 109
      %v1737 = vpop.permute.xlu0 %1736
      %1738 = vrot.lane.b32.xlu0 %v526, 109
      %v1739 = vpop.permute.xlu0 %1738
      %1740 = vrot.lane.b32.xlu0 %v525, 109
      %v1741 = vpop.permute.xlu0 %1740
      %vm1742 = vcmask 891904
      %v1743 = vsel %vm1742, %v1733, %v1735
      %v1744 = vsel %vm1742, %v1735, %v1737
      %v1745 = vsel %vm1742, %v1737, %v1739
      %v1746 = vsel %vm1742, %v1739, %v1741
      %1747 = vrot.lane.b32.xlu0 %v543, 108
      %v1748 = vpop.permute.xlu0 %1747
      %1749 = vrot.lane.b32.xlu0 %v544, 108
      %v1750 = vpop.permute.xlu0 %1749
      %1751 = vrot.lane.b32.xlu0 %v545, 108
      %v1752 = vpop.permute.xlu0 %1751
      %1753 = vrot.lane.b32.xlu0 %v546, 108
      %v1754 = vpop.permute.xlu0 %1753
      %1755 = vrot.lane.b32.xlu0 %v1504, 108
      %v1756 = vpop.permute.xlu0 %1755
      %1757 = vrot.lane.b32.xlu0 %v548, 108
      %v1758 = vpop.permute.xlu0 %1757
      %1759 = vrot.lane.b32.xlu0 %v549, 108
      %v1760 = vpop.permute.xlu0 %1759
      %1761 = vrot.lane.b32.xlu0 %v550, 108
      %v1762 = vpop.permute.xlu0 %1761
      %1763 = vrot.lane.b32.xlu0 %v551, 108
      %v1764 = vpop.permute.xlu0 %1763
      %1765 = vrot.lane.b32.xlu0 %v1505, 108
      %v1766 = vpop.permute.xlu0 %1765
      %vm1767 = vcmask 883712
      %v1768 = vsel %vm1767, %v1748, %v1750
      %v1769 = vsel %vm1767, %v1750, %v1752
      %v1770 = vsel %vm1767, %v1752, %v1754
      %v1771 = vsel %vm1767, %v1754, %v1756
      %v1772 = vsel %vm1767, %v1758, %v1760
      %v1773 = vsel %vm1767, %v1760, %v1762
      %v1774 = vsel %vm1767, %v1762, %v1764
      %v1775 = vsel %vm1767, %v1764, %v1766
      %1781 = vrot.lane.b32.xlu0 %v587, 88
      %v1782 = vpop.permute.xlu0 %1781
      %1783 = vrot.lane.b32.xlu0 %v588, 88
      %v1784 = vpop.permute.xlu0 %1783
      %1785 = vrot.lane.b32.xlu0 %v589, 88
      %v1786 = vpop.permute.xlu0 %1785
      %1787 = vrot.lane.b32.xlu0 %v590, 88
      %v1788 = vpop.permute.xlu0 %1787
      %1789 = vrot.lane.b32.xlu0 %v1514, 88
      %v1790 = vpop.permute.xlu0 %1789
      %vm1791 = vcmask 719872
      %v1792 = vsel %vm1791, %v1782, %v1784
      %v1793 = vsel %vm1791, %v1784, %v1786
      %v1794 = vsel %vm1791, %v1786, %v1788
      %v1795 = vsel %vm1791, %v1788, %v1790
      %1796 = vrot.lane.b32.xlu0 %v611, 87
      %v1797 = vpop.permute.xlu0 %1796
      %1798 = vrot.lane.b32.xlu0 %v614, 87
      %v1799 = vpop.permute.xlu0 %1798
      %1800 = vrot.lane.b32.xlu0 %v617, 87
      %v1801 = vpop.permute.xlu0 %1800
      %1802 = vrot.lane.b32.xlu0 %v620, 87
      %v1803 = vpop.permute.xlu0 %1802
      %1804 = vrot.lane.b32.xlu0 %v1520, 87
      %v1805 = vpop.permute.xlu0 %1804
      %vm1806 = vcmask 711680
      %v1807 = vsel %vm1806, %v1797, %v1799
      %v1808 = vsel %vm1806, %v1799, %v1801
      %v1809 = vsel %vm1806, %v1801, %v1803
      %v1810 = vsel %vm1806, %v1803, %v1805
      %1816 = vrot.lane.b32.xlu0 %v371, 86
      %v1817 = vpop.permute.xlu0 %1816
      %1818 = vrot.lane.b32.xlu0 %v641, 86
      %v1819 = vpop.permute.xlu0 %1818
      %1820 = vrot.lane.b32.xlu0 %v378, 86
      %v1821 = vpop.permute.xlu0 %1820
      %1822 = vrot.lane.b32.xlu0 %v642, 86
      %v1823 = vpop.permute.xlu0 %1822
      %1824 = vrot.lane.b32.xlu0 %v387, 86
      %v1825 = vpop.permute.xlu0 %1824
      %vm1826 = vcmask 703488
      %v1827 = vsel %vm1826, %v1817, %v1819
      %v1828 = vsel %vm1826, %v1819, %v1821
      %v1829 = vsel %vm1826, %v1821, %v1823
      %v1830 = vsel %vm1826, %v1823, %v1825
      %1831 = vrot.lane.b32.xlu0 %v663, 85
      %v1832 = vpop.permute.xlu0 %1831
      %1833 = vrot.lane.b32.xlu0 %v666, 85
      %v1834 = vpop.permute.xlu0 %1833
      %1835 = vrot.lane.b32.xlu0 %v669, 85
      %v1836 = vpop.permute.xlu0 %1835
      %1837 = vrot.lane.b32.xlu0 %v672, 85
      %v1838 = vpop.permute.xlu0 %1837
      %1839 = vrot.lane.b32.xlu0 %v1531, 85
      %v1840 = vpop.permute.xlu0 %1839
      %vm1841 = vcmask 695296
      %v1842 = vsel %vm1841, %v1832, %v1834
      %v1843 = vsel %vm1841, %v1834, %v1836
      %v1844 = vsel %vm1841, %v1836, %v1838
      %v1845 = vsel %vm1841, %v1838, %v1840
      %1851 = vrot.lane.b32.xlu0 %v694, 84
      %v1852 = vpop.permute.xlu0 %1851
      %1853 = vrot.lane.b32.xlu0 %v695, 84
      %v1854 = vpop.permute.xlu0 %1853
      %1855 = vrot.lane.b32.xlu0 %v696, 84
      %v1856 = vpop.permute.xlu0 %1855
      %1857 = vrot.lane.b32.xlu0 %v697, 84
      %v1858 = vpop.permute.xlu0 %1857
      %1859 = vrot.lane.b32.xlu0 %v1537, 84
      %v1860 = vpop.permute.xlu0 %1859
      %vm1861 = vcmask 687104
      %v1862 = vsel %vm1861, %v1852, %v1854
      %v1863 = vsel %vm1861, %v1854, %v1856
      %v1864 = vsel %vm1861, %v1856, %v1858
      %v1865 = vsel %vm1861, %v1858, %v1860
      %1871 = vrot.lane.b32.xlu0 %v721, 83
      %v1872 = vpop.permute.xlu0 %1871
      %1873 = vrot.lane.b32.xlu0 %v723, 83
      %v1874 = vpop.permute.xlu0 %1873
      %1875 = vrot.lane.b32.xlu0 %v725, 83
      %v1876 = vpop.permute.xlu0 %1875
      %1877 = vrot.lane.b32.xlu0 %v727, 83
      %v1878 = vpop.permute.xlu0 %1877
      %1879 = vrot.lane.b32.xlu0 %v1206, 83
      %v1880 = vpop.permute.xlu0 %1879
      %vm1881 = vcmask 678912
      %v1882 = vsel %vm1881, %v1872, %v1874
      %v1883 = vsel %vm1881, %v1874, %v1876
      %v1884 = vsel %vm1881, %v1876, %v1878
      %v1885 = vsel %vm1881, %v1878, %v1880
      %1891 = vrot.lane.b32.xlu0 %v748, 82
      %v1892 = vpop.permute.xlu0 %1891
      %1893 = vrot.lane.b32.xlu0 %v371, 82
      %v1894 = vpop.permute.xlu0 %1893
      %1895 = vrot.lane.b32.xlu0 %v379, 82
      %v1896 = vpop.permute.xlu0 %1895
      %1897 = vrot.lane.b32.xlu0 %v525, 82
      %v1898 = vpop.permute.xlu0 %1897
      %1899 = vrot.lane.b32.xlu0 %v1230, 82
      %v1900 = vpop.permute.xlu0 %1899
      %vm1901 = vcmask 670720
      %v1902 = vsel %vm1901, %v1892, %v1894
      %v1903 = vsel %vm1901, %v1894, %v1896
      %v1904 = vsel %vm1901, %v1896, %v1898
      %v1905 = vsel %vm1901, %v1898, %v1900
      %1906 = vrot.lane.b32.xlu0 %v769, 81
      %v1907 = vpop.permute.xlu0 %1906
      %1908 = vrot.lane.b32.xlu0 %v772, 81
      %v1909 = vpop.permute.xlu0 %1908
      %1910 = vrot.lane.b32.xlu0 %v775, 81
      %v1911 = vpop.permute.xlu0 %1910
      %1912 = vrot.lane.b32.xlu0 %v778, 81
      %v1913 = vpop.permute.xlu0 %1912
      %1914 = vrot.lane.b32.xlu0 %v1251, 81
      %v1915 = vpop.permute.xlu0 %1914
      %vm1916 = vcmask 662528
      %v1917 = vsel %vm1916, %v1907, %v1909
      %v1918 = vsel %vm1916, %v1909, %v1911
      %v1919 = vsel %vm1916, %v1911, %v1913
      %v1920 = vsel %vm1916, %v1913, %v1915
      %1926 = vrot.lane.b32.xlu0 %v800, 80
      %v1927 = vpop.permute.xlu0 %1926
      %1928 = vrot.lane.b32.xlu0 %v801, 80
      %v1929 = vpop.permute.xlu0 %1928
      %1930 = vrot.lane.b32.xlu0 %v802, 80
      %v1931 = vpop.permute.xlu0 %1930
      %1932 = vrot.lane.b32.xlu0 %v803, 80
      %v1933 = vpop.permute.xlu0 %1932
      %1934 = vrot.lane.b32.xlu0 %v1275, 80
      %v1935 = vpop.permute.xlu0 %1934
      %vm1936 = vcmask 654336
      %v1937 = vsel %vm1936, %v1927, %v1929
      %v1938 = vsel %vm1936, %v1929, %v1931
      %v1939 = vsel %vm1936, %v1931, %v1933
      %v1940 = vsel %vm1936, %v1933, %v1935
      %1941 = vrot.lane.b32.xlu0 %v824, 60
      %v1942 = vpop.permute.xlu0 %1941
      %1943 = vrot.lane.b32.xlu0 %v827, 60
      %v1944 = vpop.permute.xlu0 %1943
      %1945 = vrot.lane.b32.xlu0 %v830, 60
      %v1946 = vpop.permute.xlu0 %1945
      %1947 = vrot.lane.b32.xlu0 %v833, 60
      %v1948 = vpop.permute.xlu0 %1947
      %1949 = vrot.lane.b32.xlu0 %v1296, 60
      %v1950 = vpop.permute.xlu0 %1949
      %vm1951 = vcmask 490496
      %v1952 = vsel %vm1951, %v1942, %v1944
      %v1953 = vsel %vm1951, %v1944, %v1946
      %v1954 = vsel %vm1951, %v1946, %v1948
      %v1955 = vsel %vm1951, %v1948, %v1950
      %v1961 = vsel %vm856, %v1668, %v1688
      %v1962 = vsel %vm856, %v1669, %v1689
      %v1963 = vsel %vm856, %v1670, %v1690
      %v1964 = vsel %vm856, %v1671, %v1691
      %v1965 = vsel %vm856, %v1666, %v1686
      %v1968 = vsel %vm862, %v1961, %v1708
      %v1972 = vsel %vm862, %v1962, %v1709
      %v1976 = vsel %vm862, %v1963, %v1710
      %v1980 = vsel %vm862, %v1964, %v1711
      %v1984 = vsel %vm862, %v1965, %v1706
      %v1986 = vsel %vm885, %v1968, %v1723
      %v1987 = vsel %vm885, %v1972, %v1724
      %v1988 = vsel %vm885, %v1976, %v1725
      %v1989 = vsel %vm885, %v1980, %v1726
      %v1990 = vsel %vm885, %v1984, %v1721
      %v1993 = vsel %vm891, %v1986, %v1743
      %v1997 = vsel %vm891, %v1987, %v1744
      %v2001 = vsel %vm891, %v1988, %v1745
      %v2005 = vsel %vm891, %v1989, %v1746
      %v2009 = vsel %vm891, %v1990, %v1741
      %v2011 = vsel %vm914, %v1993, %v1768
      %v2012 = vsel %vm914, %v1997, %v1769
      %v2013 = vsel %vm914, %v2001, %v1770
      %v2014 = vsel %vm914, %v2005, %v1771
      %v2015 = vsel %vm914, %v2009, %v1756
      %v2018 = vsel %vm920, %v1772, %v1792
      %v2022 = vsel %vm920, %v1773, %v1793
      %v2026 = vsel %vm920, %v1774, %v1794
      %v2030 = vsel %vm920, %v1775, %v1795
      %v2034 = vsel %vm920, %v1766, %v1790
      %v2036 = vsel %vm943, %v2018, %v1807
      %v2037 = vsel %vm943, %v2022, %v1808
      %v2038 = vsel %vm943, %v2026, %v1809
      %v2039 = vsel %vm943, %v2030, %v1810
      %v2040 = vsel %vm943, %v2034, %v1805
      %v2043 = vsel %vm949, %v2036, %v1827
      %v2047 = vsel %vm949, %v2037, %v1828
      %v2051 = vsel %vm949, %v2038, %v1829
      %v2055 = vsel %vm949, %v2039, %v1830
      %v2059 = vsel %vm949, %v2040, %v1825
      %v2061 = vsel %vm972, %v2043, %v1842
      %v2062 = vsel %vm972, %v2047, %v1843
      %v2063 = vsel %vm972, %v2051, %v1844
      %v2064 = vsel %vm972, %v2055, %v1845
      %v2065 = vsel %vm972, %v2059, %v1840
      %v2068 = vsel %vm978, %v2061, %v1862
      %v2072 = vsel %vm978, %v2062, %v1863
      %v2076 = vsel %vm978, %v2063, %v1864
      %v2080 = vsel %vm978, %v2064, %v1865
      %v2084 = vsel %vm978, %v2065, %v1860
      %v2086 = vsel %vm1001, %v1862, %v1882
      %v2087 = vsel %vm1001, %v1863, %v1883
      %v2088 = vsel %vm1001, %v1864, %v1884
      %v2089 = vsel %vm1001, %v1865, %v1885
      %v2090 = vsel %vm1001, %v1860, %v1880
      %v2093 = vsel %vm1007, %v2086, %v1902
      %v2097 = vsel %vm1007, %v2087, %v1903
      %v2101 = vsel %vm1007, %v2088, %v1904
      %v2105 = vsel %vm1007, %v2089, %v1905
      %v2109 = vsel %vm1007, %v2090, %v1900
      %v2111 = vsel %vm1030, %v2093, %v1917
      %v2112 = vsel %vm1030, %v2097, %v1918
      %v2113 = vsel %vm1030, %v2101, %v1919
      %v2114 = vsel %vm1030, %v2105, %v1920
      %v2115 = vsel %vm1030, %v2109, %v1915
      %v2118 = vsel %vm1036, %v2111, %v1937
      %v2122 = vsel %vm1036, %v2112, %v1938
      %v2126 = vsel %vm1036, %v2113, %v1939
      %v2130 = vsel %vm1036, %v2114, %v1940
      %v2134 = vsel %vm1036, %v2115, %v1935
      %v2136 = vsel %vm1059, %v2118, %v1952
      %v2137 = vsel %vm1059, %v2122, %v1953
      %v2138 = vsel %vm1059, %v2126, %v1954
      %v2139 = vsel %vm1059, %v2130, %v1955
      %v2140 = vsel %vm1059, %v2134, %v1950
      %2141 = vrot.lane.b32.xlu0 %v379, 59
      %v2142 = vpop.permute.xlu0 %2141
      %2143 = vrot.lane.b32.xlu0 %v378, 59
      %v2144 = vpop.permute.xlu0 %2143
      %2145 = vrot.lane.b32.xlu0 %v380, 59
      %v2146 = vpop.permute.xlu0 %2145
      %2147 = vrot.lane.b32.xlu0 %v387, 59
      %v2148 = vpop.permute.xlu0 %2147
      %2149 = vrot.lane.b32.xlu0 %v1199, 59
      %v2150 = vpop.permute.xlu0 %2149
      %vm2151 = vcmask 482304
      %v2152 = vsel %vm2151, %v2142, %v2144
      %v2153 = vsel %vm2151, %v2144, %v2146
      %v2154 = vsel %vm2151, %v2146, %v2148
      %v2155 = vsel %vm2151, %v2148, %v2150
      %2161 = vrot.lane.b32.xlu0 %v408, 58
      %v2162 = vpop.permute.xlu0 %2161
      %2163 = vrot.lane.b32.xlu0 %v416, 58
      %v2164 = vpop.permute.xlu0 %2163
      %2165 = vrot.lane.b32.xlu0 %v424, 58
      %v2166 = vpop.permute.xlu0 %2165
      %2167 = vrot.lane.b32.xlu0 %v432, 58
      %v2168 = vpop.permute.xlu0 %2167
      %2169 = vrot.lane.b32.xlu0 %v1483, 58
      %v2170 = vpop.permute.xlu0 %2169
      %vm2171 = vcmask 474112
      %v2172 = vsel %vm2171, %v2162, %v2164
      %v2173 = vsel %vm2171, %v2164, %v2166
      %v2174 = vsel %vm2171, %v2166, %v2168
      %v2175 = vsel %vm2171, %v2168, %v2170
      %2181 = vrot.lane.b32.xlu0 %v454, 57
      %v2182 = vpop.permute.xlu0 %2181
      %2183 = vrot.lane.b32.xlu0 %v455, 57
      %v2184 = vpop.permute.xlu0 %2183
      %2185 = vrot.lane.b32.xlu0 %v456, 57
      %v2186 = vpop.permute.xlu0 %2185
      %2187 = vrot.lane.b32.xlu0 %v457, 57
      %v2188 = vpop.permute.xlu0 %2187
      %2189 = vrot.lane.b32.xlu0 %v1489, 57
      %v2190 = vpop.permute.xlu0 %2189
      %vm2191 = vcmask 465920
      %v2192 = vsel %vm2191, %v2182, %v2184
      %v2193 = vsel %vm2191, %v2184, %v2186
      %v2194 = vsel %vm2191, %v2186, %v2188
      %v2195 = vsel %vm2191, %v2188, %v2190
      %2196 = vrot.lane.b32.xlu0 %v478, 56
      %v2197 = vpop.permute.xlu0 %2196
      %2198 = vrot.lane.b32.xlu0 %v481, 56
      %v2199 = vpop.permute.xlu0 %2198
      %2200 = vrot.lane.b32.xlu0 %v484, 56
      %v2201 = vpop.permute.xlu0 %2200
      %2202 = vrot.lane.b32.xlu0 %v487, 56
      %v2203 = vpop.permute.xlu0 %2202
      %2204 = vrot.lane.b32.xlu0 %v1495, 56
      %v2205 = vpop.permute.xlu0 %2204
      %vm2206 = vcmask 457728
      %v2207 = vsel %vm2206, %v2197, %v2199
      %v2208 = vsel %vm2206, %v2199, %v2201
      %v2209 = vsel %vm2206, %v2201, %v2203
      %v2210 = vsel %vm2206, %v2203, %v2205
      %2216 = vrot.lane.b32.xlu0 %v515, 55
      %v2217 = vpop.permute.xlu0 %2216
      %2218 = vrot.lane.b32.xlu0 %v517, 55
      %v2219 = vpop.permute.xlu0 %2218
      %2220 = vrot.lane.b32.xlu0 %v371, 55
      %v2221 = vpop.permute.xlu0 %2220
      %2222 = vrot.lane.b32.xlu0 %v526, 55
      %v2223 = vpop.permute.xlu0 %2222
      %2224 = vrot.lane.b32.xlu0 %v525, 55
      %v2225 = vpop.permute.xlu0 %2224
      %vm2226 = vcmask 449536
      %v2227 = vsel %vm2226, %v2217, %v2219
      %v2228 = vsel %vm2226, %v2219, %v2221
      %v2229 = vsel %vm2226, %v2221, %v2223
      %v2230 = vsel %vm2226, %v2223, %v2225
      %2231 = vrot.lane.b32.xlu0 %v543, 54
      %v2232 = vpop.permute.xlu0 %2231
      %2233 = vrot.lane.b32.xlu0 %v544, 54
      %v2234 = vpop.permute.xlu0 %2233
      %2235 = vrot.lane.b32.xlu0 %v545, 54
      %v2236 = vpop.permute.xlu0 %2235
      %2237 = vrot.lane.b32.xlu0 %v546, 54
      %v2238 = vpop.permute.xlu0 %2237
      %2239 = vrot.lane.b32.xlu0 %v1504, 54
      %v2240 = vpop.permute.xlu0 %2239
      %2241 = vrot.lane.b32.xlu0 %v548, 54
      %v2242 = vpop.permute.xlu0 %2241
      %2243 = vrot.lane.b32.xlu0 %v549, 54
      %v2244 = vpop.permute.xlu0 %2243
      %2245 = vrot.lane.b32.xlu0 %v550, 54
      %v2246 = vpop.permute.xlu0 %2245
      %2247 = vrot.lane.b32.xlu0 %v551, 54
      %v2248 = vpop.permute.xlu0 %2247
      %2249 = vrot.lane.b32.xlu0 %v1505, 54
      %v2250 = vpop.permute.xlu0 %2249
      %vm2251 = vcmask 441344
      %v2252 = vsel %vm2251, %v2232, %v2234
      %v2253 = vsel %vm2251, %v2234, %v2236
      %v2254 = vsel %vm2251, %v2236, %v2238
      %v2255 = vsel %vm2251, %v2238, %v2240
      %v2256 = vsel %vm2251, %v2242, %v2244
      %v2257 = vsel %vm2251, %v2244, %v2246
      %v2258 = vsel %vm2251, %v2246, %v2248
      %v2259 = vsel %vm2251, %v2248, %v2250
      %2265 = vrot.lane.b32.xlu0 %v587, 53
      %v2266 = vpop.permute.xlu0 %2265
      %2267 = vrot.lane.b32.xlu0 %v588, 53
      %v2268 = vpop.permute.xlu0 %2267
      %2269 = vrot.lane.b32.xlu0 %v589, 53
      %v2270 = vpop.permute.xlu0 %2269
      %2271 = vrot.lane.b32.xlu0 %v590, 53
      %v2272 = vpop.permute.xlu0 %2271
      %2273 = vrot.lane.b32.xlu0 %v1514, 53
      %v2274 = vpop.permute.xlu0 %2273
      %vm2275 = vcmask 433152
      %v2276 = vsel %vm2275, %v2266, %v2268
      %v2277 = vsel %vm2275, %v2268, %v2270
      %v2278 = vsel %vm2275, %v2270, %v2272
      %v2279 = vsel %vm2275, %v2272, %v2274
      %2280 = vrot.lane.b32.xlu0 %v611, 52
      %v2281 = vpop.permute.xlu0 %2280
      %2282 = vrot.lane.b32.xlu0 %v614, 52
      %v2283 = vpop.permute.xlu0 %2282
      %2284 = vrot.lane.b32.xlu0 %v617, 52
      %v2285 = vpop.permute.xlu0 %2284
      %2286 = vrot.lane.b32.xlu0 %v620, 52
      %v2287 = vpop.permute.xlu0 %2286
      %2288 = vrot.lane.b32.xlu0 %v1520, 52
      %v2289 = vpop.permute.xlu0 %2288
      %vm2290 = vcmask 424960
      %v2291 = vsel %vm2290, %v2281, %v2283
      %v2292 = vsel %vm2290, %v2283, %v2285
      %v2293 = vsel %vm2290, %v2285, %v2287
      %v2294 = vsel %vm2290, %v2287, %v2289
      %v2300 = vcombine.high %v361, %v361
      %v2302 = vunpack.c.l.s4 1983009808
      %v2303 = vunpack.c.0.s8 %v2302
      %v2304 = vlaneseq
      %v2305 = vshrl.u32 %v2304, 7
      %v2306 = vsub.s32 %v2303, %v2305
      %v2307 = vrot.slane %v2300, %v2306
      %v2308 = vcombine.low %v2307, %v2307
      %2309 = vrot.lane.b32.xlu0 %v371, 32
      %v2310 = vpop.permute.xlu0 %2309
      %2311 = vrot.lane.b32.xlu0 %v641, 32
      %v2312 = vpop.permute.xlu0 %2311
      %2313 = vrot.lane.b32.xlu0 %v378, 32
      %v2314 = vpop.permute.xlu0 %2313
      %2315 = vrot.lane.b32.xlu0 %v642, 32
      %v2316 = vpop.permute.xlu0 %2315
      %2317 = vrot.lane.b32.xlu0 %v387, 32
      %v2318 = vpop.permute.xlu0 %2317
      %2319 = vrot.lane.b32.xlu0 %v2308, 32
      %v2320 = vpop.permute.xlu0 %2319
      %vm2321 = vcmask 261120
      %v2322 = vsel %vm2321, %v2310, %v2312
      %v2323 = vsel %vm2321, %v2312, %v2314
      %v2324 = vsel %vm2321, %v2314, %v2316
      %v2325 = vsel %vm2321, %v2316, %v2318
      %v2326 = vsel %vm2321, %v2318, %v2320
      %v2328 = vshrl.u32 %v2307, 16
      %v2330 = vrot.slane %v2328, 2
      %v2331 = vshll.u32 %v2307, 16
      %v2333 = vrot.slane %v2331, 3
      %v2334 = vor.u32 %v2330, %v2333
      %2335 = vrot.lane.b32.xlu0 %v663, 31
      %v2336 = vpop.permute.xlu0 %2335
      %2337 = vrot.lane.b32.xlu0 %v666, 31
      %v2338 = vpop.permute.xlu0 %2337
      %2339 = vrot.lane.b32.xlu0 %v669, 31
      %v2340 = vpop.permute.xlu0 %2339
      %2341 = vrot.lane.b32.xlu0 %v672, 31
      %v2342 = vpop.permute.xlu0 %2341
      %2343 = vrot.lane.b32.xlu0 %v1531, 31
      %v2344 = vpop.permute.xlu0 %2343
      %2345 = vrot.lane.b32.xlu0 %v2334, 31
      %v2346 = vpop.permute.xlu0 %2345
      %vm2347 = vcmask 252928
      %v2348 = vsel %vm2347, %v2336, %v2338
      %v2349 = vsel %vm2347, %v2338, %v2340
      %v2350 = vsel %vm2347, %v2340, %v2342
      %v2351 = vsel %vm2347, %v2342, %v2344
      %v2352 = vsel %vm2347, %v2344, %v2346
      %v2358 = vrot.slane %v2307, 1
      %2359 = vrot.lane.b32.xlu0 %v694, 30
      %v2360 = vpop.permute.xlu0 %2359
      %2361 = vrot.lane.b32.xlu0 %v695, 30
      %v2362 = vpop.permute.xlu0 %2361
      %2363 = vrot.lane.b32.xlu0 %v696, 30
      %v2364 = vpop.permute.xlu0 %2363
      %2365 = vrot.lane.b32.xlu0 %v697, 30
      %v2366 = vpop.permute.xlu0 %2365
      %2367 = vrot.lane.b32.xlu0 %v1537, 30
      %v2368 = vpop.permute.xlu0 %2367
      %2369 = vrot.lane.b32.xlu0 %v2358, 30
      %v2370 = vpop.permute.xlu0 %2369
      %vm2371 = vcmask 244736
      %v2372 = vsel %vm2371, %v2360, %v2362
      %v2373 = vsel %vm2371, %v2362, %v2364
      %v2374 = vsel %vm2371, %v2364, %v2366
      %v2375 = vsel %vm2371, %v2366, %v2368
      %v2376 = vsel %vm2371, %v2368, %v2370
      %v2382 = vrot.slane %v2328, 7
      %v2383 = vor.u32 %v2382, %v2331
      %2384 = vrot.lane.b32.xlu0 %v721, 29
      %v2385 = vpop.permute.xlu0 %2384
      %2386 = vrot.lane.b32.xlu0 %v723, 29
      %v2387 = vpop.permute.xlu0 %2386
      %2388 = vrot.lane.b32.xlu0 %v725, 29
      %v2389 = vpop.permute.xlu0 %2388
      %2390 = vrot.lane.b32.xlu0 %v727, 29
      %v2391 = vpop.permute.xlu0 %2390
      %2392 = vrot.lane.b32.xlu0 %v1206, 29
      %v2393 = vpop.permute.xlu0 %2392
      %2394 = vrot.lane.b32.xlu0 %v2383, 29
      %v2395 = vpop.permute.xlu0 %2394
      %vm2396 = vcmask 236544
      %v2397 = vsel %vm2396, %v2385, %v2387
      %v2398 = vsel %vm2396, %v2387, %v2389
      %v2399 = vsel %vm2396, %v2389, %v2391
      %v2400 = vsel %vm2396, %v2391, %v2393
      %v2401 = vsel %vm2396, %v2393, %v2395
      %2407 = vrot.lane.b32.xlu0 %v748, 28
      %v2408 = vpop.permute.xlu0 %2407
      %2409 = vrot.lane.b32.xlu0 %v371, 28
      %v2410 = vpop.permute.xlu0 %2409
      %2411 = vrot.lane.b32.xlu0 %v379, 28
      %v2412 = vpop.permute.xlu0 %2411
      %2413 = vrot.lane.b32.xlu0 %v525, 28
      %v2414 = vpop.permute.xlu0 %2413
      %2415 = vrot.lane.b32.xlu0 %v1230, 28
      %v2416 = vpop.permute.xlu0 %2415
      %2417 = vrot.lane.b32.xlu0 %v387, 28
      %v2418 = vpop.permute.xlu0 %2417
      %vm2419 = vcmask 228352
      %v2420 = vsel %vm2419, %v2408, %v2410
      %v2421 = vsel %vm2419, %v2410, %v2412
      %v2422 = vsel %vm2419, %v2412, %v2414
      %v2423 = vsel %vm2419, %v2414, %v2416
      %v2424 = vsel %vm2419, %v2416, %v2418
      %v2425 = vrot.slane %v2328, 4
      %v2426 = vrot.slane %v2331, 5
      %v2427 = vor.u32 %v2425, %v2426
      %2428 = vrot.lane.b32.xlu0 %v769, 27
      %v2429 = vpop.permute.xlu0 %2428
      %2430 = vrot.lane.b32.xlu0 %v772, 27
      %v2431 = vpop.permute.xlu0 %2430
      %2432 = vrot.lane.b32.xlu0 %v775, 27
      %v2433 = vpop.permute.xlu0 %2432
      %2434 = vrot.lane.b32.xlu0 %v778, 27
      %v2435 = vpop.permute.xlu0 %2434
      %2436 = vrot.lane.b32.xlu0 %v1251, 27
      %v2437 = vpop.permute.xlu0 %2436
      %2438 = vrot.lane.b32.xlu0 %v2427, 27
      %v2439 = vpop.permute.xlu0 %2438
      %vm2440 = vcmask 220160
      %v2441 = vsel %vm2440, %v2429, %v2431
      %v2442 = vsel %vm2440, %v2431, %v2433
      %v2443 = vsel %vm2440, %v2433, %v2435
      %v2444 = vsel %vm2440, %v2435, %v2437
      %v2445 = vsel %vm2440, %v2437, %v2439
      %v2451 = vrot.slane %v2307, 3
      %2452 = vrot.lane.b32.xlu0 %v800, 26
      %v2453 = vpop.permute.xlu0 %2452
      %2454 = vrot.lane.b32.xlu0 %v801, 26
      %v2455 = vpop.permute.xlu0 %2454
      %2456 = vrot.lane.b32.xlu0 %v802, 26
      %v2457 = vpop.permute.xlu0 %2456
      %2458 = vrot.lane.b32.xlu0 %v803, 26
      %v2459 = vpop.permute.xlu0 %2458
      %2460 = vrot.lane.b32.xlu0 %v1275, 26
      %v2461 = vpop.permute.xlu0 %2460
      %2462 = vrot.lane.b32.xlu0 %v2451, 26
      %v2463 = vpop.permute.xlu0 %2462
      %vm2464 = vcmask 211968
      %v2465 = vsel %vm2464, %v2453, %v2455
      %v2466 = vsel %vm2464, %v2455, %v2457
      %v2467 = vsel %vm2464, %v2457, %v2459
      %v2468 = vsel %vm2464, %v2459, %v2461
      %v2469 = vsel %vm2464, %v2461, %v2463
      %v2470 = vrot.slane %v2328, 1
      %v2471 = vrot.slane %v2331, 2
      %v2472 = vor.u32 %v2470, %v2471
      %2473 = vrot.lane.b32.xlu0 %v824, 25
      %v2474 = vpop.permute.xlu0 %2473
      %2475 = vrot.lane.b32.xlu0 %v827, 25
      %v2476 = vpop.permute.xlu0 %2475
      %2477 = vrot.lane.b32.xlu0 %v830, 25
      %v2478 = vpop.permute.xlu0 %2477
      %2479 = vrot.lane.b32.xlu0 %v833, 25
      %v2480 = vpop.permute.xlu0 %2479
      %2481 = vrot.lane.b32.xlu0 %v1296, 25
      %v2482 = vpop.permute.xlu0 %2481
      %2483 = vrot.lane.b32.xlu0 %v2472, 25
      %v2484 = vpop.permute.xlu0 %2483
      %vm2485 = vcmask 203776
      %v2486 = vsel %vm2485, %v2474, %v2476
      %v2487 = vsel %vm2485, %v2476, %v2478
      %v2488 = vsel %vm2485, %v2478, %v2480
      %v2489 = vsel %vm2485, %v2480, %v2482
      %v2490 = vsel %vm2485, %v2482, %v2484
      %v2496 = vsel %vm856, %v2152, %v2172
      %v2497 = vsel %vm856, %v2153, %v2173
      %v2498 = vsel %vm856, %v2154, %v2174
      %v2499 = vsel %vm856, %v2155, %v2175
      %v2500 = vsel %vm856, %v2150, %v2170
      %v2503 = vsel %vm862, %v2496, %v2192
      %v2507 = vsel %vm862, %v2497, %v2193
      %v2511 = vsel %vm862, %v2498, %v2194
      %v2515 = vsel %vm862, %v2499, %v2195
      %v2519 = vsel %vm862, %v2500, %v2190
      %v2521 = vsel %vm885, %v2503, %v2207
      %v2522 = vsel %vm885, %v2507, %v2208
      %v2523 = vsel %vm885, %v2511, %v2209
      %v2524 = vsel %vm885, %v2515, %v2210
      %v2525 = vsel %vm885, %v2519, %v2205
      %v2528 = vsel %vm891, %v2521, %v2227
      %v2532 = vsel %vm891, %v2522, %v2228
      %v2536 = vsel %vm891, %v2523, %v2229
      %v2540 = vsel %vm891, %v2524, %v2230
      %v2544 = vsel %vm891, %v2525, %v2225
      %v2546 = vsel %vm914, %v2528, %v2252
      %v2547 = vsel %vm914, %v2532, %v2253
      %v2548 = vsel %vm914, %v2536, %v2254
      %v2549 = vsel %vm914, %v2540, %v2255
      %v2550 = vsel %vm914, %v2544, %v2240
      %v2553 = vsel %vm920, %v2256, %v2276
      %v2557 = vsel %vm920, %v2257, %v2277
      %v2561 = vsel %vm920, %v2258, %v2278
      %v2565 = vsel %vm920, %v2259, %v2279
      %v2569 = vsel %vm920, %v2250, %v2274
      %v2571 = vsel %vm943, %v2553, %v2291
      %v2572 = vsel %vm943, %v2557, %v2292
      %v2573 = vsel %vm943, %v2561, %v2293
      %v2574 = vsel %vm943, %v2565, %v2294
      %v2575 = vsel %vm943, %v2569, %v2289
      %v2578 = vsel %vm949, %v2571, %v2322
      %v2582 = vsel %vm949, %v2572, %v2323
      %v2586 = vsel %vm949, %v2573, %v2324
      %v2590 = vsel %vm949, %v2574, %v2325
      %v2594 = vsel %vm949, %v2575, %v2326
      %v2596 = vsel %vm972, %v2578, %v2348
      %v2597 = vsel %vm972, %v2582, %v2349
      %v2598 = vsel %vm972, %v2586, %v2350
      %v2599 = vsel %vm972, %v2590, %v2351
      %v2600 = vsel %vm972, %v2594, %v2352
      %v2603 = vsel %vm978, %v2596, %v2372
      %v2607 = vsel %vm978, %v2597, %v2373
      %v2611 = vsel %vm978, %v2598, %v2374
      %v2615 = vsel %vm978, %v2599, %v2375
      %v2619 = vsel %vm978, %v2600, %v2376
      %v2621 = vsel %vm1001, %v2372, %v2397
      %v2622 = vsel %vm1001, %v2373, %v2398
      %v2623 = vsel %vm1001, %v2374, %v2399
      %v2624 = vsel %vm1001, %v2375, %v2400
      %v2625 = vsel %vm1001, %v2376, %v2401
      %v2628 = vsel %vm1007, %v2621, %v2420
      %v2632 = vsel %vm1007, %v2622, %v2421
      %v2636 = vsel %vm1007, %v2623, %v2422
      %v2640 = vsel %vm1007, %v2624, %v2423
      %v2644 = vsel %vm1007, %v2625, %v2424
      %v2646 = vsel %vm1030, %v2628, %v2441
      %v2647 = vsel %vm1030, %v2632, %v2442
      %v2648 = vsel %vm1030, %v2636, %v2443
      %v2649 = vsel %vm1030, %v2640, %v2444
      %v2650 = vsel %vm1030, %v2644, %v2445
      %v2653 = vsel %vm1036, %v2646, %v2465
      %v2657 = vsel %vm1036, %v2647, %v2466
      %v2661 = vsel %vm1036, %v2648, %v2467
      %v2665 = vsel %vm1036, %v2649, %v2468
      %v2669 = vsel %vm1036, %v2650, %v2469
      %v2671 = vsel %vm1059, %v2653, %v2486
      %v2672 = vsel %vm1059, %v2657, %v2487
      %v2673 = vsel %vm1059, %v2661, %v2488
      %v2674 = vsel %vm1059, %v2665, %v2489
      %v2675 = vsel %vm1059, %v2669, %v2490
      %2691 = vrot.lane.b32.xlu0 %v1360, 93
      %v2692 = vpop.permute.xlu0 %2691
      %2693 = vrot.lane.b32.xlu0 %v1361, 93
      %v2694 = vpop.permute.xlu0 %2693
      %2695 = vrot.lane.b32.xlu0 %v1362, 93
      %v2696 = vpop.permute.xlu0 %2695
      %2697 = vrot.lane.b32.xlu0 %v1363, 93
      %v2698 = vpop.permute.xlu0 %2697
      %2699 = vrot.lane.b32.xlu0 %v1364, 93
      %v2700 = vpop.permute.xlu0 %2699
      %2701 = vrot.lane.b32.xlu0 %v1416, 93
      %v2702 = vpop.permute.xlu0 %2701
      %2703 = vrot.lane.b32.xlu0 %v1418, 93
      %v2704 = vpop.permute.xlu0 %2703
      %2705 = vrot.lane.b32.xlu0 %v1420, 93
      %v2706 = vpop.permute.xlu0 %2705
      %2707 = vrot.lane.b32.xlu0 %v1422, 93
      %v2708 = vpop.permute.xlu0 %2707
      %2709 = vrot.lane.b32.xlu0 %v1424, 93
      %v2710 = vpop.permute.xlu0 %2709
      %2711 = vrot.lane.b32.xlu0 %v1475, 93
      %v2712 = vpop.permute.xlu0 %2711
      %2713 = vrot.lane.b32.xlu0 %v1476, 93
      %v2714 = vpop.permute.xlu0 %2713
      %2715 = vrot.lane.b32.xlu0 %v1477, 93
      %v2716 = vpop.permute.xlu0 %2715
      %2717 = vrot.lane.b32.xlu0 %v1478, 93
      %v2718 = vpop.permute.xlu0 %2717
      %2719 = vrot.lane.b32.xlu0 %v1479, 93
      %v2720 = vpop.permute.xlu0 %2719
      %vm2721 = vcmask 760832
      %v2722 = vsel %vm2721, %v2692, %v2694
      %v2723 = vsel %vm2721, %v2694, %v2696
      %v2724 = vsel %vm2721, %v2696, %v2698
      %v2725 = vsel %vm2721, %v2698, %v2700
      %v2726 = vsel %vm2721, %v2702, %v2704
      %v2727 = vsel %vm2721, %v2704, %v2706
      %v2728 = vsel %vm2721, %v2706, %v2708
      %v2729 = vsel %vm2721, %v2708, %v2710
      %v2730 = vsel %vm2721, %v2712, %v2714
      %v2731 = vsel %vm2721, %v2714, %v2716
      %v2732 = vsel %vm2721, %v2716, %v2718
      %v2733 = vsel %vm2721, %v2718, %v2720
      %2763 = vrot.lane.b32.xlu0 %v1583, 39
      %v2764 = vpop.permute.xlu0 %2763
      %2765 = vrot.lane.b32.xlu0 %v1584, 39
      %v2766 = vpop.permute.xlu0 %2765
      %2767 = vrot.lane.b32.xlu0 %v1585, 39
      %v2768 = vpop.permute.xlu0 %2767
      %2769 = vrot.lane.b32.xlu0 %v1586, 39
      %v2770 = vpop.permute.xlu0 %2769
      %2771 = vrot.lane.b32.xlu0 %v1587, 39
      %v2772 = vpop.permute.xlu0 %2771
      %2773 = vrot.lane.b32.xlu0 %v1588, 39
      %v2774 = vpop.permute.xlu0 %2773
      %2775 = vrot.lane.b32.xlu0 %v1416, 39
      %v2776 = vpop.permute.xlu0 %2775
      %2777 = vrot.lane.b32.xlu0 %v1418, 39
      %v2778 = vpop.permute.xlu0 %2777
      %2779 = vrot.lane.b32.xlu0 %v1420, 39
      %v2780 = vpop.permute.xlu0 %2779
      %2781 = vrot.lane.b32.xlu0 %v1422, 39
      %v2782 = vpop.permute.xlu0 %2781
      %2783 = vrot.lane.b32.xlu0 %v1611, 39
      %v2784 = vpop.permute.xlu0 %2783
      %2785 = vrot.lane.b32.xlu0 %v1614, 39
      %v2786 = vpop.permute.xlu0 %2785
      %2787 = vrot.lane.b32.xlu0 %v1651, 39
      %v2788 = vpop.permute.xlu0 %2787
      %2789 = vrot.lane.b32.xlu0 %v1652, 39
      %v2790 = vpop.permute.xlu0 %2789
      %2791 = vrot.lane.b32.xlu0 %v1653, 39
      %v2792 = vpop.permute.xlu0 %2791
      %2793 = vrot.lane.b32.xlu0 %v1654, 39
      %v2794 = vpop.permute.xlu0 %2793
      %2795 = vrot.lane.b32.xlu0 %v1655, 39
      %v2796 = vpop.permute.xlu0 %2795
      %2797 = vrot.lane.b32.xlu0 %v1656, 39
      %v2798 = vpop.permute.xlu0 %2797
      %vm2799 = vcmask 318464
      %v2800 = vsel %vm2799, %v2764, %v2766
      %v2801 = vsel %vm2799, %v2766, %v2768
      %v2802 = vsel %vm2799, %v2768, %v2770
      %v2803 = vsel %vm2799, %v2770, %v2772
      %v2804 = vsel %vm2799, %v2772, %v2774
      %v2805 = vsel %vm2799, %v2776, %v2778
      %v2806 = vsel %vm2799, %v2778, %v2780
      %v2807 = vsel %vm2799, %v2780, %v2782
      %v2808 = vsel %vm2799, %v2782, %v2784
      %v2809 = vsel %vm2799, %v2784, %v2786
      %v2810 = vsel %vm2799, %v2788, %v2790
      %v2811 = vsel %vm2799, %v2790, %v2792
      %v2812 = vsel %vm2799, %v2792, %v2794
      %v2813 = vsel %vm2799, %v2794, %v2796
      %v2814 = vsel %vm2799, %v2796, %v2798
      %2830 = vrot.lane.b32.xlu0 %v379, 24
      %v2831 = vpop.permute.xlu0 %2830
      %2832 = vrot.lane.b32.xlu0 %v378, 24
      %v2833 = vpop.permute.xlu0 %2832
      %2834 = vrot.lane.b32.xlu0 %v380, 24
      %v2835 = vpop.permute.xlu0 %2834
      %2836 = vrot.lane.b32.xlu0 %v387, 24
      %v2837 = vpop.permute.xlu0 %2836
      %2838 = vrot.lane.b32.xlu0 %v1199, 24
      %v2839 = vpop.permute.xlu0 %2838
      %2840 = vrot.lane.b32.xlu0 %v2307, 24
      %v2841 = vpop.permute.xlu0 %2840
      %vm2842 = vcmask 195584
      %v2843 = vsel %vm2842, %v2831, %v2833
      %v2844 = vsel %vm2842, %v2833, %v2835
      %v2845 = vsel %vm2842, %v2835, %v2837
      %v2846 = vsel %vm2842, %v2837, %v2839
      %v2847 = vsel %vm2842, %v2839, %v2841
      %v2848 = vld [vmem:[%s2] sm:$0xff]
      %v2849 = vld [vmem:[%s2 + $0x8] sm:$0xff]
      %v2850 = vld [vmem:[%s2 + $0x10] sm:$0xff]
      %v2851 = vld [vmem:[%s2 + $0x18] sm:$0xff]
      %v2852 = vld [vmem:[%s2 + $0x20] sm:$0xff]
      %v2853 = vld [vmem:[%s2 + $0x28] sm:$0xff]
      %v2854 = vld [vmem:[%s2 + $0x30] sm:$0xff]
      %v2855 = vld [vmem:[%s2 + $0x38] sm:$0xff]
      %v2856 = vld [vmem:[%s3] sm:$0xff]
      %v2857 = vld [vmem:[%s3 + $0x8] sm:$0xff]
      %v2858 = vld [vmem:[%s3 + $0x10] sm:$0xff]
      %v2859 = vld [vmem:[%s3 + $0x18] sm:$0xff]
      %v2860 = vld [vmem:[%s3 + $0x20] sm:$0xff]
      %v2861 = vld [vmem:[%s3 + $0x28] sm:$0xff]
      %v2862 = vld [vmem:[%s3 + $0x30] sm:$0xff]
      %v2863 = vld [vmem:[%s3 + $0x38] sm:$0xff]
      %2865 = vset.pattern.permute.xlu0 0
      %2866 = vperm.xlu0 %2865, %v2856
      %v2867 = vpop.permute.xlu0 %2866
      %2870 = vset.pattern.permute.xlu0 0
      %2871 = vperm.xlu0 %2870, %v2857
      %v2872 = vpop.permute.xlu0 %2871
      %2875 = vset.pattern.permute.xlu0 0
      %2876 = vperm.xlu0 %2875, %v2858
      %v2877 = vpop.permute.xlu0 %2876
      %2880 = vset.pattern.permute.xlu0 0
      %2881 = vperm.xlu0 %2880, %v2859
      %v2882 = vpop.permute.xlu0 %2881
      %2885 = vset.pattern.permute.xlu0 0
      %2886 = vperm.xlu0 %2885, %v2860
      %v2887 = vpop.permute.xlu0 %2886
      %2890 = vset.pattern.permute.xlu0 0
      %2891 = vperm.xlu0 %2890, %v2861
      %v2892 = vpop.permute.xlu0 %2891
      %2895 = vset.pattern.permute.xlu0 0
      %2896 = vperm.xlu0 %2895, %v2862
      %v2897 = vpop.permute.xlu0 %2896
      %2900 = vset.pattern.permute.xlu0 0
      %2901 = vperm.xlu0 %2900, %v2863
      %v2902 = vpop.permute.xlu0 %2901
      %v2912 = vunpack.c.l.b16 %v2848
      %v2913 = vunpack.c.h.b16 %v2848
      %v2914 = vunpack.c.l.b16 %v2849
      %v2915 = vunpack.c.h.b16 %v2849
      %v2916 = vunpack.c.l.b16 %v2850
      %v2917 = vunpack.c.h.b16 %v2850
      %v2918 = vunpack.c.l.b16 %v2851
      %v2919 = vunpack.c.h.b16 %v2851
      %v2920 = vunpack.c.l.b16 %v2852
      %v2921 = vunpack.c.h.b16 %v2852
      %v2922 = vunpack.c.l.b16 %v2853
      %v2923 = vunpack.c.h.b16 %v2853
      %v2924 = vunpack.c.l.b16 %v2854
      %v2925 = vunpack.c.h.b16 %v2854
      %v2926 = vunpack.c.l.b16 %v2855
      %v2927 = vunpack.c.h.b16 %v2855
      %v2928 = vpack.c.b16 %v2914, %v2912
      %v2929 = vpack.c.b16 %v2915, %v2913
      %v2930 = vpack.c.b16 %v2918, %v2916
      %v2931 = vpack.c.b16 %v2919, %v2917
      %v2932 = vpack.c.b16 %v2922, %v2920
      %v2933 = vpack.c.b16 %v2923, %v2921
      %v2934 = vpack.c.b16 %v2926, %v2924
      %v2935 = vpack.c.b16 %v2927, %v2925
      %vm2940 = vcmask 941056
      %v2942 = vsel %vm2940, %v2929, 0
      %v2945 = vsel %vm2940, %v2931, 0
      %v2948 = vsel %vm2940, %v2933, 0
      %v2951 = vsel %vm2940, %v2935, 0
      %v2953 = vsel %vm920, 4294967295, 65535
      %v2954 = vsel %vm1007, %v2953, 0
      %v2956 = vand.u32 %v2843, %v2954
      %v2959 = vand.u32 %v2844, %v2954
      %v2962 = vand.u32 %v2845, %v2954
      %v2965 = vand.u32 %v2846, %v2954
      %v2968 = vand.u32 %v2847, %v2954
      %2970 = vmatprep.subr.bf16.mxu0 %v2806
      %2971 = vmatpush1.bf16.msra.mxu0 %v2805
      %2972 = vmatprep.subr.bf16.mxu0 %v2801
      %2973 = vmatpush1.bf16.msra.mxu0 %v2800
      %2974 = vmatprep.subr.bf16.mxu0 %v2731
      %2975 = vmatpush1.bf16.msra.mxu0 %v2730
      %2976 = vmatprep.subr.bf16.mxu0 %v2727
      %2977 = vmatpush1.bf16.msra.mxu0 %v2726
      %2978 = vmatprep.subr.bf16.mxu0 %v2723
      %2979 = vmatpush1.bf16.msra.mxu0 %v2722
      %2980 = vmatprep.subr.bf16.mxu0 %v1061
      %2981 = vmatpush1.bf16.msra.mxu0 %v1060
      %2982 = vmatprep.subr.bf16.mxu0 %v985
      %2983 = vmatpush1.bf16.msra.mxu0 %v981
      %2984 = vmatprep.subr.bf16.mxu0 %v916
      %2985 = vmatpush1.bf16.msra.mxu0 %v915
      %2986 = vmatprep.subr.bf16.mxu0 %v2959
      %2987 = vmatpush2.bf16.msra.mxu0 %v2956
      %2988 = vmatprep.subr.bf16.mxu0 %v2672
      %2989 = vmatpush2.bf16.msra.mxu0 %v2671
      %2990 = vmatprep.subr.bf16.mxu0 %v2607
      %2991 = vmatpush2.bf16.msra.mxu0 %v2603
      %2992 = vmatprep.subr.bf16.mxu0 %v2547
      %2993 = vmatpush2.bf16.msra.mxu0 %v2546
      %2994 = vmatprep.subr.bf16.mxu0 %v2137
      %2995 = vmatpush2.bf16.msra.mxu0 %v2136
      %2996 = vmatprep.subr.bf16.mxu0 %v2072
      %2997 = vmatpush2.bf16.msra.mxu0 %v2068
      %2998 = vmatprep.subr.bf16.mxu0 %v2012
      %2999 = vmatpush2.bf16.msra.mxu0 %v2011
      %3000 = vmatprep.subr.bf16.mxu0 %v2811
      %3001 = vmatpush2.bf16.msra.mxu0 %v2810
      %3002 = vmatprep.mubr.bf16.mxu0 %v2942
      %3003 = vmatmul.mubr.bf16.gmra.mxu0 %v2928
      %v3004 = vpop.f32.mrf.mxu0
      %v3005 = vadd.f32 %v2867, %v3004
      %v3006 = vpop.f32.mrf.mxu0
      %v3007 = vadd.f32 %v2867, %v3006
      %v3008 = vpop.f32.mrf.mxu0
      %v3009 = vadd.f32 %v2872, %v3008
      %v3010 = vpop.f32.mrf.mxu0
      %v3011 = vadd.f32 %v2872, %v3010
      %3012 = vmatprep.mubr.bf16.mxu0 %v2945
      %3013 = vmatmul.mubr.bf16.gmra.mxu0 %v2930
      %v3014 = vpop.f32.mrf.mxu0
      %v3015 = vadd.f32 %v2877, %v3014
      %v3016 = vpop.f32.mrf.mxu0
      %v3017 = vadd.f32 %v2877, %v3016
      %v3018 = vpop.f32.mrf.mxu0
      %v3019 = vadd.f32 %v2882, %v3018
      %v3020 = vpop.f32.mrf.mxu0
      %v3021 = vadd.f32 %v2882, %v3020
      %3022 = vmatprep.mubr.bf16.mxu0 %v2948
      %3023 = vmatmul.mubr.bf16.gmra.mxu0 %v2932
      %v3024 = vpop.f32.mrf.mxu0
      %v3025 = vadd.f32 %v2887, %v3024
      %v3026 = vpop.f32.mrf.mxu0
      %v3027 = vadd.f32 %v2887, %v3026
      %v3028 = vpop.f32.mrf.mxu0
      %v3029 = vadd.f32 %v2892, %v3028
      %v3030 = vpop.f32.mrf.mxu0
      %v3031 = vadd.f32 %v2892, %v3030
      %3032 = vmatprep.mubr.bf16.mxu0 %v2951
      %3033 = vmatmul.mubr.bf16.gmra.mxu0 %v2934
      %v3034 = vpop.f32.mrf.mxu0
      %v3035 = vadd.f32 %v2897, %v3034
      %v3036 = vpop.f32.mrf.mxu0
      %v3037 = vadd.f32 %v2897, %v3036
      %v3038 = vpop.f32.mrf.mxu0
      %v3039 = vadd.f32 %v2902, %v3038
      %v3040 = vpop.f32.mrf.mxu0
      %v3041 = vadd.f32 %v2902, %v3040
      %3042 = vdwg.mxu0
      %3043 = vmatprep.subr.bf16.mxu0 %v2808
      %3044 = vmatpush1.bf16.msra.mxu0 %v2807
      %3045 = vmatprep.subr.bf16.mxu0 %v2803
      %3046 = vmatpush1.bf16.msra.mxu0 %v2802
      %3047 = vmatprep.subr.bf16.mxu0 %v2733
      %3048 = vmatpush1.bf16.msra.mxu0 %v2732
      %3049 = vmatprep.subr.bf16.mxu0 %v2729
      %3050 = vmatpush1.bf16.msra.mxu0 %v2728
      %3051 = vmatprep.subr.bf16.mxu0 %v2725
      %3052 = vmatpush1.bf16.msra.mxu0 %v2724
      %3053 = vmatprep.subr.bf16.mxu0 %v1063
      %3054 = vmatpush1.bf16.msra.mxu0 %v1062
      %3055 = vmatprep.subr.bf16.mxu0 %v993
      %3056 = vmatpush1.bf16.msra.mxu0 %v989
      %3057 = vmatprep.subr.bf16.mxu0 %v918
      %3058 = vmatpush1.bf16.msra.mxu0 %v917
      %3059 = vmatprep.subr.bf16.mxu0 %v2965
      %3060 = vmatpush2.bf16.msra.mxu0 %v2962
      %3061 = vmatprep.subr.bf16.mxu0 %v2674
      %3062 = vmatpush2.bf16.msra.mxu0 %v2673
      %3063 = vmatprep.subr.bf16.mxu0 %v2615
      %3064 = vmatpush2.bf16.msra.mxu0 %v2611
      %3065 = vmatprep.subr.bf16.mxu0 %v2549
      %3066 = vmatpush2.bf16.msra.mxu0 %v2548
      %3067 = vmatprep.subr.bf16.mxu0 %v2139
      %3068 = vmatpush2.bf16.msra.mxu0 %v2138
      %3069 = vmatprep.subr.bf16.mxu0 %v2080
      %3070 = vmatpush2.bf16.msra.mxu0 %v2076
      %3071 = vmatprep.subr.bf16.mxu0 %v2014
      %3072 = vmatpush2.bf16.msra.mxu0 %v2013
      %3073 = vmatprep.subr.bf16.mxu0 %v2813
      %3074 = vmatpush2.bf16.msra.mxu0 %v2812
      %3075 = vmatprep.mubr.bf16.mxu0 %v2942
      %3076 = vmatmul.mubr.bf16.gmra.mxu0 %v2928
      %v3077 = vpop.f32.mrf.mxu0
      %v3078 = vadd.f32 %v2867, %v3077
      %v3079 = vpop.f32.mrf.mxu0
      %v3080 = vadd.f32 %v2867, %v3079
      %v3081 = vpop.f32.mrf.mxu0
      %v3082 = vadd.f32 %v2872, %v3081
      %v3083 = vpop.f32.mrf.mxu0
      %v3084 = vadd.f32 %v2872, %v3083
      %3085 = vmatprep.mubr.bf16.mxu0 %v2945
      %3086 = vmatmul.mubr.bf16.gmra.mxu0 %v2930
      %v3087 = vpop.f32.mrf.mxu0
      %v3088 = vadd.f32 %v2877, %v3087
      %v3089 = vpop.f32.mrf.mxu0
      %v3090 = vadd.f32 %v2877, %v3089
      %v3091 = vpop.f32.mrf.mxu0
      %v3092 = vadd.f32 %v2882, %v3091
      %v3093 = vpop.f32.mrf.mxu0
      %v3094 = vadd.f32 %v2882, %v3093
      %3095 = vmatprep.mubr.bf16.mxu0 %v2948
      %3096 = vmatmul.mubr.bf16.gmra.mxu0 %v2932
      %v3097 = vpop.f32.mrf.mxu0
      %v3098 = vadd.f32 %v2887, %v3097
      %v3099 = vpop.f32.mrf.mxu0
      %v3100 = vadd.f32 %v2887, %v3099
      %v3101 = vpop.f32.mrf.mxu0
      %v3102 = vadd.f32 %v2892, %v3101
      %v3103 = vpop.f32.mrf.mxu0
      %v3104 = vadd.f32 %v2892, %v3103
      %3105 = vmatprep.mubr.bf16.mxu0 %v2951
      %3106 = vmatmul.mubr.bf16.gmra.mxu0 %v2934
      %v3107 = vpop.f32.mrf.mxu0
      %v3108 = vadd.f32 %v2897, %v3107
      %v3109 = vpop.f32.mrf.mxu0
      %v3110 = vadd.f32 %v2897, %v3109
      %v3111 = vpop.f32.mrf.mxu0
      %v3112 = vadd.f32 %v2902, %v3111
      %v3113 = vpop.f32.mrf.mxu0
      %v3114 = vadd.f32 %v2902, %v3113
      %3115 = vdwg.mxu0
      %3116 = vmatprep.subr.bf16.mxu0 0
      %3117 = vmatpush1.bf16.msra.mxu0 %v2809
      %3118 = vmatprep.subr.bf16.mxu0 0
      %3119 = vmatpush1.bf16.msra.mxu0 %v2804
      %3120 = vmatprep.subr.bf16.mxu0 0
      %3121 = vmatpush1.bf16.msra.mxu0 %v2720
      %3122 = vmatprep.subr.bf16.mxu0 0
      %3123 = vmatpush1.bf16.msra.mxu0 %v2710
      %3124 = vmatprep.subr.bf16.mxu0 0
      %3125 = vmatpush1.bf16.msra.mxu0 %v2700
      %3126 = vmatprep.subr.bf16.mxu0 0
      %3127 = vmatpush1.bf16.msra.mxu0 %v1064
      %3128 = vmatprep.subr.bf16.mxu0 0
      %3129 = vmatpush1.bf16.msra.mxu0 %v997
      %3130 = vmatprep.subr.bf16.mxu0 0
      %3131 = vmatpush1.bf16.msra.mxu0 %v919
      %3132 = vmatprep.subr.bf16.mxu0 0
      %3133 = vmatpush2.bf16.msra.mxu0 %v2968
      %3134 = vmatprep.subr.bf16.mxu0 0
      %3135 = vmatpush2.bf16.msra.mxu0 %v2675
      %3136 = vmatprep.subr.bf16.mxu0 0
      %3137 = vmatpush2.bf16.msra.mxu0 %v2619
      %3138 = vmatprep.subr.bf16.mxu0 0
      %3139 = vmatpush2.bf16.msra.mxu0 %v2550
      %3140 = vmatprep.subr.bf16.mxu0 0
      %3141 = vmatpush2.bf16.msra.mxu0 %v2140
      %3142 = vmatprep.subr.bf16.mxu0 0
      %3143 = vmatpush2.bf16.msra.mxu0 %v2084
      %3144 = vmatprep.subr.bf16.mxu0 0
      %3145 = vmatpush2.bf16.msra.mxu0 %v2015
      %3146 = vmatprep.subr.bf16.mxu0 0
      %3147 = vmatpush2.bf16.msra.mxu0 %v2814
      %3148 = vmatprep.mubr.bf16.mxu0 %v2942
      %3149 = vmatmul.mubr.bf16.gmra.mxu0 %v2928
      %v3150 = vpop.f32.mrf.mxu0
      %v3151 = vadd.f32 %v2867, %v3150
      %v3152 = vpop.f32.mrf.mxu0
      %v3153 = vpop.f32.mrf.mxu0
      %v3154 = vadd.f32 %v2872, %v3153
      %v3155 = vpop.f32.mrf.mxu0
      %3156 = vmatprep.mubr.bf16.mxu0 %v2945
      %3157 = vmatmul.mubr.bf16.gmra.mxu0 %v2930
      %v3158 = vpop.f32.mrf.mxu0
      %v3159 = vadd.f32 %v2877, %v3158
      %v3160 = vpop.f32.mrf.mxu0
      %v3161 = vpop.f32.mrf.mxu0
      %v3162 = vadd.f32 %v2882, %v3161
      %v3163 = vpop.f32.mrf.mxu0
      %3164 = vmatprep.mubr.bf16.mxu0 %v2948
      %3165 = vmatmul.mubr.bf16.gmra.mxu0 %v2932
      %v3166 = vpop.f32.mrf.mxu0
      %v3167 = vadd.f32 %v2887, %v3166
      %v3168 = vpop.f32.mrf.mxu0
      %v3169 = vpop.f32.mrf.mxu0
      %v3170 = vadd.f32 %v2892, %v3169
      %v3171 = vpop.f32.mrf.mxu0
      %3172 = vmatprep.mubr.bf16.mxu0 %v2951
      %3173 = vmatmul.mubr.bf16.gmra.mxu0 %v2934
      %v3174 = vpop.f32.mrf.mxu0
      %v3175 = vadd.f32 %v2897, %v3174
      %v3176 = vpop.f32.mrf.mxu0
      %v3177 = vpop.f32.mrf.mxu0
      %v3178 = vadd.f32 %v2902, %v3177
      %v3179 = vpop.f32.mrf.mxu0
      %3180 = vdwg.mxu0
      %v3181 = vmax.f32 %v3005, 0.0
      %v3182 = vmax.f32 %v3007, 0.0
      %v3183 = vmax.f32 %v3078, 0.0
      %v3184 = vmax.f32 %v3080, 0.0
      %v3185 = vmax.f32 %v3151, 0.0
      %v3186 = vmax.f32 %v3009, 0.0
      %v3187 = vmax.f32 %v3011, 0.0
      %v3188 = vmax.f32 %v3082, 0.0
      %v3189 = vmax.f32 %v3084, 0.0
      %v3190 = vmax.f32 %v3154, 0.0
      %v3191 = vmax.f32 %v3015, 0.0
      %v3192 = vmax.f32 %v3017, 0.0
      %v3193 = vmax.f32 %v3088, 0.0
      %v3194 = vmax.f32 %v3090, 0.0
      %v3195 = vmax.f32 %v3159, 0.0
      %v3196 = vmax.f32 %v3019, 0.0
      %v3197 = vmax.f32 %v3021, 0.0
      %v3198 = vmax.f32 %v3092, 0.0
      %v3199 = vmax.f32 %v3094, 0.0
      %v3200 = vmax.f32 %v3162, 0.0
      %v3201 = vmax.f32 %v3025, 0.0
      %v3202 = vmax.f32 %v3027, 0.0
      %v3203 = vmax.f32 %v3098, 0.0
      %v3204 = vmax.f32 %v3100, 0.0
      %v3205 = vmax.f32 %v3167, 0.0
      %v3206 = vmax.f32 %v3029, 0.0
      %v3207 = vmax.f32 %v3031, 0.0
      %v3208 = vmax.f32 %v3102, 0.0
      %v3209 = vmax.f32 %v3104, 0.0
      %v3210 = vmax.f32 %v3170, 0.0
      %v3211 = vmax.f32 %v3035, 0.0
      %v3212 = vmax.f32 %v3037, 0.0
      %v3213 = vmax.f32 %v3108, 0.0
      %v3214 = vmax.f32 %v3110, 0.0
      %v3215 = vmax.f32 %v3175, 0.0
      %v3216 = vmax.f32 %v3039, 0.0
      %v3217 = vmax.f32 %v3041, 0.0
      %v3218 = vmax.f32 %v3112, 0.0
      %v3219 = vmax.f32 %v3114, 0.0
      %v3220 = vmax.f32 %v3178, 0.0
      %v3221 = vpack.c.bf16 %v3186, %v3181
      %v3222 = vpack.c.bf16 %v3187, %v3182
      %v3223 = vpack.c.bf16 %v3188, %v3183
      %v3224 = vpack.c.bf16 %v3189, %v3184
      %v3225 = vpack.c.bf16 %v3190, %v3185
      %v3226 = vpack.c.bf16 %v3196, %v3191
      %v3227 = vpack.c.bf16 %v3197, %v3192
      %v3228 = vpack.c.bf16 %v3198, %v3193
      %v3229 = vpack.c.bf16 %v3199, %v3194
      %v3230 = vpack.c.bf16 %v3200, %v3195
      %v3231 = vpack.c.bf16 %v3206, %v3201
      %v3232 = vpack.c.bf16 %v3207, %v3202
      %v3233 = vpack.c.bf16 %v3208, %v3203
      %v3234 = vpack.c.bf16 %v3209, %v3204
      %v3235 = vpack.c.bf16 %v3210, %v3205
      %v3236 = vpack.c.bf16 %v3216, %v3211
      %v3237 = vpack.c.bf16 %v3217, %v3212
      %v3238 = vpack.c.bf16 %v3218, %v3213
      %v3239 = vpack.c.bf16 %v3219, %v3214
      %v3240 = vpack.c.bf16 %v3220, %v3215
      %v3241 = vld [vmem:[%s4] sm:$0xf]
      %v3242 = vld [vmem:[%s4 + $0x4] sm:$0xf]
      %v3243 = vld [vmem:[%s4 + $0x8] sm:$0xf]
      %v3244 = vld [vmem:[%s4 + $0xc] sm:$0xf]
      %v3245 = vld [vmem:[%s5] sm:$0xff]
      %v3246 = vld [vmem:[%s5 + $0x8] sm:$0xff]
      %v3247 = vld [vmem:[%s5 + $0x10] sm:$0xff]
      %v3248 = vld [vmem:[%s5 + $0x18] sm:$0xff]
      %3250 = vset.pattern.permute.xlu0 0
      %3251 = vperm.xlu0 %3250, %v3245
      %v3252 = vpop.permute.xlu0 %3251
      %3255 = vset.pattern.permute.xlu0 0
      %3256 = vperm.xlu0 %3255, %v3246
      %v3257 = vpop.permute.xlu0 %3256
      %3260 = vset.pattern.permute.xlu0 0
      %3261 = vperm.xlu0 %3260, %v3247
      %v3262 = vpop.permute.xlu0 %3261
      %3265 = vset.pattern.permute.xlu0 0
      %3266 = vperm.xlu0 %3265, %v3248
      %v3267 = vpop.permute.xlu0 %3266
      %v3273 = vunpack.c.l.b16 %v3241
      %v3274 = vunpack.c.l.b16 %v3242
      %v3275 = vunpack.c.l.b16 %v3243
      %v3276 = vunpack.c.l.b16 %v3244
      %v3277 = vpack.c.b16 %v3274, %v3273
      %v3278 = vpack.c.b16 %v3276, %v3275
      %vm3279 = vcmask 523264
      %v3281 = vsel %vm3279, %v3277, 0
      %v3284 = vsel %vm3279, %v3278, 0
      %3286 = vmatprep.subr.bf16.mxu0 0
      %3287 = vmatpush1.bf16.msra.mxu0 0
      %3288 = vmatprep.subr.bf16.mxu0 0
      %3289 = vmatpush1.bf16.msra.mxu0 0
      %3290 = vmatprep.subr.bf16.mxu0 0
      %3291 = vmatpush1.bf16.msra.mxu0 0
      %3292 = vmatprep.subr.bf16.mxu0 0
      %3293 = vmatpush1.bf16.msra.mxu0 0
      %3294 = vmatprep.subr.bf16.mxu0 %v3237
      %3295 = vmatpush1.bf16.msra.mxu0 %v3236
      %3296 = vmatprep.subr.bf16.mxu0 %v3232
      %3297 = vmatpush1.bf16.msra.mxu0 %v3231
      %3298 = vmatprep.subr.bf16.mxu0 %v3227
      %3299 = vmatpush1.bf16.msra.mxu0 %v3226
      %3300 = vmatprep.subr.bf16.mxu0 %v3222
      %3301 = vmatpush1.bf16.msra.mxu0 %v3221
      %3302 = vmatprep.subr.bf16.mxu0 0
      %3303 = vmatpush2.bf16.msra.mxu0 0
      %3304 = vmatprep.subr.bf16.mxu0 0
      %3305 = vmatpush2.bf16.msra.mxu0 0
      %3306 = vmatprep.subr.bf16.mxu0 0
      %3307 = vmatpush2.bf16.msra.mxu0 0
      %3308 = vmatprep.subr.bf16.mxu0 0
      %3309 = vmatpush2.bf16.msra.mxu0 0
      %3310 = vmatprep.subr.bf16.mxu0 0
      %3311 = vmatpush2.bf16.msra.mxu0 0
      %3312 = vmatprep.subr.bf16.mxu0 0
      %3313 = vmatpush2.bf16.msra.mxu0 0
      %3314 = vmatprep.subr.bf16.mxu0 0
      %3315 = vmatpush2.bf16.msra.mxu0 0
      %3316 = vmatprep.subr.bf16.mxu0 0
      %3317 = vmatpush2.bf16.msra.mxu0 0
      %3318 = vmatprep.mubr.bf16.mxu0 0
      %3319 = vmatmul.mubr.bf16.gmra.mxu0 %v3281
      %v3320 = vpop.f32.mrf.mxu0
      %v3321 = vadd.f32 %v3252, %v3320
      %v3322 = vpop.f32.mrf.mxu0
      %v3323 = vadd.f32 %v3252, %v3322
      %v3324 = vpop.f32.mrf.mxu0
      %v3325 = vadd.f32 %v3257, %v3324
      %v3326 = vpop.f32.mrf.mxu0
      %v3327 = vadd.f32 %v3257, %v3326
      %3328 = vmatprep.mubr.bf16.mxu0 0
      %3329 = vmatmul.mubr.bf16.gmra.mxu0 %v3284
      %v3330 = vpop.f32.mrf.mxu0
      %v3331 = vadd.f32 %v3262, %v3330
      %v3332 = vpop.f32.mrf.mxu0
      %v3333 = vadd.f32 %v3262, %v3332
      %v3334 = vpop.f32.mrf.mxu0
      %v3335 = vadd.f32 %v3267, %v3334
      %v3336 = vpop.f32.mrf.mxu0
      %v3337 = vadd.f32 %v3267, %v3336
      %3338 = vdwg.mxu0
      %3339 = vmatprep.subr.bf16.mxu0 0
      %3340 = vmatpush1.bf16.msra.mxu0 0
      %3341 = vmatprep.subr.bf16.mxu0 0
      %3342 = vmatpush1.bf16.msra.mxu0 0
      %3343 = vmatprep.subr.bf16.mxu0 0
      %3344 = vmatpush1.bf16.msra.mxu0 0
      %3345 = vmatprep.subr.bf16.mxu0 0
      %3346 = vmatpush1.bf16.msra.mxu0 0
      %3347 = vmatprep.subr.bf16.mxu0 %v3239
      %3348 = vmatpush1.bf16.msra.mxu0 %v3238
      %3349 = vmatprep.subr.bf16.mxu0 %v3234
      %3350 = vmatpush1.bf16.msra.mxu0 %v3233
      %3351 = vmatprep.subr.bf16.mxu0 %v3229
      %3352 = vmatpush1.bf16.msra.mxu0 %v3228
      %3353 = vmatprep.subr.bf16.mxu0 %v3224
      %3354 = vmatpush1.bf16.msra.mxu0 %v3223
      %3355 = vmatprep.subr.bf16.mxu0 0
      %3356 = vmatpush2.bf16.msra.mxu0 0
      %3357 = vmatprep.subr.bf16.mxu0 0
      %3358 = vmatpush2.bf16.msra.mxu0 0
      %3359 = vmatprep.subr.bf16.mxu0 0
      %3360 = vmatpush2.bf16.msra.mxu0 0
      %3361 = vmatprep.subr.bf16.mxu0 0
      %3362 = vmatpush2.bf16.msra.mxu0 0
      %3363 = vmatprep.subr.bf16.mxu0 0
      %3364 = vmatpush2.bf16.msra.mxu0 0
      %3365 = vmatprep.subr.bf16.mxu0 0
      %3366 = vmatpush2.bf16.msra.mxu0 0
      %3367 = vmatprep.subr.bf16.mxu0 0
      %3368 = vmatpush2.bf16.msra.mxu0 0
      %3369 = vmatprep.subr.bf16.mxu0 0
      %3370 = vmatpush2.bf16.msra.mxu0 0
      %3371 = vmatprep.mubr.bf16.mxu0 0
      %3372 = vmatmul.mubr.bf16.gmra.mxu0 %v3281
      %v3373 = vpop.f32.mrf.mxu0
      %v3374 = vadd.f32 %v3252, %v3373
      %v3375 = vpop.f32.mrf.mxu0
      %v3376 = vadd.f32 %v3252, %v3375
      %v3377 = vpop.f32.mrf.mxu0
      %v3378 = vadd.f32 %v3257, %v3377
      %v3379 = vpop.f32.mrf.mxu0
      %v3380 = vadd.f32 %v3257, %v3379
      %3381 = vmatprep.mubr.bf16.mxu0 0
      %3382 = vmatmul.mubr.bf16.gmra.mxu0 %v3284
      %v3383 = vpop.f32.mrf.mxu0
      %v3384 = vadd.f32 %v3262, %v3383
      %v3385 = vpop.f32.mrf.mxu0
      %v3386 = vadd.f32 %v3262, %v3385
      %v3387 = vpop.f32.mrf.mxu0
      %v3388 = vadd.f32 %v3267, %v3387
      %v3389 = vpop.f32.mrf.mxu0
      %v3390 = vadd.f32 %v3267, %v3389
      %3391 = vdwg.mxu0
      %3392 = vmatprep.subr.bf16.mxu0 0
      %3393 = vmatpush1.bf16.msra.mxu0 0
      %3394 = vmatprep.subr.bf16.mxu0 0
      %3395 = vmatpush1.bf16.msra.mxu0 0
      %3396 = vmatprep.subr.bf16.mxu0 0
      %3397 = vmatpush1.bf16.msra.mxu0 0
      %3398 = vmatprep.subr.bf16.mxu0 0
      %3399 = vmatpush1.bf16.msra.mxu0 0
      %3400 = vmatprep.subr.bf16.mxu0 0
      %3401 = vmatpush1.bf16.msra.mxu0 %v3240
      %3402 = vmatprep.subr.bf16.mxu0 0
      %3403 = vmatpush1.bf16.msra.mxu0 %v3235
      %3404 = vmatprep.subr.bf16.mxu0 0
      %3405 = vmatpush1.bf16.msra.mxu0 %v3230
      %3406 = vmatprep.subr.bf16.mxu0 0
      %3407 = vmatpush1.bf16.msra.mxu0 %v3225
      %3408 = vmatprep.subr.bf16.mxu0 0
      %3409 = vmatpush2.bf16.msra.mxu0 0
      %3410 = vmatprep.subr.bf16.mxu0 0
      %3411 = vmatpush2.bf16.msra.mxu0 0
      %3412 = vmatprep.subr.bf16.mxu0 0
      %3413 = vmatpush2.bf16.msra.mxu0 0
      %3414 = vmatprep.subr.bf16.mxu0 0
      %3415 = vmatpush2.bf16.msra.mxu0 0
      %3416 = vmatprep.subr.bf16.mxu0 0
      %3417 = vmatpush2.bf16.msra.mxu0 0
      %3418 = vmatprep.subr.bf16.mxu0 0
      %3419 = vmatpush2.bf16.msra.mxu0 0
      %3420 = vmatprep.subr.bf16.mxu0 0
      %3421 = vmatpush2.bf16.msra.mxu0 0
      %3422 = vmatprep.subr.bf16.mxu0 0
      %3423 = vmatpush2.bf16.msra.mxu0 0
      %3424 = vmatprep.mubr.bf16.mxu0 0
      %3425 = vmatmul.mubr.bf16.gmra.mxu0 %v3281
      %v3426 = vpop.f32.mrf.mxu0
      %v3427 = vadd.f32 %v3252, %v3426
      %v3428 = vpop.f32.mrf.mxu0
      %v3429 = vpop.f32.mrf.mxu0
      %v3430 = vadd.f32 %v3257, %v3429
      %v3431 = vpop.f32.mrf.mxu0
      %3432 = vmatprep.mubr.bf16.mxu0 0
      %3433 = vmatmul.mubr.bf16.gmra.mxu0 %v3284
      %v3434 = vpop.f32.mrf.mxu0
      %v3435 = vadd.f32 %v3262, %v3434
      %v3436 = vpop.f32.mrf.mxu0
      %v3437 = vpop.f32.mrf.mxu0
      %v3438 = vadd.f32 %v3267, %v3437
      %v3439 = vpop.f32.mrf.mxu0
      %3440 = vdwg.mxu0
      %v3441 = vmax.f32 %v3321, 0.0
      %v3442 = vmax.f32 %v3323, 0.0
      %v3443 = vmax.f32 %v3374, 0.0
      %v3444 = vmax.f32 %v3376, 0.0
      %v3445 = vmax.f32 %v3427, 0.0
      %v3446 = vmax.f32 %v3325, 0.0
      %v3447 = vmax.f32 %v3327, 0.0
      %v3448 = vmax.f32 %v3378, 0.0
      %v3449 = vmax.f32 %v3380, 0.0
      %v3450 = vmax.f32 %v3430, 0.0
      %v3451 = vmax.f32 %v3331, 0.0
      %v3452 = vmax.f32 %v3333, 0.0
      %v3453 = vmax.f32 %v3384, 0.0
      %v3454 = vmax.f32 %v3386, 0.0
      %v3455 = vmax.f32 %v3435, 0.0
      %v3456 = vmax.f32 %v3335, 0.0
      %v3457 = vmax.f32 %v3337, 0.0
      %v3458 = vmax.f32 %v3388, 0.0
      %v3459 = vmax.f32 %v3390, 0.0
      %v3460 = vmax.f32 %v3438, 0.0
      %v3461 = vld [vmem:[%s349] sm:$0x1f]
      %v3463 = vlaneseq
      %v3464 = vshrl.u32 %v3463, 7
      %v3465 = vsub.s32 0, %v3464
      %v3466 = vrot.slane %v3461, %v3465
      %v3467 = vlaneseq
      %v3468 = vshrl.u32 %v3467, 7
      %v3469 = vsub.s32 1, %v3468
      %v3470 = vrot.slane %v3461, %v3469
      %v3471 = vlaneseq
      %v3472 = vshrl.u32 %v3471, 7
      %v3473 = vsub.s32 2, %v3472
      %v3474 = vrot.slane %v3461, %v3473
      %v3475 = vlaneseq
      %v3476 = vshrl.u32 %v3475, 7
      %v3477 = vsub.s32 3, %v3476
      %v3478 = vrot.slane %v3461, %v3477
      %v3479 = vlaneseq
      %v3480 = vshrl.u32 %v3479, 7
      %v3481 = vsub.s32 4, %v3480
      %v3482 = vrot.slane %v3461, %v3481
      %v3488 = vmul.f32 %v3441, %v3466
      %v3489 = vmul.f32 %v3442, %v3470
      %v3490 = vmul.f32 %v3443, %v3474
      %v3491 = vmul.f32 %v3444, %v3478
      %v3492 = vmul.f32 %v3445, %v3482
      %v3493 = vmul.f32 %v3446, %v3466
      %v3494 = vmul.f32 %v3447, %v3470
      %v3495 = vmul.f32 %v3448, %v3474
      %v3496 = vmul.f32 %v3449, %v3478
      %v3497 = vmul.f32 %v3450, %v3482
      %v3498 = vmul.f32 %v3451, %v3466
      %v3499 = vmul.f32 %v3452, %v3470
      %v3500 = vmul.f32 %v3453, %v3474
      %v3501 = vmul.f32 %v3454, %v3478
      %v3502 = vmul.f32 %v3455, %v3482
      %v3503 = vmul.f32 %v3456, %v3466
      %v3504 = vmul.f32 %v3457, %v3470
      %v3505 = vmul.f32 %v3458, %v3474
      %v3506 = vmul.f32 %v3459, %v3478
      %v3507 = vmul.f32 %v3460, %v3482
      %v3508 = vpack.c.bf16 %v3493, %v3488
      %v3509 = vpack.c.bf16 %v3494, %v3489
      %v3510 = vpack.c.bf16 %v3495, %v3490
      %v3511 = vpack.c.bf16 %v3496, %v3491
      %v3512 = vpack.c.bf16 %v3497, %v3492
      %v3513 = vpack.c.bf16 %v3503, %v3498
      %v3514 = vpack.c.bf16 %v3504, %v3499
      %v3515 = vpack.c.bf16 %v3505, %v3500
      %v3516 = vpack.c.bf16 %v3506, %v3501
      %v3517 = vpack.c.bf16 %v3507, %v3502
      %3526 = vrot.lane.b32.xlu0 %v3508, 127
      %v3527 = vpop.permute.xlu0 %3526
      %3528 = vrot.lane.b32.xlu0 %v3509, 127
      %v3529 = vpop.permute.xlu0 %3528
      %3530 = vrot.lane.b32.xlu0 %v3510, 127
      %v3531 = vpop.permute.xlu0 %3530
      %3532 = vrot.lane.b32.xlu0 %v3511, 127
      %v3533 = vpop.permute.xlu0 %3532
      %3534 = vrot.lane.b32.xlu0 %v3513, 127
      %v3535 = vpop.permute.xlu0 %3534
      %3536 = vrot.lane.b32.xlu0 %v3514, 127
      %v3537 = vpop.permute.xlu0 %3536
      %3538 = vrot.lane.b32.xlu0 %v3515, 127
      %v3539 = vpop.permute.xlu0 %3538
      %3540 = vrot.lane.b32.xlu0 %v3516, 127
      %v3541 = vpop.permute.xlu0 %3540
      %v3542 = vsel %vm443, %v3527, %v3529
      %v3543 = vsel %vm443, %v3529, %v3531
      %v3544 = vsel %vm443, %v3531, %v3533
      %v3545 = vsel %vm443, %v3535, %v3537
      %v3546 = vsel %vm443, %v3537, %v3539
      %v3547 = vsel %vm443, %v3539, %v3541
      %3556 = vrot.lane.b32.xlu0 %v3508, 126
      %v3557 = vpop.permute.xlu0 %3556
      %3558 = vrot.lane.b32.xlu0 %v3509, 126
      %v3559 = vpop.permute.xlu0 %3558
      %3560 = vrot.lane.b32.xlu0 %v3510, 126
      %v3561 = vpop.permute.xlu0 %3560
      %3562 = vrot.lane.b32.xlu0 %v3511, 126
      %v3563 = vpop.permute.xlu0 %3562
      %3564 = vrot.lane.b32.xlu0 %v3513, 126
      %v3565 = vpop.permute.xlu0 %3564
      %3566 = vrot.lane.b32.xlu0 %v3514, 126
      %v3567 = vpop.permute.xlu0 %3566
      %3568 = vrot.lane.b32.xlu0 %v3515, 126
      %v3569 = vpop.permute.xlu0 %3568
      %3570 = vrot.lane.b32.xlu0 %v3516, 126
      %v3571 = vpop.permute.xlu0 %3570
      %v3572 = vsel %vm468, %v3557, %v3559
      %v3573 = vsel %vm468, %v3559, %v3561
      %v3574 = vsel %vm468, %v3561, %v3563
      %v3575 = vsel %vm468, %v3565, %v3567
      %v3576 = vsel %vm468, %v3567, %v3569
      %v3577 = vsel %vm468, %v3569, %v3571
      %3586 = vrot.lane.b32.xlu0 %v3508, 125
      %v3587 = vpop.permute.xlu0 %3586
      %3588 = vrot.lane.b32.xlu0 %v3509, 125
      %v3589 = vpop.permute.xlu0 %3588
      %3590 = vrot.lane.b32.xlu0 %v3510, 125
      %v3591 = vpop.permute.xlu0 %3590
      %3592 = vrot.lane.b32.xlu0 %v3511, 125
      %v3593 = vpop.permute.xlu0 %3592
      %3594 = vrot.lane.b32.xlu0 %v3513, 125
      %v3595 = vpop.permute.xlu0 %3594
      %3596 = vrot.lane.b32.xlu0 %v3514, 125
      %v3597 = vpop.permute.xlu0 %3596
      %3598 = vrot.lane.b32.xlu0 %v3515, 125
      %v3599 = vpop.permute.xlu0 %3598
      %3600 = vrot.lane.b32.xlu0 %v3516, 125
      %v3601 = vpop.permute.xlu0 %3600
      %v3602 = vsel %vm498, %v3587, %v3589
      %v3603 = vsel %vm498, %v3589, %v3591
      %v3604 = vsel %vm498, %v3591, %v3593
      %v3605 = vsel %vm498, %v3595, %v3597
      %v3606 = vsel %vm498, %v3597, %v3599
      %v3607 = vsel %vm498, %v3599, %v3601
      %3616 = vrot.lane.b32.xlu0 %v3508, 124
      %v3617 = vpop.permute.xlu0 %3616
      %3618 = vrot.lane.b32.xlu0 %v3509, 124
      %v3619 = vpop.permute.xlu0 %3618
      %3620 = vrot.lane.b32.xlu0 %v3510, 124
      %v3621 = vpop.permute.xlu0 %3620
      %3622 = vrot.lane.b32.xlu0 %v3511, 124
      %v3623 = vpop.permute.xlu0 %3622
      %3624 = vrot.lane.b32.xlu0 %v3513, 124
      %v3625 = vpop.permute.xlu0 %3624
      %3626 = vrot.lane.b32.xlu0 %v3514, 124
      %v3627 = vpop.permute.xlu0 %3626
      %3628 = vrot.lane.b32.xlu0 %v3515, 124
      %v3629 = vpop.permute.xlu0 %3628
      %3630 = vrot.lane.b32.xlu0 %v3516, 124
      %v3631 = vpop.permute.xlu0 %3630
      %v3632 = vsel %vm537, %v3617, %v3619
      %v3633 = vsel %vm537, %v3619, %v3621
      %v3634 = vsel %vm537, %v3621, %v3623
      %v3635 = vsel %vm537, %v3625, %v3627
      %v3636 = vsel %vm537, %v3627, %v3629
      %v3637 = vsel %vm537, %v3629, %v3631
      %3646 = vrot.lane.b32.xlu0 %v3508, 100
      %v3647 = vpop.permute.xlu0 %3646
      %3648 = vrot.lane.b32.xlu0 %v3509, 100
      %v3649 = vpop.permute.xlu0 %3648
      %3650 = vrot.lane.b32.xlu0 %v3510, 100
      %v3651 = vpop.permute.xlu0 %3650
      %3652 = vrot.lane.b32.xlu0 %v3511, 100
      %v3653 = vpop.permute.xlu0 %3652
      %3654 = vrot.lane.b32.xlu0 %v3513, 100
      %v3655 = vpop.permute.xlu0 %3654
      %3656 = vrot.lane.b32.xlu0 %v3514, 100
      %v3657 = vpop.permute.xlu0 %3656
      %3658 = vrot.lane.b32.xlu0 %v3515, 100
      %v3659 = vpop.permute.xlu0 %3658
      %3660 = vrot.lane.b32.xlu0 %v3516, 100
      %v3661 = vpop.permute.xlu0 %3660
      %v3662 = vsel %vm683, %v3647, %v3649
      %v3663 = vsel %vm683, %v3649, %v3651
      %v3664 = vsel %vm683, %v3651, %v3653
      %v3665 = vsel %vm683, %v3655, %v3657
      %v3666 = vsel %vm683, %v3657, %v3659
      %v3667 = vsel %vm683, %v3659, %v3661
      %3676 = vrot.lane.b32.xlu0 %v3508, 99
      %v3677 = vpop.permute.xlu0 %3676
      %3678 = vrot.lane.b32.xlu0 %v3509, 99
      %v3679 = vpop.permute.xlu0 %3678
      %3680 = vrot.lane.b32.xlu0 %v3510, 99
      %v3681 = vpop.permute.xlu0 %3680
      %3682 = vrot.lane.b32.xlu0 %v3511, 99
      %v3683 = vpop.permute.xlu0 %3682
      %3684 = vrot.lane.b32.xlu0 %v3513, 99
      %v3685 = vpop.permute.xlu0 %3684
      %3686 = vrot.lane.b32.xlu0 %v3514, 99
      %v3687 = vpop.permute.xlu0 %3686
      %3688 = vrot.lane.b32.xlu0 %v3515, 99
      %v3689 = vpop.permute.xlu0 %3688
      %3690 = vrot.lane.b32.xlu0 %v3516, 99
      %v3691 = vpop.permute.xlu0 %3690
      %v3692 = vsel %vm708, %v3677, %v3679
      %v3693 = vsel %vm708, %v3679, %v3681
      %v3694 = vsel %vm708, %v3681, %v3683
      %v3695 = vsel %vm708, %v3685, %v3687
      %v3696 = vsel %vm708, %v3687, %v3689
      %v3697 = vsel %vm708, %v3689, %v3691
      %3706 = vrot.lane.b32.xlu0 %v3508, 98
      %v3707 = vpop.permute.xlu0 %3706
      %3708 = vrot.lane.b32.xlu0 %v3509, 98
      %v3709 = vpop.permute.xlu0 %3708
      %3710 = vrot.lane.b32.xlu0 %v3510, 98
      %v3711 = vpop.permute.xlu0 %3710
      %3712 = vrot.lane.b32.xlu0 %v3511, 98
      %v3713 = vpop.permute.xlu0 %3712
      %3714 = vrot.lane.b32.xlu0 %v3513, 98
      %v3715 = vpop.permute.xlu0 %3714
      %3716 = vrot.lane.b32.xlu0 %v3514, 98
      %v3717 = vpop.permute.xlu0 %3716
      %3718 = vrot.lane.b32.xlu0 %v3515, 98
      %v3719 = vpop.permute.xlu0 %3718
      %3720 = vrot.lane.b32.xlu0 %v3516, 98
      %v3721 = vpop.permute.xlu0 %3720
      %v3722 = vsel %vm738, %v3707, %v3709
      %v3723 = vsel %vm738, %v3709, %v3711
      %v3724 = vsel %vm738, %v3711, %v3713
      %v3725 = vsel %vm738, %v3715, %v3717
      %v3726 = vsel %vm738, %v3717, %v3719
      %v3727 = vsel %vm738, %v3719, %v3721
      %3736 = vrot.lane.b32.xlu0 %v3508, 97
      %v3737 = vpop.permute.xlu0 %3736
      %3738 = vrot.lane.b32.xlu0 %v3509, 97
      %v3739 = vpop.permute.xlu0 %3738
      %3740 = vrot.lane.b32.xlu0 %v3510, 97
      %v3741 = vpop.permute.xlu0 %3740
      %3742 = vrot.lane.b32.xlu0 %v3511, 97
      %v3743 = vpop.permute.xlu0 %3742
      %3744 = vrot.lane.b32.xlu0 %v3513, 97
      %v3745 = vpop.permute.xlu0 %3744
      %3746 = vrot.lane.b32.xlu0 %v3514, 97
      %v3747 = vpop.permute.xlu0 %3746
      %3748 = vrot.lane.b32.xlu0 %v3515, 97
      %v3749 = vpop.permute.xlu0 %3748
      %3750 = vrot.lane.b32.xlu0 %v3516, 97
      %v3751 = vpop.permute.xlu0 %3750
      %v3752 = vsel %vm759, %v3737, %v3739
      %v3753 = vsel %vm759, %v3739, %v3741
      %v3754 = vsel %vm759, %v3741, %v3743
      %v3755 = vsel %vm759, %v3745, %v3747
      %v3756 = vsel %vm759, %v3747, %v3749
      %v3757 = vsel %vm759, %v3749, %v3751
      %3766 = vrot.lane.b32.xlu0 %v3508, 96
      %v3767 = vpop.permute.xlu0 %3766
      %3768 = vrot.lane.b32.xlu0 %v3509, 96
      %v3769 = vpop.permute.xlu0 %3768
      %3770 = vrot.lane.b32.xlu0 %v3510, 96
      %v3771 = vpop.permute.xlu0 %3770
      %3772 = vrot.lane.b32.xlu0 %v3511, 96
      %v3773 = vpop.permute.xlu0 %3772
      %3774 = vrot.lane.b32.xlu0 %v3513, 96
      %v3775 = vpop.permute.xlu0 %3774
      %3776 = vrot.lane.b32.xlu0 %v3514, 96
      %v3777 = vpop.permute.xlu0 %3776
      %3778 = vrot.lane.b32.xlu0 %v3515, 96
      %v3779 = vpop.permute.xlu0 %3778
      %3780 = vrot.lane.b32.xlu0 %v3516, 96
      %v3781 = vpop.permute.xlu0 %3780
      %v3782 = vsel %vm789, %v3767, %v3769
      %v3783 = vsel %vm789, %v3769, %v3771
      %v3784 = vsel %vm789, %v3771, %v3773
      %v3785 = vsel %vm789, %v3775, %v3777
      %v3786 = vsel %vm789, %v3777, %v3779
      %v3787 = vsel %vm789, %v3779, %v3781
      %3796 = vrot.lane.b32.xlu0 %v3508, 72
      %v3797 = vpop.permute.xlu0 %3796
      %3798 = vrot.lane.b32.xlu0 %v3509, 72
      %v3799 = vpop.permute.xlu0 %3798
      %3800 = vrot.lane.b32.xlu0 %v3510, 72
      %v3801 = vpop.permute.xlu0 %3800
      %3802 = vrot.lane.b32.xlu0 %v3511, 72
      %v3803 = vpop.permute.xlu0 %3802
      %3804 = vrot.lane.b32.xlu0 %v3513, 72
      %v3805 = vpop.permute.xlu0 %3804
      %3806 = vrot.lane.b32.xlu0 %v3514, 72
      %v3807 = vpop.permute.xlu0 %3806
      %3808 = vrot.lane.b32.xlu0 %v3515, 72
      %v3809 = vpop.permute.xlu0 %3808
      %3810 = vrot.lane.b32.xlu0 %v3516, 72
      %v3811 = vpop.permute.xlu0 %3810
      %vm3812 = vcmask 588800
      %v3813 = vsel %vm3812, %v3797, %v3799
      %v3814 = vsel %vm3812, %v3799, %v3801
      %v3815 = vsel %vm3812, %v3801, %v3803
      %v3816 = vsel %vm3812, %v3805, %v3807
      %v3817 = vsel %vm3812, %v3807, %v3809
      %v3818 = vsel %vm3812, %v3809, %v3811
      %3827 = vrot.lane.b32.xlu0 %v3508, 71
      %v3828 = vpop.permute.xlu0 %3827
      %3829 = vrot.lane.b32.xlu0 %v3509, 71
      %v3830 = vpop.permute.xlu0 %3829
      %3831 = vrot.lane.b32.xlu0 %v3510, 71
      %v3832 = vpop.permute.xlu0 %3831
      %3833 = vrot.lane.b32.xlu0 %v3511, 71
      %v3834 = vpop.permute.xlu0 %3833
      %3835 = vrot.lane.b32.xlu0 %v3513, 71
      %v3836 = vpop.permute.xlu0 %3835
      %3837 = vrot.lane.b32.xlu0 %v3514, 71
      %v3838 = vpop.permute.xlu0 %3837
      %3839 = vrot.lane.b32.xlu0 %v3515, 71
      %v3840 = vpop.permute.xlu0 %3839
      %3841 = vrot.lane.b32.xlu0 %v3516, 71
      %v3842 = vpop.permute.xlu0 %3841
      %vm3843 = vcmask 580608
      %v3844 = vsel %vm3843, %v3828, %v3830
      %v3845 = vsel %vm3843, %v3830, %v3832
      %v3846 = vsel %vm3843, %v3832, %v3834
      %v3847 = vsel %vm3843, %v3836, %v3838
      %v3848 = vsel %vm3843, %v3838, %v3840
      %v3849 = vsel %vm3843, %v3840, %v3842
      %3858 = vrot.lane.b32.xlu0 %v3508, 70
      %v3859 = vpop.permute.xlu0 %3858
      %3860 = vrot.lane.b32.xlu0 %v3509, 70
      %v3861 = vpop.permute.xlu0 %3860
      %3862 = vrot.lane.b32.xlu0 %v3510, 70
      %v3863 = vpop.permute.xlu0 %3862
      %3864 = vrot.lane.b32.xlu0 %v3511, 70
      %v3865 = vpop.permute.xlu0 %3864
      %3866 = vrot.lane.b32.xlu0 %v3513, 70
      %v3867 = vpop.permute.xlu0 %3866
      %3868 = vrot.lane.b32.xlu0 %v3514, 70
      %v3869 = vpop.permute.xlu0 %3868
      %3870 = vrot.lane.b32.xlu0 %v3515, 70
      %v3871 = vpop.permute.xlu0 %3870
      %3872 = vrot.lane.b32.xlu0 %v3516, 70
      %v3873 = vpop.permute.xlu0 %3872
      %vm3874 = vcmask 572416
      %v3875 = vsel %vm3874, %v3859, %v3861
      %v3876 = vsel %vm3874, %v3861, %v3863
      %v3877 = vsel %vm3874, %v3863, %v3865
      %v3878 = vsel %vm3874, %v3867, %v3869
      %v3879 = vsel %vm3874, %v3869, %v3871
      %v3880 = vsel %vm3874, %v3871, %v3873
      %3889 = vrot.lane.b32.xlu0 %v3508, 69
      %v3890 = vpop.permute.xlu0 %3889
      %3891 = vrot.lane.b32.xlu0 %v3509, 69
      %v3892 = vpop.permute.xlu0 %3891
      %3893 = vrot.lane.b32.xlu0 %v3510, 69
      %v3894 = vpop.permute.xlu0 %3893
      %3895 = vrot.lane.b32.xlu0 %v3511, 69
      %v3896 = vpop.permute.xlu0 %3895
      %3897 = vrot.lane.b32.xlu0 %v3513, 69
      %v3898 = vpop.permute.xlu0 %3897
      %3899 = vrot.lane.b32.xlu0 %v3514, 69
      %v3900 = vpop.permute.xlu0 %3899
      %3901 = vrot.lane.b32.xlu0 %v3515, 69
      %v3902 = vpop.permute.xlu0 %3901
      %3903 = vrot.lane.b32.xlu0 %v3516, 69
      %v3904 = vpop.permute.xlu0 %3903
      %vm3905 = vcmask 564224
      %v3906 = vsel %vm3905, %v3890, %v3892
      %v3907 = vsel %vm3905, %v3892, %v3894
      %v3908 = vsel %vm3905, %v3894, %v3896
      %v3909 = vsel %vm3905, %v3898, %v3900
      %v3910 = vsel %vm3905, %v3900, %v3902
      %v3911 = vsel %vm3905, %v3902, %v3904
      %3920 = vrot.lane.b32.xlu0 %v3508, 68
      %v3921 = vpop.permute.xlu0 %3920
      %3922 = vrot.lane.b32.xlu0 %v3509, 68
      %v3923 = vpop.permute.xlu0 %3922
      %3924 = vrot.lane.b32.xlu0 %v3510, 68
      %v3925 = vpop.permute.xlu0 %3924
      %3926 = vrot.lane.b32.xlu0 %v3511, 68
      %v3927 = vpop.permute.xlu0 %3926
      %3928 = vrot.lane.b32.xlu0 %v3513, 68
      %v3929 = vpop.permute.xlu0 %3928
      %3930 = vrot.lane.b32.xlu0 %v3514, 68
      %v3931 = vpop.permute.xlu0 %3930
      %3932 = vrot.lane.b32.xlu0 %v3515, 68
      %v3933 = vpop.permute.xlu0 %3932
      %3934 = vrot.lane.b32.xlu0 %v3516, 68
      %v3935 = vpop.permute.xlu0 %3934
      %vm3936 = vcmask 556032
      %v3937 = vsel %vm3936, %v3921, %v3923
      %v3938 = vsel %vm3936, %v3923, %v3925
      %v3939 = vsel %vm3936, %v3925, %v3927
      %v3940 = vsel %vm3936, %v3929, %v3931
      %v3941 = vsel %vm3936, %v3931, %v3933
      %v3942 = vsel %vm3936, %v3933, %v3935
      %3953 = vrot.lane.b32.xlu0 %v3508, 44
      %v3954 = vpop.permute.xlu0 %3953
      %3955 = vrot.lane.b32.xlu0 %v3509, 44
      %v3956 = vpop.permute.xlu0 %3955
      %3957 = vrot.lane.b32.xlu0 %v3510, 44
      %v3958 = vpop.permute.xlu0 %3957
      %3959 = vrot.lane.b32.xlu0 %v3511, 44
      %v3960 = vpop.permute.xlu0 %3959
      %3961 = vrot.lane.b32.xlu0 %v3512, 44
      %v3962 = vpop.permute.xlu0 %3961
      %3963 = vrot.lane.b32.xlu0 %v3513, 44
      %v3964 = vpop.permute.xlu0 %3963
      %3965 = vrot.lane.b32.xlu0 %v3514, 44
      %v3966 = vpop.permute.xlu0 %3965
      %3967 = vrot.lane.b32.xlu0 %v3515, 44
      %v3968 = vpop.permute.xlu0 %3967
      %3969 = vrot.lane.b32.xlu0 %v3516, 44
      %v3970 = vpop.permute.xlu0 %3969
      %3971 = vrot.lane.b32.xlu0 %v3517, 44
      %v3972 = vpop.permute.xlu0 %3971
      %vm3973 = vcmask 359424
      %v3974 = vsel %vm3973, %v3954, %v3956
      %v3975 = vsel %vm3973, %v3956, %v3958
      %v3976 = vsel %vm3973, %v3958, %v3960
      %v3977 = vsel %vm3973, %v3960, %v3962
      %v3978 = vsel %vm3973, %v3964, %v3966
      %v3979 = vsel %vm3973, %v3966, %v3968
      %v3980 = vsel %vm3973, %v3968, %v3970
      %v3981 = vsel %vm3973, %v3970, %v3972
      %3990 = vrot.lane.b32.xlu0 %v3512, 127
      %v3991 = vpop.permute.xlu0 %3990
      %3992 = vrot.lane.b32.xlu0 %v3517, 127
      %v3993 = vpop.permute.xlu0 %3992
      %v3994 = vsel %vm443, %v3533, %v3991
      %v3995 = vsel %vm443, %v3541, %v3993
      %3996 = vrot.lane.b32.xlu0 %v3512, 126
      %v3997 = vpop.permute.xlu0 %3996
      %3998 = vrot.lane.b32.xlu0 %v3517, 126
      %v3999 = vpop.permute.xlu0 %3998
      %v4000 = vsel %vm468, %v3563, %v3997
      %v4001 = vsel %vm468, %v3571, %v3999
      %4002 = vrot.lane.b32.xlu0 %v3512, 125
      %v4003 = vpop.permute.xlu0 %4002
      %4004 = vrot.lane.b32.xlu0 %v3517, 125
      %v4005 = vpop.permute.xlu0 %4004
      %v4006 = vsel %vm498, %v3593, %v4003
      %v4007 = vsel %vm498, %v3601, %v4005
      %4008 = vrot.lane.b32.xlu0 %v3508, 101
      %v4009 = vpop.permute.xlu0 %4008
      %4010 = vrot.lane.b32.xlu0 %v3509, 101
      %v4011 = vpop.permute.xlu0 %4010
      %4012 = vrot.lane.b32.xlu0 %v3510, 101
      %v4013 = vpop.permute.xlu0 %4012
      %4014 = vrot.lane.b32.xlu0 %v3511, 101
      %v4015 = vpop.permute.xlu0 %4014
      %4016 = vrot.lane.b32.xlu0 %v3512, 101
      %v4017 = vpop.permute.xlu0 %4016
      %4018 = vrot.lane.b32.xlu0 %v3513, 101
      %v4019 = vpop.permute.xlu0 %4018
      %4020 = vrot.lane.b32.xlu0 %v3514, 101
      %v4021 = vpop.permute.xlu0 %4020
      %4022 = vrot.lane.b32.xlu0 %v3515, 101
      %v4023 = vpop.permute.xlu0 %4022
      %4024 = vrot.lane.b32.xlu0 %v3516, 101
      %v4025 = vpop.permute.xlu0 %4024
      %4026 = vrot.lane.b32.xlu0 %v3517, 101
      %v4027 = vpop.permute.xlu0 %4026
      %v4028 = vsel %vm1194, %v4009, %v4011
      %v4029 = vsel %vm1194, %v4011, %v4013
      %v4030 = vsel %vm1194, %v4013, %v4015
      %v4031 = vsel %vm1194, %v4015, %v4017
      %v4032 = vsel %vm1194, %v4019, %v4021
      %v4033 = vsel %vm1194, %v4021, %v4023
      %v4034 = vsel %vm1194, %v4023, %v4025
      %v4035 = vsel %vm1194, %v4025, %v4027
      %4036 = vrot.lane.b32.xlu0 %v3512, 100
      %v4037 = vpop.permute.xlu0 %4036
      %4038 = vrot.lane.b32.xlu0 %v3517, 100
      %v4039 = vpop.permute.xlu0 %4038
      %v4040 = vsel %vm683, %v3653, %v4037
      %v4041 = vsel %vm683, %v3661, %v4039
      %4042 = vrot.lane.b32.xlu0 %v3512, 99
      %v4043 = vpop.permute.xlu0 %4042
      %4044 = vrot.lane.b32.xlu0 %v3517, 99
      %v4045 = vpop.permute.xlu0 %4044
      %v4046 = vsel %vm708, %v3683, %v4043
      %v4047 = vsel %vm708, %v3691, %v4045
      %4048 = vrot.lane.b32.xlu0 %v3512, 98
      %v4049 = vpop.permute.xlu0 %4048
      %4050 = vrot.lane.b32.xlu0 %v3517, 98
      %v4051 = vpop.permute.xlu0 %4050
      %v4052 = vsel %vm738, %v3713, %v4049
      %v4053 = vsel %vm738, %v3721, %v4051
      %4054 = vrot.lane.b32.xlu0 %v3512, 97
      %v4055 = vpop.permute.xlu0 %4054
      %4056 = vrot.lane.b32.xlu0 %v3517, 97
      %v4057 = vpop.permute.xlu0 %4056
      %v4058 = vsel %vm759, %v3743, %v4055
      %v4059 = vsel %vm759, %v3751, %v4057
      %4060 = vrot.lane.b32.xlu0 %v3508, 43
      %v4061 = vpop.permute.xlu0 %4060
      %4062 = vrot.lane.b32.xlu0 %v3509, 43
      %v4063 = vpop.permute.xlu0 %4062
      %4064 = vrot.lane.b32.xlu0 %v3510, 43
      %v4065 = vpop.permute.xlu0 %4064
      %4066 = vrot.lane.b32.xlu0 %v3511, 43
      %v4067 = vpop.permute.xlu0 %4066
      %4068 = vrot.lane.b32.xlu0 %v3512, 43
      %v4069 = vpop.permute.xlu0 %4068
      %4070 = vrot.lane.b32.xlu0 %v3513, 43
      %v4071 = vpop.permute.xlu0 %4070
      %4072 = vrot.lane.b32.xlu0 %v3514, 43
      %v4073 = vpop.permute.xlu0 %4072
      %4074 = vrot.lane.b32.xlu0 %v3515, 43
      %v4075 = vpop.permute.xlu0 %4074
      %4076 = vrot.lane.b32.xlu0 %v3516, 43
      %v4077 = vpop.permute.xlu0 %4076
      %4078 = vrot.lane.b32.xlu0 %v3517, 43
      %v4079 = vpop.permute.xlu0 %4078
      %4080 = vrot.lane.b32.xlu0 %v3542, 43
      %v4081 = vpop.permute.xlu0 %4080
      %4082 = vrot.lane.b32.xlu0 %v3543, 43
      %v4083 = vpop.permute.xlu0 %4082
      %4084 = vrot.lane.b32.xlu0 %v3544, 43
      %v4085 = vpop.permute.xlu0 %4084
      %4086 = vrot.lane.b32.xlu0 %v3994, 43
      %v4087 = vpop.permute.xlu0 %4086
      %4088 = vrot.lane.b32.xlu0 %v3991, 43
      %v4089 = vpop.permute.xlu0 %4088
      %4090 = vrot.lane.b32.xlu0 %v3545, 43
      %v4091 = vpop.permute.xlu0 %4090
      %4092 = vrot.lane.b32.xlu0 %v3546, 43
      %v4093 = vpop.permute.xlu0 %4092
      %4094 = vrot.lane.b32.xlu0 %v3547, 43
      %v4095 = vpop.permute.xlu0 %4094
      %4096 = vrot.lane.b32.xlu0 %v3995, 43
      %v4097 = vpop.permute.xlu0 %4096
      %4098 = vrot.lane.b32.xlu0 %v3993, 43
      %v4099 = vpop.permute.xlu0 %4098
      %4100 = vrot.lane.b32.xlu0 %v3572, 43
      %v4101 = vpop.permute.xlu0 %4100
      %4102 = vrot.lane.b32.xlu0 %v3573, 43
      %v4103 = vpop.permute.xlu0 %4102
      %4104 = vrot.lane.b32.xlu0 %v3574, 43
      %v4105 = vpop.permute.xlu0 %4104
      %4106 = vrot.lane.b32.xlu0 %v4000, 43
      %v4107 = vpop.permute.xlu0 %4106
      %4108 = vrot.lane.b32.xlu0 %v3997, 43
      %v4109 = vpop.permute.xlu0 %4108
      %4110 = vrot.lane.b32.xlu0 %v3575, 43
      %v4111 = vpop.permute.xlu0 %4110
      %4112 = vrot.lane.b32.xlu0 %v3576, 43
      %v4113 = vpop.permute.xlu0 %4112
      %4114 = vrot.lane.b32.xlu0 %v3577, 43
      %v4115 = vpop.permute.xlu0 %4114
      %4116 = vrot.lane.b32.xlu0 %v4001, 43
      %v4117 = vpop.permute.xlu0 %4116
      %4118 = vrot.lane.b32.xlu0 %v3999, 43
      %v4119 = vpop.permute.xlu0 %4118
      %4120 = vrot.lane.b32.xlu0 %v3602, 43
      %v4121 = vpop.permute.xlu0 %4120
      %4122 = vrot.lane.b32.xlu0 %v3603, 43
      %v4123 = vpop.permute.xlu0 %4122
      %4124 = vrot.lane.b32.xlu0 %v3604, 43
      %v4125 = vpop.permute.xlu0 %4124
      %4126 = vrot.lane.b32.xlu0 %v4006, 43
      %v4127 = vpop.permute.xlu0 %4126
      %4128 = vrot.lane.b32.xlu0 %v4003, 43
      %v4129 = vpop.permute.xlu0 %4128
      %4130 = vrot.lane.b32.xlu0 %v3605, 43
      %v4131 = vpop.permute.xlu0 %4130
      %4132 = vrot.lane.b32.xlu0 %v3606, 43
      %v4133 = vpop.permute.xlu0 %4132
      %4134 = vrot.lane.b32.xlu0 %v3607, 43
      %v4135 = vpop.permute.xlu0 %4134
      %4136 = vrot.lane.b32.xlu0 %v4007, 43
      %v4137 = vpop.permute.xlu0 %4136
      %4138 = vrot.lane.b32.xlu0 %v4005, 43
      %v4139 = vpop.permute.xlu0 %4138
      %4140 = vrot.lane.b32.xlu0 %v4028, 43
      %v4141 = vpop.permute.xlu0 %4140
      %4142 = vrot.lane.b32.xlu0 %v4029, 43
      %v4143 = vpop.permute.xlu0 %4142
      %4144 = vrot.lane.b32.xlu0 %v4030, 43
      %v4145 = vpop.permute.xlu0 %4144
      %4146 = vrot.lane.b32.xlu0 %v4031, 43
      %v4147 = vpop.permute.xlu0 %4146
      %4148 = vrot.lane.b32.xlu0 %v4017, 43
      %v4149 = vpop.permute.xlu0 %4148
      %4150 = vrot.lane.b32.xlu0 %v4032, 43
      %v4151 = vpop.permute.xlu0 %4150
      %4152 = vrot.lane.b32.xlu0 %v4033, 43
      %v4153 = vpop.permute.xlu0 %4152
      %4154 = vrot.lane.b32.xlu0 %v4034, 43
      %v4155 = vpop.permute.xlu0 %4154
      %4156 = vrot.lane.b32.xlu0 %v4035, 43
      %v4157 = vpop.permute.xlu0 %4156
      %4158 = vrot.lane.b32.xlu0 %v4027, 43
      %v4159 = vpop.permute.xlu0 %4158
      %4160 = vrot.lane.b32.xlu0 %v3662, 43
      %v4161 = vpop.permute.xlu0 %4160
      %4162 = vrot.lane.b32.xlu0 %v3663, 43
      %v4163 = vpop.permute.xlu0 %4162
      %4164 = vrot.lane.b32.xlu0 %v3664, 43
      %v4165 = vpop.permute.xlu0 %4164
      %4166 = vrot.lane.b32.xlu0 %v4040, 43
      %v4167 = vpop.permute.xlu0 %4166
      %4168 = vrot.lane.b32.xlu0 %v4037, 43
      %v4169 = vpop.permute.xlu0 %4168
      %4170 = vrot.lane.b32.xlu0 %v3665, 43
      %v4171 = vpop.permute.xlu0 %4170
      %4172 = vrot.lane.b32.xlu0 %v3666, 43
      %v4173 = vpop.permute.xlu0 %4172
      %4174 = vrot.lane.b32.xlu0 %v3667, 43
      %v4175 = vpop.permute.xlu0 %4174
      %4176 = vrot.lane.b32.xlu0 %v4041, 43
      %v4177 = vpop.permute.xlu0 %4176
      %4178 = vrot.lane.b32.xlu0 %v4039, 43
      %v4179 = vpop.permute.xlu0 %4178
      %4180 = vrot.lane.b32.xlu0 %v3692, 43
      %v4181 = vpop.permute.xlu0 %4180
      %4182 = vrot.lane.b32.xlu0 %v3693, 43
      %v4183 = vpop.permute.xlu0 %4182
      %4184 = vrot.lane.b32.xlu0 %v3694, 43
      %v4185 = vpop.permute.xlu0 %4184
      %4186 = vrot.lane.b32.xlu0 %v4046, 43
      %v4187 = vpop.permute.xlu0 %4186
      %4188 = vrot.lane.b32.xlu0 %v4043, 43
      %v4189 = vpop.permute.xlu0 %4188
      %4190 = vrot.lane.b32.xlu0 %v3695, 43
      %v4191 = vpop.permute.xlu0 %4190
      %4192 = vrot.lane.b32.xlu0 %v3696, 43
      %v4193 = vpop.permute.xlu0 %4192
      %4194 = vrot.lane.b32.xlu0 %v3697, 43
      %v4195 = vpop.permute.xlu0 %4194
      %4196 = vrot.lane.b32.xlu0 %v4047, 43
      %v4197 = vpop.permute.xlu0 %4196
      %4198 = vrot.lane.b32.xlu0 %v4045, 43
      %v4199 = vpop.permute.xlu0 %4198
      %4200 = vrot.lane.b32.xlu0 %v3722, 43
      %v4201 = vpop.permute.xlu0 %4200
      %4202 = vrot.lane.b32.xlu0 %v3723, 43
      %v4203 = vpop.permute.xlu0 %4202
      %4204 = vrot.lane.b32.xlu0 %v3724, 43
      %v4205 = vpop.permute.xlu0 %4204
      %4206 = vrot.lane.b32.xlu0 %v4052, 43
      %v4207 = vpop.permute.xlu0 %4206
      %4208 = vrot.lane.b32.xlu0 %v4049, 43
      %v4209 = vpop.permute.xlu0 %4208
      %4210 = vrot.lane.b32.xlu0 %v3725, 43
      %v4211 = vpop.permute.xlu0 %4210
      %4212 = vrot.lane.b32.xlu0 %v3726, 43
      %v4213 = vpop.permute.xlu0 %4212
      %4214 = vrot.lane.b32.xlu0 %v3727, 43
      %v4215 = vpop.permute.xlu0 %4214
      %4216 = vrot.lane.b32.xlu0 %v4053, 43
      %v4217 = vpop.permute.xlu0 %4216
      %4218 = vrot.lane.b32.xlu0 %v4051, 43
      %v4219 = vpop.permute.xlu0 %4218
      %4220 = vrot.lane.b32.xlu0 %v3752, 43
      %v4221 = vpop.permute.xlu0 %4220
      %4222 = vrot.lane.b32.xlu0 %v3753, 43
      %v4223 = vpop.permute.xlu0 %4222
      %4224 = vrot.lane.b32.xlu0 %v3754, 43
      %v4225 = vpop.permute.xlu0 %4224
      %4226 = vrot.lane.b32.xlu0 %v4058, 43
      %v4227 = vpop.permute.xlu0 %4226
      %4228 = vrot.lane.b32.xlu0 %v4055, 43
      %v4229 = vpop.permute.xlu0 %4228
      %4230 = vrot.lane.b32.xlu0 %v3755, 43
      %v4231 = vpop.permute.xlu0 %4230
      %4232 = vrot.lane.b32.xlu0 %v3756, 43
      %v4233 = vpop.permute.xlu0 %4232
      %4234 = vrot.lane.b32.xlu0 %v3757, 43
      %v4235 = vpop.permute.xlu0 %4234
      %4236 = vrot.lane.b32.xlu0 %v4059, 43
      %v4237 = vpop.permute.xlu0 %4236
      %4238 = vrot.lane.b32.xlu0 %v4057, 43
      %v4239 = vpop.permute.xlu0 %4238
      %vm4240 = vcmask 351232
      %v4241 = vsel %vm4240, %v4061, %v4063
      %v4242 = vsel %vm4240, %v4063, %v4065
      %v4243 = vsel %vm4240, %v4065, %v4067
      %v4244 = vsel %vm4240, %v4067, %v4069
      %v4245 = vsel %vm4240, %v4071, %v4073
      %v4246 = vsel %vm4240, %v4073, %v4075
      %v4247 = vsel %vm4240, %v4075, %v4077
      %v4248 = vsel %vm4240, %v4077, %v4079
      %v4249 = vsel %vm4240, %v4081, %v4083
      %v4250 = vsel %vm4240, %v4083, %v4085
      %v4251 = vsel %vm4240, %v4085, %v4087
      %v4252 = vsel %vm4240, %v4087, %v4089
      %v4253 = vsel %vm4240, %v4091, %v4093
      %v4254 = vsel %vm4240, %v4093, %v4095
      %v4255 = vsel %vm4240, %v4095, %v4097
      %v4256 = vsel %vm4240, %v4097, %v4099
      %v4257 = vsel %vm4240, %v4101, %v4103
      %v4258 = vsel %vm4240, %v4103, %v4105
      %v4259 = vsel %vm4240, %v4105, %v4107
      %v4260 = vsel %vm4240, %v4107, %v4109
      %v4261 = vsel %vm4240, %v4111, %v4113
      %v4262 = vsel %vm4240, %v4113, %v4115
      %v4263 = vsel %vm4240, %v4115, %v4117
      %v4264 = vsel %vm4240, %v4117, %v4119
      %v4265 = vsel %vm4240, %v4121, %v4123
      %v4266 = vsel %vm4240, %v4123, %v4125
      %v4267 = vsel %vm4240, %v4125, %v4127
      %v4268 = vsel %vm4240, %v4127, %v4129
      %v4269 = vsel %vm4240, %v4131, %v4133
      %v4270 = vsel %vm4240, %v4133, %v4135
      %v4271 = vsel %vm4240, %v4135, %v4137
      %v4272 = vsel %vm4240, %v4137, %v4139
      %v4273 = vsel %vm4240, %v4141, %v4143
      %v4274 = vsel %vm4240, %v4143, %v4145
      %v4275 = vsel %vm4240, %v4145, %v4147
      %v4276 = vsel %vm4240, %v4147, %v4149
      %v4277 = vsel %vm4240, %v4151, %v4153
      %v4278 = vsel %vm4240, %v4153, %v4155
      %v4279 = vsel %vm4240, %v4155, %v4157
      %v4280 = vsel %vm4240, %v4157, %v4159
      %v4281 = vsel %vm4240, %v4161, %v4163
      %v4282 = vsel %vm4240, %v4163, %v4165
      %v4283 = vsel %vm4240, %v4165, %v4167
      %v4284 = vsel %vm4240, %v4167, %v4169
      %v4285 = vsel %vm4240, %v4171, %v4173
      %v4286 = vsel %vm4240, %v4173, %v4175
      %v4287 = vsel %vm4240, %v4175, %v4177
      %v4288 = vsel %vm4240, %v4177, %v4179
      %v4289 = vsel %vm4240, %v4181, %v4183
      %v4290 = vsel %vm4240, %v4183, %v4185
      %v4291 = vsel %vm4240, %v4185, %v4187
      %v4292 = vsel %vm4240, %v4187, %v4189
      %v4293 = vsel %vm4240, %v4191, %v4193
      %v4294 = vsel %vm4240, %v4193, %v4195
      %v4295 = vsel %vm4240, %v4195, %v4197
      %v4296 = vsel %vm4240, %v4197, %v4199
      %v4297 = vsel %vm4240, %v4201, %v4203
      %v4298 = vsel %vm4240, %v4203, %v4205
      %v4299 = vsel %vm4240, %v4205, %v4207
      %v4300 = vsel %vm4240, %v4207, %v4209
      %v4301 = vsel %vm4240, %v4211, %v4213
      %v4302 = vsel %vm4240, %v4213, %v4215
      %v4303 = vsel %vm4240, %v4215, %v4217
      %v4304 = vsel %vm4240, %v4217, %v4219
      %v4305 = vsel %vm4240, %v4221, %v4223
      %v4306 = vsel %vm4240, %v4223, %v4225
      %v4307 = vsel %vm4240, %v4225, %v4227
      %v4308 = vsel %vm4240, %v4227, %v4229
      %v4309 = vsel %vm4240, %v4231, %v4233
      %v4310 = vsel %vm4240, %v4233, %v4235
      %v4311 = vsel %vm4240, %v4235, %v4237
      %v4312 = vsel %vm4240, %v4237, %v4239
      %v4385 = vld [vmem:[%s6] sm:$0xff]
      %v4386 = vld [vmem:[%s6 + $0x8] sm:$0x3f]
      %v4387 = vld [vmem:[%s7] sm:$0x7]
      %4389 = vset.pattern.permute.xlu0 0
      %4390 = vperm.xlu0 %4389, %v4387
      %v4391 = vpop.permute.xlu0 %4390
      %v4395 = vcombine.high %v4385, %v4385
      %v4397 = vunpack.c.l.s4 1983009808
      %v4398 = vunpack.c.0.s8 %v4397
      %v4399 = vlaneseq
      %v4400 = vshrl.u32 %v4399, 7
      %v4401 = vsub.s32 %v4398, %v4400
      %v4402 = vrot.slane %v4385, %v4401
      %v4404 = vunpack.c.l.s4 1983009808
      %v4405 = vunpack.c.0.s8 %v4404
      %v4406 = vlaneseq
      %v4407 = vshrl.u32 %v4406, 7
      %v4408 = vsub.s32 %v4405, %v4407
      %v4409 = vrot.slane %v4395, %v4408
      %v4410 = vcombine.high %v4402, %v4402
      %v4411 = vcombine.high %v4409, %v4409
      %v4412 = vcombine.high %v4386, %v4386
      %v4414 = vunpack.c.l.s4 1983009808
      %v4415 = vunpack.c.0.s8 %v4414
      %v4416 = vlaneseq
      %v4417 = vshrl.u32 %v4416, 7
      %v4418 = vsub.s32 %v4415, %v4417
      %v4419 = vrot.slane %v4386, %v4418
      %v4421 = vunpack.c.l.s4 1983009808
      %v4422 = vunpack.c.0.s8 %v4421
      %v4423 = vlaneseq
      %v4424 = vshrl.u32 %v4423, 7
      %v4425 = vsub.s32 %v4422, %v4424
      %v4426 = vrot.slane %v4412, %v4425
      %v4427 = vcombine.high %v4419, %v4419
      %vm4434 = vcmask 261120
      %v4436 = vsel %vm4434, %v4426, 0
      %4438 = vmatprep.subr.bf16.mxu0 %v3606
      %4439 = vmatpush1.bf16.msra.mxu0 %v3605
      %4440 = vmatprep.subr.bf16.mxu0 %v3603
      %4441 = vmatpush1.bf16.msra.mxu0 %v3602
      %4442 = vmatprep.subr.bf16.mxu0 %v3576
      %4443 = vmatpush1.bf16.msra.mxu0 %v3575
      %4444 = vmatprep.subr.bf16.mxu0 %v3573
      %4445 = vmatpush1.bf16.msra.mxu0 %v3572
      %4446 = vmatprep.subr.bf16.mxu0 %v3546
      %4447 = vmatpush1.bf16.msra.mxu0 %v3545
      %4448 = vmatprep.subr.bf16.mxu0 %v3543
      %4449 = vmatpush1.bf16.msra.mxu0 %v3542
      %4450 = vmatprep.subr.bf16.mxu0 %v3514
      %4451 = vmatpush1.bf16.msra.mxu0 %v3513
      %4452 = vmatprep.subr.bf16.mxu0 %v3509
      %4453 = vmatpush1.bf16.msra.mxu0 %v3508
      %4454 = vmatprep.subr.bf16.mxu0 %v3726
      %4455 = vmatpush2.bf16.msra.mxu0 %v3725
      %4456 = vmatprep.subr.bf16.mxu0 %v3723
      %4457 = vmatpush2.bf16.msra.mxu0 %v3722
      %4458 = vmatprep.subr.bf16.mxu0 %v3696
      %4459 = vmatpush2.bf16.msra.mxu0 %v3695
      %4460 = vmatprep.subr.bf16.mxu0 %v3693
      %4461 = vmatpush2.bf16.msra.mxu0 %v3692
      %4462 = vmatprep.subr.bf16.mxu0 %v3666
      %4463 = vmatpush2.bf16.msra.mxu0 %v3665
      %4464 = vmatprep.subr.bf16.mxu0 %v3663
      %4465 = vmatpush2.bf16.msra.mxu0 %v3662
      %4466 = vmatprep.subr.bf16.mxu0 %v3636
      %4467 = vmatpush2.bf16.msra.mxu0 %v3635
      %4468 = vmatprep.subr.bf16.mxu0 %v3633
      %4469 = vmatpush2.bf16.msra.mxu0 %v3632
      %4470 = vmatprep.mubr.bf16.mxu0 %v4410
      %4471 = vmatmul.mubr.bf16.gmra.mxu0 %v4402
      %v4472 = vpop.f32.mrf.mxu0
      %v4473 = vadd.f32 %v4391, %v4472
      %v4474 = vpop.f32.mrf.mxu0
      %v4475 = vadd.f32 %v4391, %v4474
      %v4476 = vpop.f32.mrf.mxu0
      %v4477 = vpop.f32.mrf.mxu0
      %4478 = vdwg.mxu0
      %4479 = vmatprep.subr.bf16.mxu0 %v3848
      %4480 = vmatpush1.bf16.msra.mxu0 %v3847
      %4481 = vmatprep.subr.bf16.mxu0 %v3845
      %4482 = vmatpush1.bf16.msra.mxu0 %v3844
      %4483 = vmatprep.subr.bf16.mxu0 %v3817
      %4484 = vmatpush1.bf16.msra.mxu0 %v3816
      %4485 = vmatprep.subr.bf16.mxu0 %v3814
      %4486 = vmatpush1.bf16.msra.mxu0 %v3813
      %4487 = vmatprep.subr.bf16.mxu0 %v3786
      %4488 = vmatpush1.bf16.msra.mxu0 %v3785
      %4489 = vmatprep.subr.bf16.mxu0 %v3783
      %4490 = vmatpush1.bf16.msra.mxu0 %v3782
      %4491 = vmatprep.subr.bf16.mxu0 %v3756
      %4492 = vmatpush1.bf16.msra.mxu0 %v3755
      %4493 = vmatprep.subr.bf16.mxu0 %v3753
      %4494 = vmatpush1.bf16.msra.mxu0 %v3752
      %4495 = vmatprep.subr.bf16.mxu0 %v3979
      %4496 = vmatpush2.bf16.msra.mxu0 %v3978
      %4497 = vmatprep.subr.bf16.mxu0 %v3975
      %4498 = vmatpush2.bf16.msra.mxu0 %v3974
      %4499 = vmatprep.subr.bf16.mxu0 %v3941
      %4500 = vmatpush2.bf16.msra.mxu0 %v3940
      %4501 = vmatprep.subr.bf16.mxu0 %v3938
      %4502 = vmatpush2.bf16.msra.mxu0 %v3937
      %4503 = vmatprep.subr.bf16.mxu0 %v3910
      %4504 = vmatpush2.bf16.msra.mxu0 %v3909
      %4505 = vmatprep.subr.bf16.mxu0 %v3907
      %4506 = vmatpush2.bf16.msra.mxu0 %v3906
      %4507 = vmatprep.subr.bf16.mxu0 %v3879
      %4508 = vmatpush2.bf16.msra.mxu0 %v3878
      %4509 = vmatprep.subr.bf16.mxu0 %v3876
      %4510 = vmatpush2.bf16.msra.mxu0 %v3875
      %4511 = vmatprep.mubr.bf16.mxu0 %v4411
      %4512 = vmatmul.mubr.bf16.gmra.mxu0 %v4409
      %v4513 = vpop.f32.mrf.mxu0
      %v4514 = vadd.f32 %v4473, %v4513
      %v4515 = vpop.f32.mrf.mxu0
      %v4516 = vadd.f32 %v4475, %v4515
      %v4517 = vpop.f32.mrf.mxu0
      %v4518 = vpop.f32.mrf.mxu0
      %4519 = vdwg.mxu0
      %4520 = vmatprep.subr.bf16.mxu0 %v4270
      %4521 = vmatpush1.bf16.msra.mxu0 %v4269
      %4522 = vmatprep.subr.bf16.mxu0 %v4266
      %4523 = vmatpush1.bf16.msra.mxu0 %v4265
      %4524 = vmatprep.subr.bf16.mxu0 %v4262
      %4525 = vmatpush1.bf16.msra.mxu0 %v4261
      %4526 = vmatprep.subr.bf16.mxu0 %v4258
      %4527 = vmatpush1.bf16.msra.mxu0 %v4257
      %4528 = vmatprep.subr.bf16.mxu0 %v4254
      %4529 = vmatpush1.bf16.msra.mxu0 %v4253
      %4530 = vmatprep.subr.bf16.mxu0 %v4250
      %4531 = vmatpush1.bf16.msra.mxu0 %v4249
      %4532 = vmatprep.subr.bf16.mxu0 %v4246
      %4533 = vmatpush1.bf16.msra.mxu0 %v4245
      %4534 = vmatprep.subr.bf16.mxu0 %v4242
      %4535 = vmatpush1.bf16.msra.mxu0 %v4241
      %4536 = vmatprep.subr.bf16.mxu0 %v4302
      %4537 = vmatpush2.bf16.msra.mxu0 %v4301
      %4538 = vmatprep.subr.bf16.mxu0 %v4298
      %4539 = vmatpush2.bf16.msra.mxu0 %v4297
      %4540 = vmatprep.subr.bf16.mxu0 %v4294
      %4541 = vmatpush2.bf16.msra.mxu0 %v4293
      %4542 = vmatprep.subr.bf16.mxu0 %v4290
      %4543 = vmatpush2.bf16.msra.mxu0 %v4289
      %4544 = vmatprep.subr.bf16.mxu0 %v4286
      %4545 = vmatpush2.bf16.msra.mxu0 %v4285
      %4546 = vmatprep.subr.bf16.mxu0 %v4282
      %4547 = vmatpush2.bf16.msra.mxu0 %v4281
      %4548 = vmatprep.subr.bf16.mxu0 %v4278
      %4549 = vmatpush2.bf16.msra.mxu0 %v4277
      %4550 = vmatprep.subr.bf16.mxu0 %v4274
      %4551 = vmatpush2.bf16.msra.mxu0 %v4273
      %4552 = vmatprep.mubr.bf16.mxu0 %v4427
      %4553 = vmatmul.mubr.bf16.gmra.mxu0 %v4419
      %v4554 = vpop.f32.mrf.mxu0
      %v4555 = vadd.f32 %v4514, %v4554
      %v4556 = vpop.f32.mrf.mxu0
      %v4557 = vadd.f32 %v4516, %v4556
      %v4558 = vpop.f32.mrf.mxu0
      %v4559 = vpop.f32.mrf.mxu0
      %4560 = vdwg.mxu0
      %4561 = vmatprep.subr.bf16.mxu0 0
      %4562 = vmatpush1.bf16.msra.mxu0 0
      %4563 = vmatprep.subr.bf16.mxu0 0
      %4564 = vmatpush1.bf16.msra.mxu0 0
      %4565 = vmatprep.subr.bf16.mxu0 0
      %4566 = vmatpush1.bf16.msra.mxu0 0
      %4567 = vmatprep.subr.bf16.mxu0 0
      %4568 = vmatpush1.bf16.msra.mxu0 0
      %4569 = vmatprep.subr.bf16.mxu0 0
      %4570 = vmatpush1.bf16.msra.mxu0 0
      %4571 = vmatprep.subr.bf16.mxu0 0
      %4572 = vmatpush1.bf16.msra.mxu0 0
      %4573 = vmatprep.subr.bf16.mxu0 %v4310
      %4574 = vmatpush1.bf16.msra.mxu0 %v4309
      %4575 = vmatprep.subr.bf16.mxu0 %v4306
      %4576 = vmatpush1.bf16.msra.mxu0 %v4305
      %4577 = vmatprep.subr.bf16.mxu0 0
      %4578 = vmatpush2.bf16.msra.mxu0 0
      %4579 = vmatprep.subr.bf16.mxu0 0
      %4580 = vmatpush2.bf16.msra.mxu0 0
      %4581 = vmatprep.subr.bf16.mxu0 0
      %4582 = vmatpush2.bf16.msra.mxu0 0
      %4583 = vmatprep.subr.bf16.mxu0 0
      %4584 = vmatpush2.bf16.msra.mxu0 0
      %4585 = vmatprep.subr.bf16.mxu0 0
      %4586 = vmatpush2.bf16.msra.mxu0 0
      %4587 = vmatprep.subr.bf16.mxu0 0
      %4588 = vmatpush2.bf16.msra.mxu0 0
      %4589 = vmatprep.subr.bf16.mxu0 0
      %4590 = vmatpush2.bf16.msra.mxu0 0
      %4591 = vmatprep.subr.bf16.mxu0 0
      %4592 = vmatpush2.bf16.msra.mxu0 0
      %4593 = vmatprep.mubr.bf16.mxu0 0
      %4594 = vmatmul.mubr.bf16.gmra.mxu0 %v4436
      %v4595 = vpop.f32.mrf.mxu0
      %v4596 = vadd.f32 %v4555, %v4595
      %v4597 = vpop.f32.mrf.mxu0
      %v4598 = vadd.f32 %v4557, %v4597
      %v4599 = vpop.f32.mrf.mxu0
      %v4600 = vpop.f32.mrf.mxu0
      %4601 = vdwg.mxu0
      %4602 = vmatprep.subr.bf16.mxu0 %v3601
      %4603 = vmatpush1.bf16.msra.mxu0 %v3607
      %4604 = vmatprep.subr.bf16.mxu0 %v3593
      %4605 = vmatpush1.bf16.msra.mxu0 %v3604
      %4606 = vmatprep.subr.bf16.mxu0 %v3571
      %4607 = vmatpush1.bf16.msra.mxu0 %v3577
      %4608 = vmatprep.subr.bf16.mxu0 %v3563
      %4609 = vmatpush1.bf16.msra.mxu0 %v3574
      %4610 = vmatprep.subr.bf16.mxu0 %v3541
      %4611 = vmatpush1.bf16.msra.mxu0 %v3547
      %4612 = vmatprep.subr.bf16.mxu0 %v3533
      %4613 = vmatpush1.bf16.msra.mxu0 %v3544
      %4614 = vmatprep.subr.bf16.mxu0 %v3516
      %4615 = vmatpush1.bf16.msra.mxu0 %v3515
      %4616 = vmatprep.subr.bf16.mxu0 %v3511
      %4617 = vmatpush1.bf16.msra.mxu0 %v3510
      %4618 = vmatprep.subr.bf16.mxu0 %v3721
      %4619 = vmatpush2.bf16.msra.mxu0 %v3727
      %4620 = vmatprep.subr.bf16.mxu0 %v3713
      %4621 = vmatpush2.bf16.msra.mxu0 %v3724
      %4622 = vmatprep.subr.bf16.mxu0 %v3691
      %4623 = vmatpush2.bf16.msra.mxu0 %v3697
      %4624 = vmatprep.subr.bf16.mxu0 %v3683
      %4625 = vmatpush2.bf16.msra.mxu0 %v3694
      %4626 = vmatprep.subr.bf16.mxu0 %v3661
      %4627 = vmatpush2.bf16.msra.mxu0 %v3667
      %4628 = vmatprep.subr.bf16.mxu0 %v3653
      %4629 = vmatpush2.bf16.msra.mxu0 %v3664
      %4630 = vmatprep.subr.bf16.mxu0 %v3631
      %4631 = vmatpush2.bf16.msra.mxu0 %v3637
      %4632 = vmatprep.subr.bf16.mxu0 %v3623
      %4633 = vmatpush2.bf16.msra.mxu0 %v3634
      %4634 = vmatprep.mubr.bf16.mxu0 %v4410
      %4635 = vmatmul.mubr.bf16.gmra.mxu0 %v4402
      %v4636 = vpop.f32.mrf.mxu0
      %v4637 = vadd.f32 %v4391, %v4636
      %v4638 = vpop.f32.mrf.mxu0
      %v4639 = vadd.f32 %v4391, %v4638
      %v4640 = vpop.f32.mrf.mxu0
      %v4641 = vpop.f32.mrf.mxu0
      %4642 = vdwg.mxu0
      %4643 = vmatprep.subr.bf16.mxu0 %v3842
      %4644 = vmatpush1.bf16.msra.mxu0 %v3849
      %4645 = vmatprep.subr.bf16.mxu0 %v3834
      %4646 = vmatpush1.bf16.msra.mxu0 %v3846
      %4647 = vmatprep.subr.bf16.mxu0 %v3811
      %4648 = vmatpush1.bf16.msra.mxu0 %v3818
      %4649 = vmatprep.subr.bf16.mxu0 %v3803
      %4650 = vmatpush1.bf16.msra.mxu0 %v3815
      %4651 = vmatprep.subr.bf16.mxu0 %v3781
      %4652 = vmatpush1.bf16.msra.mxu0 %v3787
      %4653 = vmatprep.subr.bf16.mxu0 %v3773
      %4654 = vmatpush1.bf16.msra.mxu0 %v3784
      %4655 = vmatprep.subr.bf16.mxu0 %v3751
      %4656 = vmatpush1.bf16.msra.mxu0 %v3757
      %4657 = vmatprep.subr.bf16.mxu0 %v3743
      %4658 = vmatpush1.bf16.msra.mxu0 %v3754
      %4659 = vmatprep.subr.bf16.mxu0 %v3981
      %4660 = vmatpush2.bf16.msra.mxu0 %v3980
      %4661 = vmatprep.subr.bf16.mxu0 %v3977
      %4662 = vmatpush2.bf16.msra.mxu0 %v3976
      %4663 = vmatprep.subr.bf16.mxu0 %v3935
      %4664 = vmatpush2.bf16.msra.mxu0 %v3942
      %4665 = vmatprep.subr.bf16.mxu0 %v3927
      %4666 = vmatpush2.bf16.msra.mxu0 %v3939
      %4667 = vmatprep.subr.bf16.mxu0 %v3904
      %4668 = vmatpush2.bf16.msra.mxu0 %v3911
      %4669 = vmatprep.subr.bf16.mxu0 %v3896
      %4670 = vmatpush2.bf16.msra.mxu0 %v3908
      %4671 = vmatprep.subr.bf16.mxu0 %v3873
      %4672 = vmatpush2.bf16.msra.mxu0 %v3880
      %4673 = vmatprep.subr.bf16.mxu0 %v3865
      %4674 = vmatpush2.bf16.msra.mxu0 %v3877
      %4675 = vmatprep.mubr.bf16.mxu0 %v4411
      %4676 = vmatmul.mubr.bf16.gmra.mxu0 %v4409
      %v4677 = vpop.f32.mrf.mxu0
      %v4678 = vadd.f32 %v4637, %v4677
      %v4679 = vpop.f32.mrf.mxu0
      %v4680 = vadd.f32 %v4639, %v4679
      %v4681 = vpop.f32.mrf.mxu0
      %v4682 = vpop.f32.mrf.mxu0
      %4683 = vdwg.mxu0
      %4684 = vmatprep.subr.bf16.mxu0 %v4272
      %4685 = vmatpush1.bf16.msra.mxu0 %v4271
      %4686 = vmatprep.subr.bf16.mxu0 %v4268
      %4687 = vmatpush1.bf16.msra.mxu0 %v4267
      %4688 = vmatprep.subr.bf16.mxu0 %v4264
      %4689 = vmatpush1.bf16.msra.mxu0 %v4263
      %4690 = vmatprep.subr.bf16.mxu0 %v4260
      %4691 = vmatpush1.bf16.msra.mxu0 %v4259
      %4692 = vmatprep.subr.bf16.mxu0 %v4256
      %4693 = vmatpush1.bf16.msra.mxu0 %v4255
      %4694 = vmatprep.subr.bf16.mxu0 %v4252
      %4695 = vmatpush1.bf16.msra.mxu0 %v4251
      %4696 = vmatprep.subr.bf16.mxu0 %v4248
      %4697 = vmatpush1.bf16.msra.mxu0 %v4247
      %4698 = vmatprep.subr.bf16.mxu0 %v4244
      %4699 = vmatpush1.bf16.msra.mxu0 %v4243
      %4700 = vmatprep.subr.bf16.mxu0 %v4304
      %4701 = vmatpush2.bf16.msra.mxu0 %v4303
      %4702 = vmatprep.subr.bf16.mxu0 %v4300
      %4703 = vmatpush2.bf16.msra.mxu0 %v4299
      %4704 = vmatprep.subr.bf16.mxu0 %v4296
      %4705 = vmatpush2.bf16.msra.mxu0 %v4295
      %4706 = vmatprep.subr.bf16.mxu0 %v4292
      %4707 = vmatpush2.bf16.msra.mxu0 %v4291
      %4708 = vmatprep.subr.bf16.mxu0 %v4288
      %4709 = vmatpush2.bf16.msra.mxu0 %v4287
      %4710 = vmatprep.subr.bf16.mxu0 %v4284
      %4711 = vmatpush2.bf16.msra.mxu0 %v4283
      %4712 = vmatprep.subr.bf16.mxu0 %v4280
      %4713 = vmatpush2.bf16.msra.mxu0 %v4279
      %4714 = vmatprep.subr.bf16.mxu0 %v4276
      %4715 = vmatpush2.bf16.msra.mxu0 %v4275
      %4716 = vmatprep.mubr.bf16.mxu0 %v4427
      %4717 = vmatmul.mubr.bf16.gmra.mxu0 %v4419
      %v4718 = vpop.f32.mrf.mxu0
      %v4719 = vadd.f32 %v4678, %v4718
      %v4720 = vpop.f32.mrf.mxu0
      %v4721 = vadd.f32 %v4680, %v4720
      %v4722 = vpop.f32.mrf.mxu0
      %v4723 = vpop.f32.mrf.mxu0
      %4724 = vdwg.mxu0
      %4725 = vmatprep.subr.bf16.mxu0 0
      %4726 = vmatpush1.bf16.msra.mxu0 0
      %4727 = vmatprep.subr.bf16.mxu0 0
      %4728 = vmatpush1.bf16.msra.mxu0 0
      %4729 = vmatprep.subr.bf16.mxu0 0
      %4730 = vmatpush1.bf16.msra.mxu0 0
      %4731 = vmatprep.subr.bf16.mxu0 0
      %4732 = vmatpush1.bf16.msra.mxu0 0
      %4733 = vmatprep.subr.bf16.mxu0 0
      %4734 = vmatpush1.bf16.msra.mxu0 0
      %4735 = vmatprep.subr.bf16.mxu0 0
      %4736 = vmatpush1.bf16.msra.mxu0 0
      %4737 = vmatprep.subr.bf16.mxu0 %v4312
      %4738 = vmatpush1.bf16.msra.mxu0 %v4311
      %4739 = vmatprep.subr.bf16.mxu0 %v4308
      %4740 = vmatpush1.bf16.msra.mxu0 %v4307
      %4741 = vmatprep.subr.bf16.mxu0 0
      %4742 = vmatpush2.bf16.msra.mxu0 0
      %4743 = vmatprep.subr.bf16.mxu0 0
      %4744 = vmatpush2.bf16.msra.mxu0 0
      %4745 = vmatprep.subr.bf16.mxu0 0
      %4746 = vmatpush2.bf16.msra.mxu0 0
      %4747 = vmatprep.subr.bf16.mxu0 0
      %4748 = vmatpush2.bf16.msra.mxu0 0
      %4749 = vmatprep.subr.bf16.mxu0 0
      %4750 = vmatpush2.bf16.msra.mxu0 0
      %4751 = vmatprep.subr.bf16.mxu0 0
      %4752 = vmatpush2.bf16.msra.mxu0 0
      %4753 = vmatprep.subr.bf16.mxu0 0
      %4754 = vmatpush2.bf16.msra.mxu0 0
      %4755 = vmatprep.subr.bf16.mxu0 0
      %4756 = vmatpush2.bf16.msra.mxu0 0
      %4757 = vmatprep.mubr.bf16.mxu0 0
      %4758 = vmatmul.mubr.bf16.gmra.mxu0 %v4436
      %v4759 = vpop.f32.mrf.mxu0
      %v4760 = vadd.f32 %v4719, %v4759
      %v4761 = vpop.f32.mrf.mxu0
      %v4762 = vadd.f32 %v4721, %v4761
      %v4763 = vpop.f32.mrf.mxu0
      %v4764 = vpop.f32.mrf.mxu0
      %4765 = vdwg.mxu0
      %v4770 = vcombine.low %v4596, %v4598
      %v4771 = vcombine.low %v4760, %v4762
      %4774 = vst [vmem:[%s358] sm:$0x77] %v4770
      %vm4775 = vcmask 522244
      %vm4776 = vmor %vm4775, %vm862
      %4777 = vst.msk [vmem:[%s358 + $0x8] sm:$0x77] %vm4776, %v4771
      %p4778 = scmp.lt.s32.totalorder %s23, 1
      %s4779 = scalar_select %p4778, %s23, 1
      %p4780 = scmp.lt.s32.totalorder %s24, 0
      %s4781 = scalar_select %p4780, %s24, 0
      %s4782 = smul.addr %s4781, 4
      %s4783 = smul.addr %s4779, 4
      %s4784 = sadd.s32 %s4782, %s4783
      %s4785 = smul.addr %s4784, 4
      %s4786 = scalar_lea.vmem %s8, %s4785
      // Predicated region
      $region53: #{network_forward.1} parent=51 // pred_check
        %p4787 = pneg %p231
      $region54: #{network_forward.1} parent=51 // pred_check_branch
        %4789 = sbr.rel (%p4787) target = $region56
      $region55: #{network_forward.1} parent=51 // pred_region
        _
      $region56: #{network_forward.1} parent=51 // pred_fallthru
        _
    $region52: #{network_forward.1} parent=5 // pred_fallthru
      _
    %p4790 = scmp.le.s32.totalorder 2, %s14
    // Predicated region
    $region57: #{network_forward.1} parent=5 // pred_check
      %p4791 = pneg %p4790
    $region58: #{network_forward.1} parent=5 // pred_check_branch
      %4793 = sbr.rel (%p4791) target = $region60
    $region59: #{network_forward.1} parent=5 // pred_region
      %s4794 = ssub.s32 %s14, 2
      // Predicated region
      $region61: #{network_forward.1} parent=59 // pred_check
        %p4795 = pneg %p237
      $region62: #{network_forward.1} parent=59 // pred_check_branch
        %4797 = sbr.rel (%p4795) target = $region64
      $region63: #{network_forward.1} parent=59 // pred_region
        %p4798 = scmp.lt.s32.totalorder %s25, 1
        %s4799 = scalar_select %p4798, %s25, 1
        %p4800 = scmp.lt.s32.totalorder %s26, 0
        %s4801 = scalar_select %p4800, %s26, 0
        %s4802 = smul.addr %s4801, 4
        %s4803 = smul.addr %s4799, 4
        %s4804 = sadd.s32 %s4802, %s4803
        %s4805 = smul.addr %s4804, 4
        %s4806 = scalar_lea.vmem %s8, %s4805
      $region64: #{network_forward.1} parent=59 // pred_fallthru
        _
    $region60: #{network_forward.1} parent=5 // pred_fallthru
      _
  $region6: #{network_forward.1} parent=0 // loop_footer
    %s18 = sadd.s32 1, %s14
  $region7: #{network_forward.1} parent=0 // loop_footer_branch
    %13 = sbr.rel target = $region3
  $region8: #{network_forward.1} parent=0 // loop_exit
    _

</llo_original>
